<compile_context>
chip_gen: v6e
topology: v6e:2x2x1
jax: 0.10.0
libtpu: 0.0.40
codegen_flags: <defaults>
</compile_context>

<pallas_src>
import functools

import numpy as np
import jax
import jax.numpy as jnp
from jax import lax
from jax.experimental import pallas as pl
from jax.experimental.pallas import tpu as pltpu


def gru_fc_kernel(x_ref, wih_ref, whh_rz_ref, whh_n_ref, bcomb_ref, bhn_ref,
                  wfc_ref, bfc_ref, len_ref, out_ref,
                  gi_ref, h_ref, log_ref, *, Tc, Hp, unroll):
    """One (batch-tile, time-chunk) grid step of GRU + fc + sigmoid.

    x_ref:      (Tc, Bt, Dp)  time-major, zero-padded input chunk
    wih_ref:    (Dp, 3*Hp)    W_ih^T, gate blocks lane-padded to Hp
    whh_rz_ref: (Hp, 2*Hp)    W_hh^T, r/z gate blocks
    whh_n_ref:  (Hp, Hp)      W_hh^T, n gate block
    bcomb_ref:  (1, 3*Hp)     [b_ih_r+b_hh_r | b_ih_z+b_hh_z | b_ih_n]
    bhn_ref:    (1, Hp)       b_hh_n (kept separate: scaled by r)
    wfc_ref:    (1, Hp)       fc weight row
    bfc_ref:    (1, 1)        fc bias
    len_ref:    (Bt, 1) int32 sequence lengths
    out_ref:    (Bt, Tc)      sigmoid(fc(hidden)), time on lanes
    """
    Bt = h_ref.shape[0]
    Dp = x_ref.shape[2]
    chunk = pl.program_id(1)

    # -- (0) Reset the carried hidden state at the start of each batch tile's time loop.
    @pl.when(chunk == 0)
    def _():
        h_ref[...] = jnp.zeros_like(h_ref)

    # -- (1) Input-side GEMM for the whole chunk (one MXU matmul, r/z biases pre-folded).
    x2d = x_ref[...].reshape(Tc * Bt, Dp)
    gi = jnp.dot(x2d, wih_ref[...], preferred_element_type=jnp.float32)
    gi_ref[...] = (gi + bcomb_ref[...]).reshape(Tc, Bt, 3 * Hp)

    # -- (2) Serial GRU recurrence over the chunk; h carried as a loop value, fc logit
    #        computed per step (no (T,B,H) hidden-state scratch).
    whh_rz = whh_rz_ref[...]
    whh_n = whh_n_ref[...]
    mm_dtype = whh_rz.dtype
    bhn = jnp.broadcast_to(bhn_ref[...], (Bt, Hp))      # hoisted broadcasts
    wfc = jnp.broadcast_to(wfc_ref[...], (Bt, Hp))

    def one_step(t, h_prev):
        gi_t = gi_ref[t]                                             # (Bt, 3*Hp)
        hm = h_prev.astype(mm_dtype)
        # r/z matmul first; n matmul issued before the EUP work so its MXU time
        # overlaps the sigmoids and the r * (gh_n + b_hn) prep.
        gh_rz = jnp.dot(hm, whh_rz, preferred_element_type=jnp.float32)   # (Bt, 2*Hp)
        gh_n = jnp.dot(hm, whh_n, preferred_element_type=jnp.float32)     # (Bt, Hp)
        r = jax.nn.sigmoid(gi_t[:, 0:Hp] + gh_rz[:, 0:Hp])
        z = jax.nn.sigmoid(gi_t[:, Hp:2 * Hp] + gh_rz[:, Hp:2 * Hp])
        n = jnp.tanh(gi_t[:, 2 * Hp:3 * Hp] + r * (gh_n + bhn))
        h_new = (1.0 - z) * n + z * h_prev
        # Deferred fc head: VPU multiply + lane reduce, tiny VMEM row store.
        logit = jnp.sum(h_new * wfc, axis=-1)[None, :]               # (1, Bt)
        log_ref[pl.ds(t, 1), :] = logit
        return h_new

    def unrolled_body(i, h):
        t0 = i * unroll
        for u in range(unroll):                                      # manual unroll
            h = one_step(t0 + u, h)
        return h

    h_last = lax.fori_loop(0, Tc // unroll, unrolled_body, h_ref[...])
    h_ref[...] = h_last

    # -- (3) Mask padded positions, add fc bias, sigmoid, one lane-dense block store.
    # pad_packed_sequence zero-pads hidden beyond each length, so fc there yields b_fc
    # => sigmoid(b_fc); reproduce that with the validity mask.
    logits_bt = log_ref[...].T                                       # (Bt, Tc)
    t_global = chunk * Tc + lax.broadcasted_iota(jnp.int32, (Bt, Tc), 1)
    valid = t_global < len_ref[...]                                  # (Bt,1) broadcasts
    out_ref[...] = jax.nn.sigmoid(jnp.where(valid, logits_bt, 0.0) + bfc_ref[...])


def _round_up(a, m):
    return (a + m - 1) // m * m


def predictor_forward(x, seq_lengths, params, *, time_chunk=128, num_batch_tiles=1,
                      use_bf16=False, unroll=2):
    """x: (B, T, D) float32 (batch_first). seq_lengths: python list / np ints (CPU side,
    like PyTorch). Returns (B, max(seq_lengths), 1) float32, matching PredictorModel."""
    B, T, D = x.shape
    H = params["w_hh"].shape[1]          # w_hh: (3H, H)
    max_len = int(max(int(l) for l in seq_lengths))

    nb = max(int(num_batch_tiles), 1)    # use 2 on v7x to spread batch over both TCs
    Bp = _round_up(B, 8 * nb)            # sublane-align each batch tile
    Bt = Bp // nb
    Hp = _round_up(H, 128)               # lane-align each gate block
    Dp = _round_up(D, 128)               # lane-align input features

    # Time chunking: Tc a multiple of 8; lane-aligned (128) if more than one chunk so
    # the (Bt, Tc) output block keeps a legal, lane-dense minor dimension.
    unroll = max(int(unroll), 1)
    Tc = _round_up(min(int(time_chunk), _round_up(max_len, 8)), 8)
    if _round_up(max_len, Tc) > Tc:
        Tc = _round_up(Tc, 128)
    if Tc % unroll != 0:
        unroll = 1
    Tp = _round_up(max_len, Tc)
    nt = Tp // Tc

    f32 = jnp.float32
    mm_dt = jnp.bfloat16 if use_bf16 else f32

    # x -> time-major, zero-padded (Tp, Bp, Dp).
    x_tm = jnp.transpose(x.astype(f32), (1, 0, 2))[:max_len]
    x_pad = jnp.zeros((Tp, Bp, Dp), f32).at[:max_len, :B, :D].set(x_tm).astype(mm_dt)

    # W_ih^T / W_hh^T with each gate block padded to Hp columns (zeros elsewhere), so
    # padded hidden columns provably stay zero through the recurrence.
    wih_g = params["w_ih"].astype(f32).reshape(3, H, D)
    wih_t = jnp.transpose(
        jnp.zeros((3, Hp, Dp), f32).at[:, :H, :D].set(wih_g), (2, 0, 1)
    ).reshape(Dp, 3 * Hp).astype(mm_dt)

    whh_g = params["w_hh"].astype(f32).reshape(3, H, H)
    whh_t = jnp.transpose(
        jnp.zeros((3, Hp, Hp), f32).at[:, :H, :H].set(whh_g), (2, 0, 1)
    ).reshape(Hp, 3 * Hp)
    whh_rz = whh_t[:, :2 * Hp].astype(mm_dt)
    whh_n = whh_t[:, 2 * Hp:].astype(mm_dt)

    # Pre-fold biases: r/z gates get b_ih+b_hh, n gate gets b_ih only (b_hn separate).
    b_ih_g = params["b_ih"].astype(f32).reshape(3, H)
    b_hh_g = params["b_hh"].astype(f32).reshape(3, H)
    fold = jnp.array([1.0, 1.0, 0.0], f32)[:, None]
    b_comb = jnp.zeros((3, Hp), f32).at[:, :H].set(b_ih_g + fold * b_hh_g).reshape(1, 3 * Hp)
    b_hn = jnp.zeros((1, Hp), f32).at[0, :H].set(b_hh_g[2])

    wfc = jnp.zeros((1, Hp), f32).at[0, :H].set(params["w_fc"].astype(f32)[0])
    bfc = params["b_fc"].astype(f32).reshape(1, 1)

    lens = jnp.zeros((Bp, 1), jnp.int32).at[:B, 0].set(
        jnp.asarray(np.asarray(seq_lengths, dtype=np.int32)))

    kernel = functools.partial(gru_fc_kernel, Tc=Tc, Hp=Hp, unroll=unroll)

    # Scoped-VMEM budget: 2x (double-buffered) blocks + resident scratches + headroom.
    isz = jnp.dtype(mm_dt).itemsize
    block_bytes = (Tc * Bt * Dp * isz            # x chunk
                   + 3 * Dp * Hp * isz           # W_ih^T
                   + 3 * Hp * Hp * isz           # W_hh^T (r,z) + (n)
                   + (5 * Hp + 1 + Bt) * 4       # biases, wfc, bfc, lens
                   + Bt * Tc * 4)                # output block
    scratch_bytes = Tc * Bt * 3 * Hp * 4 + Bt * Hp * 4 + Tc * Bt * 4
    vmem_limit = int(min(max(2 * block_bytes + scratch_bytes + (4 << 20), 16 << 20),
                         64 << 20))

    out = pl.pallas_call(
        kernel,
        out_shape=jax.ShapeDtypeStruct((Bp, Tp), f32),
        grid_spec=pltpu.PrefetchScalarGridSpec(
            num_scalar_prefetch=0,
            grid=(nb, nt),                                     # (batch tiles, time chunks)
            in_specs=[
                pl.BlockSpec((Tc, Bt, Dp), lambda b, t: (t, b, 0)),   # x (time-major)
                pl.BlockSpec((Dp, 3 * Hp), lambda b, t: (0, 0)),      # W_ih^T
                pl.BlockSpec((Hp, 2 * Hp), lambda b, t: (0, 0)),      # W_hh^T (r,z)
                pl.BlockSpec((Hp, Hp), lambda b, t: (0, 0)),          # W_hh^T (n)
                pl.BlockSpec((1, 3 * Hp), lambda b, t: (0, 0)),       # folded biases
                pl.BlockSpec((1, Hp), lambda b, t: (0, 0)),           # b_hn
                pl.BlockSpec((1, Hp), lambda b, t: (0, 0)),           # W_fc row
                pl.BlockSpec((1, 1), lambda b, t: (0, 0)),            # b_fc
                pl.BlockSpec((Bt, 1), lambda b, t: (b, 0)),           # seq lengths (int32)
            ],
            out_specs=pl.BlockSpec((Bt, Tc), lambda b, t: (b, t)),    # lane-dense output
            scratch_shapes=[
                pltpu.VMEM((Tc, Bt, 3 * Hp), jnp.float32),  # per-chunk input-GEMM result
                pltpu.VMEM((Bt, Hp), jnp.float32),          # carried hidden state
                pltpu.VMEM((Tc, Bt), jnp.float32),          # per-chunk fc logits
            ],
        ),
        compiler_params=pltpu.CompilerParams(
            dimension_semantics=("parallel", "arbitrary"),
            vmem_limit_bytes=vmem_limit,
        ),
    )(x_pad, wih_t, whh_rz, whh_n, b_comb, b_hn, wfc, bfc, lens)

    # (Bp, Tp) lane-dense slab -> (B, max_len, 1), batch-first like PyTorch.
    return out[:B, :max_len, None]


def predictor_forward_ref(x, seq_lengths, params):
    """Pure-JAX reference (lax.scan) of the same forward, for verification."""
    B, T, D = x.shape
    H = params["w_hh"].shape[1]
    max_len = int(max(int(l) for l in seq_lengths))
    wih_t = params["w_ih"].T
    whh_t = params["w_hh"].T
    bih = params["b_ih"]
    bhh = params["b_hh"]
    lens = jnp.asarray(np.asarray(seq_lengths, dtype=np.float32)).reshape(B, 1)

    def step(h, x_t_and_t):
        x_t, t = x_t_and_t
        gi = x_t @ wih_t + bih
        gh = h @ whh_t + bhh
        i_r, i_z, i_n = gi[:, :H], gi[:, H:2 * H], gi[:, 2 * H:]
        h_r, h_z, h_n = gh[:, :H], gh[:, H:2 * H], gh[:, 2 * H:]
        r = jax.nn.sigmoid(i_r + h_r)
        z = jax.nn.sigmoid(i_z + h_z)
        n = jnp.tanh(i_n + r * h_n)
        h_new = (1.0 - z) * n + z * h
        valid = (lens > t).astype(jnp.float32)
        return h_new, h_new * valid

    x_tm = jnp.transpose(x, (1, 0, 2))[:max_len]
    ts = jnp.arange(max_len, dtype=jnp.float32)
    _, hs = jax.lax.scan(step, jnp.zeros((B, H), jnp.float32), (x_tm, ts))
    hs = jnp.transpose(hs, (1, 0, 2))                               # (B, max_len, H)
    out = hs @ params["w_fc"].T + params["b_fc"]
    return jax.nn.sigmoid(out)


def init_params(key, input_dim, hidden_dim):
    """Deterministic init mimicking PyTorch's uniform(-1/sqrt(H), 1/sqrt(H))."""
    k = 1.0 / np.sqrt(hidden_dim)
    keys = jax.random.split(key, 6)
    u = lambda kk, shape: jax.random.uniform(kk, shape, jnp.float32, -k, k)
    return {
        "w_ih": u(keys[0], (3 * hidden_dim, input_dim)),
        "w_hh": u(keys[1], (3 * hidden_dim, hidden_dim)),
        "b_ih": u(keys[2], (3 * hidden_dim,)),
        "b_hh": u(keys[3], (3 * hidden_dim,)),
        "w_fc": u(keys[4], (1, hidden_dim)),
        "b_fc": u(keys[5], (1,)),
    }


if __name__ == "__main__":
    # Align the XLA reference and the Mosaic kernel on full-precision f32 matmuls so the
    # tolerance below is meaningful (the bf16 production path needs a looser tolerance).
    jax.config.update("jax_default_matmul_precision", "highest")

    B, T, D, H = 2, 8, 4, 32
    key = jax.random.PRNGKey(0)
    pkey, xkey = jax.random.split(key)
    params = init_params(pkey, D, H)
    x = jax.random.normal(xkey, (B, T, D), dtype=jnp.float32)
    seq_lengths = [5, 8]   # unsorted, as allowed by enforce_sorted=False

    out = jax.block_until_ready(predictor_forward(x, seq_lengths, params))
    ref = jax.block_until_ready(predictor_forward_ref(x, seq_lengths, params))
    assert out.shape == (B, max(seq_lengths), 1)
    np.testing.assert_allclose(np.asarray(out), np.asarray(ref), atol=1e-4, rtol=1e-4)

    # Multi-chunk path: time axis pipelined through the grid, h carried across chunks.
    T2 = 160
    x2 = jax.random.normal(jax.random.PRNGKey(1), (B, T2, D), dtype=jnp.float32)
    seq_lengths2 = [130, 160]
    out2 = jax.block_until_ready(
        predictor_forward(x2, seq_lengths2, params, time_chunk=128))
    ref2 = jax.block_until_ready(predictor_forward_ref(x2, seq_lengths2, params))
    assert out2.shape == (B, max(seq_lengths2), 1)
    np.testing.assert_allclose(np.asarray(out2), np.asarray(ref2), atol=1e-4, rtol=1e-4)

    print("KERNEL_OK")
</pallas_src>

<mosaic_0001>
module attributes {stable_mosaic.version = 11 : i64} {
  func.func @gru_fc_kernel(%arg0: i32, %arg1: i32, %arg2: memref<8x8x128xf32, #tpu.memory_space<vmem>>, %arg3: memref<128x384xf32, #tpu.memory_space<vmem>>, %arg4: memref<128x256xf32, #tpu.memory_space<vmem>>, %arg5: memref<128x128xf32, #tpu.memory_space<vmem>>, %arg6: memref<1x384xf32, #tpu.memory_space<vmem>>, %arg7: memref<1x128xf32, #tpu.memory_space<vmem>>, %arg8: memref<1x128xf32, #tpu.memory_space<vmem>>, %arg9: memref<1x1xf32, #tpu.memory_space<vmem>>, %arg10: memref<8x1xi32, #tpu.memory_space<vmem>>, %arg11: memref<8x8xf32, #tpu.memory_space<vmem>>, %arg12: memref<8x8x384xf32, #tpu.memory_space<vmem>>, %arg13: memref<8x128xf32, #tpu.memory_space<vmem>>, %arg14: memref<8x8xf32, #tpu.memory_space<vmem>>) attributes {dimension_semantics = [#tpu.dimension_semantics<parallel>, #tpu.dimension_semantics<arbitrary>], iteration_bounds = array<i64: 1, 1>, scalar_prefetch = 0 : i64, scratch_operands = 3 : i64, tpu.core_type = #tpu.core_type<tc>, window_params = [{transform_indices = @transform_0, window_bounds = array<i64: 8, 8, 128>}, {pipeline_mode = #tpu.pipeline_mode<synchronous>, transform_indices = @transform_1, window_bounds = array<i64: 128, 384>}, {pipeline_mode = #tpu.pipeline_mode<synchronous>, transform_indices = @transform_2, window_bounds = array<i64: 128, 256>}, {pipeline_mode = #tpu.pipeline_mode<synchronous>, transform_indices = @transform_3, window_bounds = array<i64: 128, 128>}, {pipeline_mode = #tpu.pipeline_mode<synchronous>, transform_indices = @transform_4, window_bounds = array<i64: 1, 384>}, {pipeline_mode = #tpu.pipeline_mode<synchronous>, transform_indices = @transform_5, window_bounds = array<i64: 1, 128>}, {pipeline_mode = #tpu.pipeline_mode<synchronous>, transform_indices = @transform_6, window_bounds = array<i64: 1, 128>}, {pipeline_mode = #tpu.pipeline_mode<synchronous>, transform_indices = @transform_7, window_bounds = array<i64: 1, 1>}, {transform_indices = @transform_8, window_bounds = array<i64: 8, 1>}, {transform_indices = @transform_9, window_bounds = array<i64: 8, 8>}]} {
    %c0_i32 = arith.constant 0 : i32
    %0 = arith.cmpi eq, %arg1, %c0_i32 : i32
    %1 = arith.extui %0 : i1 to i32
    %c0_i32_0 = arith.constant 0 : i32
    %2 = arith.cmpi ne, %1, %c0_i32_0 : i32
    scf.if %2 {
      %cst_34 = arith.constant 0.000000e+00 : f32
      %44 = vector.broadcast %cst_34 : f32 to vector<8x128xf32>
      %c0_35 = arith.constant 0 : index
      %c0_36 = arith.constant 0 : index
      %45 = vector.load %arg13[%c0_35, %c0_36] : memref<8x128xf32, #tpu.memory_space<vmem>>, vector<8x128xf32>
      tpu.vector_store %arg13[%c0_35, %c0_36], %44 {strides = array<i32>} : memref<8x128xf32, #tpu.memory_space<vmem>>, vector<8x128xf32>,
    } else {
    }
    %c0 = arith.constant 0 : index
    %c0_1 = arith.constant 0 : index
    %c0_2 = arith.constant 0 : index
    %3 = vector.load %arg2[%c0, %c0_1, %c0_2] : memref<8x8x128xf32, #tpu.memory_space<vmem>>, vector<8x8x128xf32>
    %4 = vector.shape_cast %3 : vector<8x8x128xf32> to vector<64x128xf32>
    %c0_3 = arith.constant 0 : index
    %c0_4 = arith.constant 0 : index
    %5 = vector.load %arg3[%c0_3, %c0_4] : memref<128x384xf32, #tpu.memory_space<vmem>>, vector<128x384xf32>
    %cst = arith.constant dense<0.000000e+00> : vector<64x384xf32>
    %6 = tpu.matmul %4, %5, %cst {dimension_numbers = #tpu.dot_dimension_numbers<[1], [0], [0], [1], [0, 0, 1, 1], [], []>, precision = #tpu.contract_precision<fp32>} : vector<64x128xf32>, vector<128x384xf32>, vector<64x384xf32> -> vector<64x384xf32>
    %c0_5 = arith.constant 0 : index
    %c0_6 = arith.constant 0 : index
    %7 = vector.load %arg6[%c0_5, %c0_6] : memref<1x384xf32, #tpu.memory_space<vmem>>, vector<1x384xf32>
    %8 = vector.broadcast %7 : vector<1x384xf32> to vector<64x384xf32>
    %9 = arith.addf %6, %8 : vector<64x384xf32>
    %10 = vector.shape_cast %9 : vector<64x384xf32> to vector<8x8x384xf32>
    %c0_7 = arith.constant 0 : index
    %c0_8 = arith.constant 0 : index
    %c0_9 = arith.constant 0 : index
    %11 = vector.load %arg12[%c0_7, %c0_8, %c0_9] : memref<8x8x384xf32, #tpu.memory_space<vmem>>, vector<8x8x384xf32>
    tpu.vector_store %arg12[%c0_7, %c0_8, %c0_9], %10 {strides = array<i32>} : memref<8x8x384xf32, #tpu.memory_space<vmem>>, vector<8x8x384xf32>,
    %c0_10 = arith.constant 0 : index
    %c0_11 = arith.constant 0 : index
    %12 = vector.load %arg4[%c0_10, %c0_11] : memref<128x256xf32, #tpu.memory_space<vmem>>, vector<128x256xf32>
    %c0_12 = arith.constant 0 : index
    %c0_13 = arith.constant 0 : index
    %13 = vector.load %arg5[%c0_12, %c0_13] : memref<128x128xf32, #tpu.memory_space<vmem>>, vector<128x128xf32>
    %c0_14 = arith.constant 0 : index
    %c0_15 = arith.constant 0 : index
    %14 = vector.load %arg7[%c0_14, %c0_15] : memref<1x128xf32, #tpu.memory_space<vmem>>, vector<1x128xf32>
    %15 = vector.shape_cast %14 : vector<1x128xf32> to vector<1x128xf32>
    %16 = vector.broadcast %15 : vector<1x128xf32> to vector<8x128xf32>
    %c0_16 = arith.constant 0 : index
    %c0_17 = arith.constant 0 : index
    %17 = vector.load %arg8[%c0_16, %c0_17] : memref<1x128xf32, #tpu.memory_space<vmem>>, vector<1x128xf32>
    %18 = vector.shape_cast %17 : vector<1x128xf32> to vector<1x128xf32>
    %19 = vector.broadcast %18 : vector<1x128xf32> to vector<8x128xf32>
    %c0_18 = arith.constant 0 : index
    %c0_19 = arith.constant 0 : index
    %20 = vector.load %arg13[%c0_18, %c0_19] : memref<8x128xf32, #tpu.memory_space<vmem>>, vector<8x128xf32>
    %c0_i32_20 = arith.constant 0 : i32
    %c4_i32 = arith.constant 4 : i32
    %21 = arith.addi %c0_i32_20, %c4_i32 : i32
    %c1_i32 = arith.constant 1 : i32
    %22 = scf.for %arg15 = %c0_i32_20 to %21 step %c1_i32 iter_args(%arg16 = %20) -> (vector<8x128xf32>)  : i32 {
      %c2_i32 = arith.constant 2 : i32
      %44 = arith.muli %arg15, %c2_i32 : i32
      %c0_i32_34 = arith.constant 0 : i32
      %45 = arith.addi %44, %c0_i32_34 : i32
      %46 = arith.index_cast %45 : i32 to index
      %c0_35 = arith.constant 0 : index
      %c0_36 = arith.constant 0 : index
      %47 = vector.load %arg12[%46, %c0_35, %c0_36] : memref<8x8x384xf32, #tpu.memory_space<vmem>>, vector<1x8x384xf32>
      %48 = vector.shape_cast %47 : vector<1x8x384xf32> to vector<8x384xf32>
      %cst_37 = arith.constant dense<0.000000e+00> : vector<8x256xf32>
      %49 = tpu.matmul %arg16, %12, %cst_37 {dimension_numbers = #tpu.dot_dimension_numbers<[1], [0], [0], [1], [0, 0, 1, 1], [], []>, precision = #tpu.contract_precision<fp32>} : vector<8x128xf32>, vector<128x256xf32>, vector<8x256xf32> -> vector<8x256xf32>
      %cst_38 = arith.constant dense<0.000000e+00> : vector<8x128xf32>
      %50 = tpu.matmul %arg16, %13, %cst_38 {dimension_numbers = #tpu.dot_dimension_numbers<[1], [0], [0], [1], [0, 0, 1, 1], [], []>, precision = #tpu.contract_precision<fp32>} : vector<8x128xf32>, vector<128x128xf32>, vector<8x128xf32> -> vector<8x128xf32>
      %51 = vector.extract_strided_slice %48 {offsets = [0, 0], sizes = [8, 128], strides = [1, 1]} : vector<8x384xf32> to vector<8x128xf32>
      %52 = vector.extract_strided_slice %49 {offsets = [0, 0], sizes = [8, 128], strides = [1, 1]} : vector<8x256xf32> to vector<8x128xf32>
      %53 = arith.addf %51, %52 : vector<8x128xf32>
      %54 = arith.negf %53 : vector<8x128xf32>
      %55 = math.exp %54 : vector<8x128xf32>
      %cst_39 = arith.constant 1.000000e+00 : f32
      %56 = vector.broadcast %cst_39 : f32 to vector<8x128xf32>
      %57 = arith.addf %56, %55 : vector<8x128xf32>
      %58 = arith.divf %56, %57 : vector<8x128xf32>
      %59 = vector.extract_strided_slice %48 {offsets = [0, 128], sizes = [8, 128], strides = [1, 1]} : vector<8x384xf32> to vector<8x128xf32>
      %60 = vector.extract_strided_slice %49 {offsets = [0, 128], sizes = [8, 128], strides = [1, 1]} : vector<8x256xf32> to vector<8x128xf32>
      %61 = arith.addf %59, %60 : vector<8x128xf32>
      %62 = arith.negf %61 : vector<8x128xf32>
      %63 = math.exp %62 : vector<8x128xf32>
      %cst_40 = arith.constant 1.000000e+00 : f32
      %64 = vector.broadcast %cst_40 : f32 to vector<8x128xf32>
      %65 = arith.addf %64, %63 : vector<8x128xf32>
      %66 = arith.divf %64, %65 : vector<8x128xf32>
      %67 = vector.extract_strided_slice %48 {offsets = [0, 256], sizes = [8, 128], strides = [1, 1]} : vector<8x384xf32> to vector<8x128xf32>
      %68 = arith.addf %50, %16 : vector<8x128xf32>
      %69 = arith.mulf %58, %68 : vector<8x128xf32>
      %70 = arith.addf %67, %69 : vector<8x128xf32>
      %71 = math.tanh %70 : vector<8x128xf32>
      %cst_41 = arith.constant 1.000000e+00 : f32
      %72 = vector.broadcast %cst_41 : f32 to vector<8x128xf32>
      %73 = arith.subf %72, %66 : vector<8x128xf32>
      %74 = arith.mulf %73, %71 : vector<8x128xf32>
      %75 = arith.mulf %66, %arg16 : vector<8x128xf32>
      %76 = arith.addf %74, %75 : vector<8x128xf32>
      %77 = arith.mulf %76, %19 : vector<8x128xf32>
      %cst_42 = arith.constant dense<0.000000e+00> : vector<8xf32>
      %78 = vector.multi_reduction <add>, %77, %cst_42 [1] : vector<8x128xf32> to vector<8xf32>
      %79 = vector.shape_cast %78 : vector<8xf32> to vector<1x8xf32>
      %80 = arith.index_cast %45 : i32 to index
      %c0_43 = arith.constant 0 : index
      %81 = vector.load %arg14[%80, %c0_43] : memref<8x8xf32, #tpu.memory_space<vmem>>, vector<1x8xf32>
      tpu.vector_store %arg14[%80, %c0_43], %79 {strides = array<i32>} : memref<8x8xf32, #tpu.memory_space<vmem>>, vector<1x8xf32>,
      %c1_i32_44 = arith.constant 1 : i32
      %82 = arith.addi %44, %c1_i32_44 : i32
      %83 = arith.index_cast %82 : i32 to index
      %c0_45 = arith.constant 0 : index
      %c0_46 = arith.constant 0 : index
      %84 = vector.load %arg12[%83, %c0_45, %c0_46] : memref<8x8x384xf32, #tpu.memory_space<vmem>>, vector<1x8x384xf32>
      %85 = vector.shape_cast %84 : vector<1x8x384xf32> to vector<8x384xf32>
      %cst_47 = arith.constant dense<0.000000e+00> : vector<8x256xf32>
      %86 = tpu.matmul %76, %12, %cst_47 {dimension_numbers = #tpu.dot_dimension_numbers<[1], [0], [0], [1], [0, 0, 1, 1], [], []>, precision = #tpu.contract_precision<fp32>} : vector<8x128xf32>, vector<128x256xf32>, vector<8x256xf32> -> vector<8x256xf32>
      %cst_48 = arith.constant dense<0.000000e+00> : vector<8x128xf32>
      %87 = tpu.matmul %76, %13, %cst_48 {dimension_numbers = #tpu.dot_dimension_numbers<[1], [0], [0], [1], [0, 0, 1, 1], [], []>, precision = #tpu.contract_precision<fp32>} : vector<8x128xf32>, vector<128x128xf32>, vector<8x128xf32> -> vector<8x128xf32>
      %88 = vector.extract_strided_slice %85 {offsets = [0, 0], sizes = [8, 128], strides = [1, 1]} : vector<8x384xf32> to vector<8x128xf32>
      %89 = vector.extract_strided_slice %86 {offsets = [0, 0], sizes = [8, 128], strides = [1, 1]} : vector<8x256xf32> to vector<8x128xf32>
      %90 = arith.addf %88, %89 : vector<8x128xf32>
      %91 = arith.negf %90 : vector<8x128xf32>
      %92 = math.exp %91 : vector<8x128xf32>
      %cst_49 = arith.constant 1.000000e+00 : f32
      %93 = vector.broadcast %cst_49 : f32 to vector<8x128xf32>
      %94 = arith.addf %93, %92 : vector<8x128xf32>
      %95 = arith.divf %93, %94 : vector<8x128xf32>
      %96 = vector.extract_strided_slice %85 {offsets = [0, 128], sizes = [8, 128], strides = [1, 1]} : vector<8x384xf32> to vector<8x128xf32>
      %97 = vector.extract_strided_slice %86 {offsets = [0, 128], sizes = [8, 128], strides = [1, 1]} : vector<8x256xf32> to vector<8x128xf32>
      %98 = arith.addf %96, %97 : vector<8x128xf32>
      %99 = arith.negf %98 : vector<8x128xf32>
      %100 = math.exp %99 : vector<8x128xf32>
      %cst_50 = arith.constant 1.000000e+00 : f32
      %101 = vector.broadcast %cst_50 : f32 to vector<8x128xf32>
      %102 = arith.addf %101, %100 : vector<8x128xf32>
      %103 = arith.divf %101, %102 : vector<8x128xf32>
      %104 = vector.extract_strided_slice %85 {offsets = [0, 256], sizes = [8, 128], strides = [1, 1]} : vector<8x384xf32> to vector<8x128xf32>
      %105 = arith.addf %87, %16 : vector<8x128xf32>
      %106 = arith.mulf %95, %105 : vector<8x128xf32>
      %107 = arith.addf %104, %106 : vector<8x128xf32>
      %108 = math.tanh %107 : vector<8x128xf32>
      %cst_51 = arith.constant 1.000000e+00 : f32
      %109 = vector.broadcast %cst_51 : f32 to vector<8x128xf32>
      %110 = arith.subf %109, %103 : vector<8x128xf32>
      %111 = arith.mulf %110, %108 : vector<8x128xf32>
      %112 = arith.mulf %103, %76 : vector<8x128xf32>
      %113 = arith.addf %111, %112 : vector<8x128xf32>
      %114 = arith.mulf %113, %19 : vector<8x128xf32>
      %cst_52 = arith.constant dense<0.000000e+00> : vector<8xf32>
      %115 = vector.multi_reduction <add>, %114, %cst_52 [1] : vector<8x128xf32> to vector<8xf32>
      %116 = vector.shape_cast %115 : vector<8xf32> to vector<1x8xf32>
      %117 = arith.index_cast %82 : i32 to index
      %c0_53 = arith.constant 0 : index
      %118 = vector.load %arg14[%117, %c0_53] : memref<8x8xf32, #tpu.memory_space<vmem>>, vector<1x8xf32>
      tpu.vector_store %arg14[%117, %c0_53], %116 {strides = array<i32>} : memref<8x8xf32, #tpu.memory_space<vmem>>, vector<1x8xf32>,
      scf.yield %113 : vector<8x128xf32>
    }
    %c4_i32_21 = arith.constant 4 : i32
    %c0_22 = arith.constant 0 : index
    %c0_23 = arith.constant 0 : index
    %23 = vector.load %arg13[%c0_22, %c0_23] : memref<8x128xf32, #tpu.memory_space<vmem>>, vector<8x128xf32>
    tpu.vector_store %arg13[%c0_22, %c0_23], %22 {strides = array<i32>} : memref<8x128xf32, #tpu.memory_space<vmem>>, vector<8x128xf32>,
    %c0_24 = arith.constant 0 : index
    %c0_25 = arith.constant 0 : index
    %24 = vector.load %arg14[%c0_24, %c0_25] : memref<8x8xf32, #tpu.memory_space<vmem>>, vector<8x8xf32>
    %25 = tpu.transpose %24, [1, 0] : vector<8x8xf32> -> vector<8x8xf32>
    %c8_i32 = arith.constant 8 : i32
    %26 = arith.muli %arg1, %c8_i32 : i32
    %27 = tpu.iota {dimensions = array<i32: 1>} : vector<8x8xi32>
    %28 = vector.broadcast %26 : i32 to vector<8x8xi32>
    %29 = arith.addi %28, %27 : vector<8x8xi32>
    %c0_26 = arith.constant 0 : index
    %c0_27 = arith.constant 0 : index
    %30 = vector.load %arg10[%c0_26, %c0_27] : memref<8x1xi32, #tpu.memory_space<vmem>>, vector<8x1xi32>
    %31 = vector.broadcast %30 : vector<8x1xi32> to vector<8x8xi32>
    %32 = arith.cmpi slt, %29, %31 : vector<8x8xi32>
    %cst_28 = arith.constant 0.000000e+00 : f32
    %33 = vector.broadcast %cst_28 : f32 to vector<8x8xf32>
    %34 = arith.select %32, %25, %33 : vector<8x8xi1>, vector<8x8xf32>
    %c0_29 = arith.constant 0 : index
    %c0_30 = arith.constant 0 : index
    %35 = vector.load %arg9[%c0_29, %c0_30] : memref<1x1xf32, #tpu.memory_space<vmem>>, vector<1x1xf32>
    %36 = vector.broadcast %35 : vector<1x1xf32> to vector<8x8xf32>
    %37 = arith.addf %34, %36 : vector<8x8xf32>
    %38 = arith.negf %37 : vector<8x8xf32>
    %39 = math.exp %38 : vector<8x8xf32>
    %cst_31 = arith.constant 1.000000e+00 : f32
    %40 = vector.broadcast %cst_31 : f32 to vector<8x8xf32>
    %41 = arith.addf %40, %39 : vector<8x8xf32>
    %42 = arith.divf %40, %41 : vector<8x8xf32>
    %c0_32 = arith.constant 0 : index
    %c0_33 = arith.constant 0 : index
    %43 = vector.load %arg11[%c0_32, %c0_33] : memref<8x8xf32, #tpu.memory_space<vmem>>, vector<8x8xf32>
    tpu.vector_store %arg11[%c0_32, %c0_33], %42 {strides = array<i32>} : memref<8x8xf32, #tpu.memory_space<vmem>>, vector<8x8xf32>,
    return
  }
  func.func @transform_0(%arg0: i32, %arg1: i32) -> (i32, i32, i32) {
    %c0_i32 = arith.constant 0 : i32
    %c0_i32_0 = arith.constant 0 : i32
    return %arg1, %arg0, %c0_i32 : i32, i32, i32
  }
  func.func @transform_1(%arg0: i32, %arg1: i32) -> (i32, i32) {
    %c0_i32 = arith.constant 0 : i32
    %c0_i32_0 = arith.constant 0 : i32
    %c0_i32_1 = arith.constant 0 : i32
    return %c0_i32, %c0_i32_0 : i32, i32
  }
  func.func @transform_2(%arg0: i32, %arg1: i32) -> (i32, i32) {
    %c0_i32 = arith.constant 0 : i32
    %c0_i32_0 = arith.constant 0 : i32
    %c0_i32_1 = arith.constant 0 : i32
    return %c0_i32, %c0_i32_0 : i32, i32
  }
  func.func @transform_3(%arg0: i32, %arg1: i32) -> (i32, i32) {
    %c0_i32 = arith.constant 0 : i32
    %c0_i32_0 = arith.constant 0 : i32
    %c0_i32_1 = arith.constant 0 : i32
    return %c0_i32, %c0_i32_0 : i32, i32
  }
  func.func @transform_4(%arg0: i32, %arg1: i32) -> (i32, i32) {
    %c0_i32 = arith.constant 0 : i32
    %c0_i32_0 = arith.constant 0 : i32
    %c0_i32_1 = arith.constant 0 : i32
    return %c0_i32, %c0_i32_0 : i32, i32
  }
  func.func @transform_5(%arg0: i32, %arg1: i32) -> (i32, i32) {
    %c0_i32 = arith.constant 0 : i32
    %c0_i32_0 = arith.constant 0 : i32
    %c0_i32_1 = arith.constant 0 : i32
    return %c0_i32, %c0_i32_0 : i32, i32
  }
  func.func @transform_6(%arg0: i32, %arg1: i32) -> (i32, i32) {
    %c0_i32 = arith.constant 0 : i32
    %c0_i32_0 = arith.constant 0 : i32
    %c0_i32_1 = arith.constant 0 : i32
    return %c0_i32, %c0_i32_0 : i32, i32
  }
  func.func @transform_7(%arg0: i32, %arg1: i32) -> (i32, i32) {
    %c0_i32 = arith.constant 0 : i32
    %c0_i32_0 = arith.constant 0 : i32
    %c0_i32_1 = arith.constant 0 : i32
    return %c0_i32, %c0_i32_0 : i32, i32
  }
  func.func @transform_8(%arg0: i32, %arg1: i32) -> (i32, i32) {
    %c0_i32 = arith.constant 0 : i32
    %c0_i32_0 = arith.constant 0 : i32
    return %arg0, %c0_i32 : i32, i32
  }
  func.func @transform_9(%arg0: i32, %arg1: i32) -> (i32, i32) {
    %c0_i32 = arith.constant 0 : i32
    return %arg0, %arg1 : i32, i32
  }
}

</mosaic_0001>

<llo_original>
// kernel: tpu_custom_call.1
$region0: #{tpu_custom_call.1}
  #allocation0 [shape = 'u32[]', space=smem, size = 0x4, offset = 0x4, fixed_abs, tag = 'smem constant byte address 0x4 - core index']
  #allocation1 [shape = 'u32[144,128]{1,0:T(1,128)}', space=vmem, size = 0x12000, scoped, tag = 'internal scratch']
  #allocation2 [shape = 'f32[8,8,384]{2,1,0:T(8,128)}', space=vmem, size = 0x18000, scoped, tag = 'scratch operand']
  #allocation3 [shape = 'f32[8,128]{1,0:T(8,128)}', space=vmem, size = 0x1000, scoped, tag = 'scratch operand']
  #allocation4 [shape = 'f32[8,8]{1,0:T(8,128)}', space=vmem, size = 0x1000, scoped, tag = 'scratch operand']
  #allocation5 [shape = 'f32[1,1]{1,0:T(1,128)S(1)}', space=vmem, size = 0x200, scoped, tag = 'scoped memory for tpu_custom_call.1']
  %s0 = inlined_call_operand.hbm [shape: f32[8,8,128], index: 0, kind: input, shape index: {}]
  %s1 = inlined_call_operand.hbm [shape: f32[128,384], index: 1, kind: input, shape index: {}]
  %s2 = inlined_call_operand.hbm [shape: f32[128,256], index: 2, kind: input, shape index: {}]
  %s3 = inlined_call_operand.hbm [shape: f32[128,128], index: 3, kind: input, shape index: {}]
  %s4 = inlined_call_operand.vmem [shape: f32[1,384], index: 4, kind: input, shape index: {}]
  %s5 = inlined_call_operand.vmem [shape: f32[1,128], index: 5, kind: input, shape index: {}]
  %s6 = inlined_call_operand.vmem [shape: f32[1,128], index: 6, kind: input, shape index: {}]
  %s7 = inlined_call_operand.<no memory space> [shape: f32[1,1], index: 7, kind: input, shape index: {}]
  %s8 = inlined_call_operand.vmem [shape: s32[8,1], index: 8, kind: input, shape index: {}]
  %s9 = inlined_call_operand.hbm [shape: f32[8,8], index: 9, kind: output, shape index: {}]
  %s10 = sld [smem:[#allocation0]]
  $region73: #{tpu_custom_call.1} parent=0
    _
  %s12 = ssub.s32 1, %s10
  %s13 = scalar_select 0, %s12, %s10
  %v14 = vstv %s7
  %15 = vst [vmem:[#allocation5] sm:$0x1] %v14
  $region1: #{tpu_custom_call.1} parent=0
    #allocation6 [shape = 'u8[32768]{0}', space=vmem, size = 0x8000, scoped, tag = 'input window, operand 0, single buffered']
    #allocation7 [shape = 's32[1]{0}', space=sflag, size = 0x4, scoped, tag = 'scoped memory for tpu_custom_call.1']
    #allocation8 [shape = 's32[1]{0}', space=sflag, size = 0x4, scoped, tag = 'scoped memory for tpu_custom_call.1']
    #allocation9 [shape = 'u8[196608]{0}', space=vmem, size = 0x30000, scoped, tag = 'input window, operand 1, single buffered']
    #allocation10 [shape = 's32[1]{0}', space=sflag, size = 0x4, scoped, tag = 'scoped memory for tpu_custom_call.1']
    #allocation11 [shape = 'u8[131072]{0}', space=vmem, size = 0x20000, scoped, tag = 'input window, operand 2, single buffered']
    #allocation12 [shape = 'u8[65536]{0}', space=vmem, size = 0x10000, scoped, tag = 'input window, operand 3, single buffered']
    #allocation13 [shape = 's32[1]{0}', space=sflag, size = 0x4, scoped, tag = 'scoped memory for tpu_custom_call.1']
    #allocation14 [shape = 'u8[4096]{0}', space=vmem, size = 0x1000, scoped, tag = 'output window, operand 0, single buffered']
    %16 = vsyncpa [#allocation7], 0
    %17 = vsyncpa [#allocation10], 0
    %18 = vsyncpa [#allocation13], 0
    %19 = vsyncpa [#allocation8], 0
    // Predicated region
    $region2: #{tpu_custom_call.1} parent=1 // pred_check
      _
    $region3: #{tpu_custom_call.1} parent=1 // pred_check_branch
      %21 = sbr.rel (0) target = $region5
    $region4: #{tpu_custom_call.1} parent=1 // pred_region
      %s23 = ssub.s32 1024, 1024
      %24 = vsyncadd [#allocation7], %s23
      %s25 = sshll.u32 [#allocation6], 4
      %s26 = int_to_ptr.vmem [resolvable:$true] %s25
      %31 = dma.hbm_to_vmem [thread:$0]  %s0, 1024, %s26, [#allocation7], 128, 128, 8
    $region5: #{tpu_custom_call.1} parent=1 // pred_fallthru
      _
    // Predicated region
    $region6: #{tpu_custom_call.1} parent=1 // pred_check
      _
    $region7: #{tpu_custom_call.1} parent=1 // pred_check_branch
      %33 = sbr.rel (0) target = $region9
    $region8: #{tpu_custom_call.1} parent=1 // pred_region
      %s35 = ssub.s32 6144, 6144
      %36 = vsyncadd [#allocation10], %s35
      %s37 = sshll.u32 [#allocation9], 4
      %s38 = int_to_ptr.vmem [resolvable:$true] %s37
      %43 = dma.hbm_to_vmem [thread:$0]  %s1, 6144, %s38, [#allocation10], 384, 384, 24
    $region9: #{tpu_custom_call.1} parent=1 // pred_fallthru
      _
    // Predicated region
    $region10: #{tpu_custom_call.1} parent=1 // pred_check
      _
    $region11: #{tpu_custom_call.1} parent=1 // pred_check_branch
      %45 = sbr.rel (0) target = $region13
    $region12: #{tpu_custom_call.1} parent=1 // pred_region
      %s47 = ssub.s32 4096, 4096
      %48 = vsyncadd [#allocation10], %s47
      %s49 = sshll.u32 [#allocation11], 4
      %s50 = int_to_ptr.vmem [resolvable:$true] %s49
      %55 = dma.hbm_to_vmem [thread:$0]  %s2, 4096, %s50, [#allocation10], 256, 256, 16
    $region13: #{tpu_custom_call.1} parent=1 // pred_fallthru
      _
    // Predicated region
    $region14: #{tpu_custom_call.1} parent=1 // pred_check
      _
    $region15: #{tpu_custom_call.1} parent=1 // pred_check_branch
      %57 = sbr.rel (0) target = $region17
    $region16: #{tpu_custom_call.1} parent=1 // pred_region
      %s59 = ssub.s32 2048, 2048
      %60 = vsyncadd [#allocation13], %s59
      %s61 = sshll.u32 [#allocation12], 4
      %s62 = int_to_ptr.vmem [resolvable:$true] %s61
      %67 = dma.hbm_to_vmem [thread:$0]  %s3, 2048, %s62, [#allocation13], 128, 128, 8
    $region17: #{tpu_custom_call.1} parent=1 // pred_fallthru
      _
    // Predicated region
    $region18: #{tpu_custom_call.1} parent=1 // pred_check
      _
    $region19: #{tpu_custom_call.1} parent=1 // pred_check_branch
      %69 = sbr.rel (0) target = $region21
    $region20: #{tpu_custom_call.1} parent=1 // pred_region
      _
    $region21: #{tpu_custom_call.1} parent=1 // pred_fallthru
      _
    // Predicated region
    $region22: #{tpu_custom_call.1} parent=1 // pred_check
      _
    $region23: #{tpu_custom_call.1} parent=1 // pred_check_branch
      %71 = sbr.rel (0) target = $region25
    $region24: #{tpu_custom_call.1} parent=1 // pred_region
      _
    $region25: #{tpu_custom_call.1} parent=1 // pred_fallthru
      _
    // Predicated region
    $region26: #{tpu_custom_call.1} parent=1 // pred_check
      _
    $region27: #{tpu_custom_call.1} parent=1 // pred_check_branch
      %73 = sbr.rel (0) target = $region29
    $region28: #{tpu_custom_call.1} parent=1 // pred_region
      _
    $region29: #{tpu_custom_call.1} parent=1 // pred_fallthru
      _
    // Predicated region
    $region30: #{tpu_custom_call.1} parent=1 // pred_check
      _
    $region31: #{tpu_custom_call.1} parent=1 // pred_check_branch
      %75 = sbr.rel (0) target = $region33
    $region32: #{tpu_custom_call.1} parent=1 // pred_region
      _
    $region33: #{tpu_custom_call.1} parent=1 // pred_fallthru
      _
    // Predicated region
    $region34: #{tpu_custom_call.1} parent=1 // pred_check
      _
    $region35: #{tpu_custom_call.1} parent=1 // pred_check_branch
      %77 = sbr.rel (0) target = $region37
    $region36: #{tpu_custom_call.1} parent=1 // pred_region
      _
    $region37: #{tpu_custom_call.1} parent=1 // pred_fallthru
      _
    // Predicated region
    $region38: #{tpu_custom_call.1} parent=1 // pred_check
      _
    $region39: #{tpu_custom_call.1} parent=1 // pred_check_branch
      %79 = sbr.rel (0) target = $region41
    $region40: #{tpu_custom_call.1} parent=1 // pred_region
      %80 = dma.done [#allocation7], 1024
    $region41: #{tpu_custom_call.1} parent=1 // pred_fallthru
      _
    // Predicated region
    $region42: #{tpu_custom_call.1} parent=1 // pred_check
      _
    $region43: #{tpu_custom_call.1} parent=1 // pred_check_branch
      %82 = sbr.rel (0) target = $region45
    $region44: #{tpu_custom_call.1} parent=1 // pred_region
      %83 = dma.done [#allocation10], 6144
    $region45: #{tpu_custom_call.1} parent=1 // pred_fallthru
      _
    // Predicated region
    $region46: #{tpu_custom_call.1} parent=1 // pred_check
      _
    $region47: #{tpu_custom_call.1} parent=1 // pred_check_branch
      %85 = sbr.rel (0) target = $region49
    $region48: #{tpu_custom_call.1} parent=1 // pred_region
      %86 = dma.done [#allocation10], 4096
    $region49: #{tpu_custom_call.1} parent=1 // pred_fallthru
      _
    // Predicated region
    $region50: #{tpu_custom_call.1} parent=1 // pred_check
      _
    $region51: #{tpu_custom_call.1} parent=1 // pred_check_branch
      %88 = sbr.rel (0) target = $region53
    $region52: #{tpu_custom_call.1} parent=1 // pred_region
      %89 = dma.done [#allocation13], 2048
    $region53: #{tpu_custom_call.1} parent=1 // pred_fallthru
      _
    %p90 = scmp.eq.s32.totalorder 0, 0
    // Predicated region
    $region54: #{tpu_custom_call.1} parent=1 // pred_check
      %p91 = pneg %p90
    $region55: #{tpu_custom_call.1} parent=1 // pred_check_branch
      %93 = sbr.rel (%p91) target = $region57
    $region56: #{tpu_custom_call.1} parent=1 // pred_region
      %94 = vst [vmem:[#allocation3] sm:$0xff] 0.0
    $region57: #{tpu_custom_call.1} parent=1 // pred_fallthru
      _
    %v95 = vld [vmem:[#allocation6] sm:$0xff]
    %v96 = vld [vmem:[#allocation6 + $0x8] sm:$0xff]
    %v97 = vld [vmem:[#allocation6 + $0x10] sm:$0xff]
    %v98 = vld [vmem:[#allocation6 + $0x18] sm:$0xff]
    %v99 = vld [vmem:[#allocation6 + $0x20] sm:$0xff]
    %v100 = vld [vmem:[#allocation6 + $0x28] sm:$0xff]
    %v101 = vld [vmem:[#allocation6 + $0x30] sm:$0xff]
    %v102 = vld [vmem:[#allocation6 + $0x38] sm:$0xff]
    %v103 = vld [vmem:[#allocation9] sm:$0xff]
    %v104 = vld [vmem:[#allocation9 + $0x8] sm:$0xff]
    %v105 = vld [vmem:[#allocation9 + $0x10] sm:$0xff]
    %v106 = vld [vmem:[#allocation9 + $0x18] sm:$0xff]
    %v107 = vld [vmem:[#allocation9 + $0x20] sm:$0xff]
    %v108 = vld [vmem:[#allocation9 + $0x28] sm:$0xff]
    %v109 = vld [vmem:[#allocation9 + $0x30] sm:$0xff]
    %v110 = vld [vmem:[#allocation9 + $0x38] sm:$0xff]
    %v111 = vld [vmem:[#allocation9 + $0x40] sm:$0xff]
    %v112 = vld [vmem:[#allocation9 + $0x48] sm:$0xff]
    %v113 = vld [vmem:[#allocation9 + $0x50] sm:$0xff]
    %v114 = vld [vmem:[#allocation9 + $0x58] sm:$0xff]
    %v115 = vld [vmem:[#allocation9 + $0x60] sm:$0xff]
    %v116 = vld [vmem:[#allocation9 + $0x68] sm:$0xff]
    %v117 = vld [vmem:[#allocation9 + $0x70] sm:$0xff]
    %v118 = vld [vmem:[#allocation9 + $0x78] sm:$0xff]
    %v119 = vld [vmem:[#allocation9 + $0x80] sm:$0xff]
    %v120 = vld [vmem:[#allocation9 + $0x88] sm:$0xff]
    %v121 = vld [vmem:[#allocation9 + $0x90] sm:$0xff]
    %v122 = vld [vmem:[#allocation9 + $0x98] sm:$0xff]
    %v123 = vld [vmem:[#allocation9 + $0xa0] sm:$0xff]
    %v124 = vld [vmem:[#allocation9 + $0xa8] sm:$0xff]
    %v125 = vld [vmem:[#allocation9 + $0xb0] sm:$0xff]
    %v126 = vld [vmem:[#allocation9 + $0xb8] sm:$0xff]
    %v127 = vld [vmem:[#allocation9 + $0xc0] sm:$0xff]
    %v128 = vld [vmem:[#allocation9 + $0xc8] sm:$0xff]
    %v129 = vld [vmem:[#allocation9 + $0xd0] sm:$0xff]
    %v130 = vld [vmem:[#allocation9 + $0xd8] sm:$0xff]
    %v131 = vld [vmem:[#allocation9 + $0xe0] sm:$0xff]
    %v132 = vld [vmem:[#allocation9 + $0xe8] sm:$0xff]
    %v133 = vld [vmem:[#allocation9 + $0xf0] sm:$0xff]
    %v134 = vld [vmem:[#allocation9 + $0xf8] sm:$0xff]
    %v135 = vld [vmem:[#allocation9 + $0x100] sm:$0xff]
    %v136 = vld [vmem:[#allocation9 + $0x108] sm:$0xff]
    %v137 = vld [vmem:[#allocation9 + $0x110] sm:$0xff]
    %v138 = vld [vmem:[#allocation9 + $0x118] sm:$0xff]
    %v139 = vld [vmem:[#allocation9 + $0x120] sm:$0xff]
    %v140 = vld [vmem:[#allocation9 + $0x128] sm:$0xff]
    %v141 = vld [vmem:[#allocation9 + $0x130] sm:$0xff]
    %v142 = vld [vmem:[#allocation9 + $0x138] sm:$0xff]
    %v143 = vld [vmem:[#allocation9 + $0x140] sm:$0xff]
    %v144 = vld [vmem:[#allocation9 + $0x148] sm:$0xff]
    %v145 = vld [vmem:[#allocation9 + $0x150] sm:$0xff]
    %v146 = vld [vmem:[#allocation9 + $0x158] sm:$0xff]
    %v147 = vld [vmem:[#allocation9 + $0x160] sm:$0xff]
    %v148 = vld [vmem:[#allocation9 + $0x168] sm:$0xff]
    %v149 = vld [vmem:[#allocation9 + $0x170] sm:$0xff]
    %v150 = vld [vmem:[#allocation9 + $0x178] sm:$0xff]
    %v151 = vld [vmem:[%s4] sm:$0x7]
    %v153 = vlaneseq
    %v154 = vshrl.u32 %v153, 7
    %v155 = vsub.s32 0, %v154
    %v156 = vrot.slane %v151, %v155
    %v157 = vlaneseq
    %v158 = vshrl.u32 %v157, 7
    %v159 = vsub.s32 1, %v158
    %v160 = vrot.slane %v151, %v159
    %v161 = vlaneseq
    %v162 = vshrl.u32 %v161, 7
    %v163 = vsub.s32 2, %v162
    %v164 = vrot.slane %v151, %v163
    %v168 = vand.u32 %v149, 4294901760
    %169 = vmatprep.subr.mxu0 %v168
    %v170 = vand.u32 %v148, 4294901760
    %171 = vmatpush1.msra.mxu0 %v170
    %v172 = vand.u32 %v146, 4294901760
    %173 = vmatprep.subr.mxu0 %v172
    %v174 = vand.u32 %v145, 4294901760
    %175 = vmatpush1.msra.mxu0 %v174
    %v176 = vand.u32 %v143, 4294901760
    %177 = vmatprep.subr.mxu0 %v176
    %v178 = vand.u32 %v142, 4294901760
    %179 = vmatpush1.msra.mxu0 %v178
    %v180 = vand.u32 %v140, 4294901760
    %181 = vmatprep.subr.mxu0 %v180
    %v182 = vand.u32 %v139, 4294901760
    %183 = vmatpush1.msra.mxu0 %v182
    %v184 = vand.u32 %v137, 4294901760
    %185 = vmatprep.subr.mxu0 %v184
    %v186 = vand.u32 %v136, 4294901760
    %187 = vmatpush1.msra.mxu0 %v186
    %v188 = vand.u32 %v134, 4294901760
    %189 = vmatprep.subr.mxu0 %v188
    %v190 = vand.u32 %v133, 4294901760
    %191 = vmatpush1.msra.mxu0 %v190
    %v192 = vand.u32 %v131, 4294901760
    %193 = vmatprep.subr.mxu0 %v192
    %v194 = vand.u32 %v130, 4294901760
    %195 = vmatpush1.msra.mxu0 %v194
    %v196 = vand.u32 %v128, 4294901760
    %197 = vmatprep.subr.mxu0 %v196
    %v198 = vand.u32 %v127, 4294901760
    %199 = vmatpush1.msra.mxu0 %v198
    %v200 = vand.u32 %v125, 4294901760
    %201 = vmatprep.subr.mxu0 %v200
    %v202 = vand.u32 %v124, 4294901760
    %203 = vmatpush1.msra.mxu0 %v202
    %v204 = vand.u32 %v122, 4294901760
    %205 = vmatprep.subr.mxu0 %v204
    %v206 = vand.u32 %v121, 4294901760
    %207 = vmatpush1.msra.mxu0 %v206
    %v208 = vand.u32 %v119, 4294901760
    %209 = vmatprep.subr.mxu0 %v208
    %v210 = vand.u32 %v118, 4294901760
    %211 = vmatpush1.msra.mxu0 %v210
    %v212 = vand.u32 %v116, 4294901760
    %213 = vmatprep.subr.mxu0 %v212
    %v214 = vand.u32 %v115, 4294901760
    %215 = vmatpush1.msra.mxu0 %v214
    %v216 = vand.u32 %v113, 4294901760
    %217 = vmatprep.subr.mxu0 %v216
    %v218 = vand.u32 %v112, 4294901760
    %219 = vmatpush1.msra.mxu0 %v218
    %v220 = vand.u32 %v110, 4294901760
    %221 = vmatprep.subr.mxu0 %v220
    %v222 = vand.u32 %v109, 4294901760
    %223 = vmatpush1.msra.mxu0 %v222
    %v224 = vand.u32 %v107, 4294901760
    %225 = vmatprep.subr.mxu0 %v224
    %v226 = vand.u32 %v106, 4294901760
    %227 = vmatpush1.msra.mxu0 %v226
    %v228 = vand.u32 %v104, 4294901760
    %229 = vmatprep.subr.mxu0 %v228
    %v230 = vand.u32 %v103, 4294901760
    %231 = vmatpush1.msra.mxu0 %v230
    %232 = vmatprep.subr.mxu0 0.0
    %233 = vmatpush2.msra.mxu0 0.0
    %234 = vmatprep.subr.mxu0 0.0
    %235 = vmatpush2.msra.mxu0 0.0
    %236 = vmatprep.subr.mxu0 0.0
    %237 = vmatpush2.msra.mxu0 0.0
    %238 = vmatprep.subr.mxu0 0.0
    %239 = vmatpush2.msra.mxu0 0.0
    %240 = vmatprep.subr.mxu0 0.0
    %241 = vmatpush2.msra.mxu0 0.0
    %242 = vmatprep.subr.mxu0 0.0
    %243 = vmatpush2.msra.mxu0 0.0
    %244 = vmatprep.subr.mxu0 0.0
    %245 = vmatpush2.msra.mxu0 0.0
    %246 = vmatprep.subr.mxu0 0.0
    %247 = vmatpush2.msra.mxu0 0.0
    %248 = vmatprep.subr.mxu0 0.0
    %249 = vmatpush2.msra.mxu0 0.0
    %250 = vmatprep.subr.mxu0 0.0
    %251 = vmatpush2.msra.mxu0 0.0
    %252 = vmatprep.subr.mxu0 0.0
    %253 = vmatpush2.msra.mxu0 0.0
    %254 = vmatprep.subr.mxu0 0.0
    %255 = vmatpush2.msra.mxu0 0.0
    %256 = vmatprep.subr.mxu0 0.0
    %257 = vmatpush2.msra.mxu0 0.0
    %258 = vmatprep.subr.mxu0 0.0
    %259 = vmatpush2.msra.mxu0 0.0
    %260 = vmatprep.subr.mxu0 0.0
    %261 = vmatpush2.msra.mxu0 0.0
    %262 = vmatprep.subr.mxu0 0.0
    %263 = vmatpush2.msra.mxu0 0.0
    %264 = vmatprep.mubr.f32.mxu0 0.0
    %v265 = vand.u32 %v95, 4294901760
    %v266 = vsub.f32 %v95, %v265
    %v267 = vand.u32 %v266, 4294901760
    %v268 = vsub.f32 %v266, %v267
    %v269 = vand.u32 %v268, 4294901760
    %270 = vmatmul.mubr.f32.gmra.mxu0 %v269
    %v271 = vpop.f32.mrf.mxu0
    %v272 = vadd.f32 %v156, %v271
    %v273 = vpop.f32.mrf.mxu0
    %v274 = vadd.f32 %v160, %v273
    %275 = vmatprep.mubr.f32.mxu0 0.0
    %v276 = vand.u32 %v96, 4294901760
    %v277 = vsub.f32 %v96, %v276
    %v278 = vand.u32 %v277, 4294901760
    %v279 = vsub.f32 %v277, %v278
    %v280 = vand.u32 %v279, 4294901760
    %281 = vmatmul.mubr.f32.gmra.mxu0 %v280
    %v282 = vpop.f32.mrf.mxu0
    %v283 = vadd.f32 %v156, %v282
    %v284 = vpop.f32.mrf.mxu0
    %v285 = vadd.f32 %v160, %v284
    %286 = vmatprep.mubr.f32.mxu0 0.0
    %v287 = vand.u32 %v97, 4294901760
    %v288 = vsub.f32 %v97, %v287
    %v289 = vand.u32 %v288, 4294901760
    %v290 = vsub.f32 %v288, %v289
    %v291 = vand.u32 %v290, 4294901760
    %292 = vmatmul.mubr.f32.gmra.mxu0 %v291
    %v293 = vpop.f32.mrf.mxu0
    %v294 = vadd.f32 %v156, %v293
    %v295 = vpop.f32.mrf.mxu0
    %v296 = vadd.f32 %v160, %v295
    %297 = vmatprep.mubr.f32.mxu0 0.0
    %v298 = vand.u32 %v98, 4294901760
    %v299 = vsub.f32 %v98, %v298
    %v300 = vand.u32 %v299, 4294901760
    %v301 = vsub.f32 %v299, %v300
    %v302 = vand.u32 %v301, 4294901760
    %303 = vmatmul.mubr.f32.gmra.mxu0 %v302
    %v304 = vpop.f32.mrf.mxu0
    %v305 = vadd.f32 %v156, %v304
    %v306 = vpop.f32.mrf.mxu0
    %v307 = vadd.f32 %v160, %v306
    %308 = vmatprep.mubr.f32.mxu0 0.0
    %v309 = vand.u32 %v99, 4294901760
    %v310 = vsub.f32 %v99, %v309
    %v311 = vand.u32 %v310, 4294901760
    %v312 = vsub.f32 %v310, %v311
    %v313 = vand.u32 %v312, 4294901760
    %314 = vmatmul.mubr.f32.gmra.mxu0 %v313
    %v315 = vpop.f32.mrf.mxu0
    %v316 = vadd.f32 %v156, %v315
    %v317 = vpop.f32.mrf.mxu0
    %v318 = vadd.f32 %v160, %v317
    %319 = vmatprep.mubr.f32.mxu0 0.0
    %v320 = vand.u32 %v100, 4294901760
    %v321 = vsub.f32 %v100, %v320
    %v322 = vand.u32 %v321, 4294901760
    %v323 = vsub.f32 %v321, %v322
    %v324 = vand.u32 %v323, 4294901760
    %325 = vmatmul.mubr.f32.gmra.mxu0 %v324
    %v326 = vpop.f32.mrf.mxu0
    %v327 = vadd.f32 %v156, %v326
    %v328 = vpop.f32.mrf.mxu0
    %v329 = vadd.f32 %v160, %v328
    %330 = vmatprep.mubr.f32.mxu0 0.0
    %v331 = vand.u32 %v101, 4294901760
    %v332 = vsub.f32 %v101, %v331
    %v333 = vand.u32 %v332, 4294901760
    %v334 = vsub.f32 %v332, %v333
    %v335 = vand.u32 %v334, 4294901760
    %336 = vmatmul.mubr.f32.gmra.mxu0 %v335
    %v337 = vpop.f32.mrf.mxu0
    %v338 = vadd.f32 %v156, %v337
    %v339 = vpop.f32.mrf.mxu0
    %v340 = vadd.f32 %v160, %v339
    %341 = vmatprep.mubr.f32.mxu0 0.0
    %v342 = vand.u32 %v102, 4294901760
    %v343 = vsub.f32 %v102, %v342
    %v344 = vand.u32 %v343, 4294901760
    %v345 = vsub.f32 %v343, %v344
    %v346 = vand.u32 %v345, 4294901760
    %347 = vmatmul.mubr.f32.gmra.mxu0 %v346
    %v348 = vpop.f32.mrf.mxu0
    %v349 = vadd.f32 %v156, %v348
    %v350 = vpop.f32.mrf.mxu0
    %v351 = vadd.f32 %v160, %v350
    %352 = vdwg.mxu0
    %v353 = vand.u32 %v149, 4294901760
    %v354 = vsub.f32 %v149, %v353
    %v355 = vand.u32 %v354, 4294901760
    %v356 = vsub.f32 %v354, %v355
    %v357 = vand.u32 %v356, 4294901760
    %358 = vmatprep.subr.mxu0 %v357
    %v359 = vand.u32 %v148, 4294901760
    %v360 = vsub.f32 %v148, %v359
    %v361 = vand.u32 %v360, 4294901760
    %v362 = vsub.f32 %v360, %v361
    %v363 = vand.u32 %v362, 4294901760
    %364 = vmatpush1.msra.mxu0 %v363
    %v365 = vand.u32 %v146, 4294901760
    %v366 = vsub.f32 %v146, %v365
    %v367 = vand.u32 %v366, 4294901760
    %v368 = vsub.f32 %v366, %v367
    %v369 = vand.u32 %v368, 4294901760
    %370 = vmatprep.subr.mxu0 %v369
    %v371 = vand.u32 %v145, 4294901760
    %v372 = vsub.f32 %v145, %v371
    %v373 = vand.u32 %v372, 4294901760
    %v374 = vsub.f32 %v372, %v373
    %v375 = vand.u32 %v374, 4294901760
    %376 = vmatpush1.msra.mxu0 %v375
    %v377 = vand.u32 %v143, 4294901760
    %v378 = vsub.f32 %v143, %v377
    %v379 = vand.u32 %v378, 4294901760
    %v380 = vsub.f32 %v378, %v379
    %v381 = vand.u32 %v380, 4294901760
    %382 = vmatprep.subr.mxu0 %v381
    %v383 = vand.u32 %v142, 4294901760
    %v384 = vsub.f32 %v142, %v383
    %v385 = vand.u32 %v384, 4294901760
    %v386 = vsub.f32 %v384, %v385
    %v387 = vand.u32 %v386, 4294901760
    %388 = vmatpush1.msra.mxu0 %v387
    %v389 = vand.u32 %v140, 4294901760
    %v390 = vsub.f32 %v140, %v389
    %v391 = vand.u32 %v390, 4294901760
    %v392 = vsub.f32 %v390, %v391
    %v393 = vand.u32 %v392, 4294901760
    %394 = vmatprep.subr.mxu0 %v393
    %v395 = vand.u32 %v139, 4294901760
    %v396 = vsub.f32 %v139, %v395
    %v397 = vand.u32 %v396, 4294901760
    %v398 = vsub.f32 %v396, %v397
    %v399 = vand.u32 %v398, 4294901760
    %400 = vmatpush1.msra.mxu0 %v399
    %v401 = vand.u32 %v137, 4294901760
    %v402 = vsub.f32 %v137, %v401
    %v403 = vand.u32 %v402, 4294901760
    %v404 = vsub.f32 %v402, %v403
    %v405 = vand.u32 %v404, 4294901760
    %406 = vmatprep.subr.mxu0 %v405
    %v407 = vand.u32 %v136, 4294901760
    %v408 = vsub.f32 %v136, %v407
    %v409 = vand.u32 %v408, 4294901760
    %v410 = vsub.f32 %v408, %v409
    %v411 = vand.u32 %v410, 4294901760
    %412 = vmatpush1.msra.mxu0 %v411
    %v413 = vand.u32 %v134, 4294901760
    %v414 = vsub.f32 %v134, %v413
    %v415 = vand.u32 %v414, 4294901760
    %v416 = vsub.f32 %v414, %v415
    %v417 = vand.u32 %v416, 4294901760
    %418 = vmatprep.subr.mxu0 %v417
    %v419 = vand.u32 %v133, 4294901760
    %v420 = vsub.f32 %v133, %v419
    %v421 = vand.u32 %v420, 4294901760
    %v422 = vsub.f32 %v420, %v421
    %v423 = vand.u32 %v422, 4294901760
    %424 = vmatpush1.msra.mxu0 %v423
    %v425 = vand.u32 %v131, 4294901760
    %v426 = vsub.f32 %v131, %v425
    %v427 = vand.u32 %v426, 4294901760
    %v428 = vsub.f32 %v426, %v427
    %v429 = vand.u32 %v428, 4294901760
    %430 = vmatprep.subr.mxu0 %v429
    %v431 = vand.u32 %v130, 4294901760
    %v432 = vsub.f32 %v130, %v431
    %v433 = vand.u32 %v432, 4294901760
    %v434 = vsub.f32 %v432, %v433
    %v435 = vand.u32 %v434, 4294901760
    %436 = vmatpush1.msra.mxu0 %v435
    %v437 = vand.u32 %v128, 4294901760
    %v438 = vsub.f32 %v128, %v437
    %v439 = vand.u32 %v438, 4294901760
    %v440 = vsub.f32 %v438, %v439
    %v441 = vand.u32 %v440, 4294901760
    %442 = vmatprep.subr.mxu0 %v441
    %v443 = vand.u32 %v127, 4294901760
    %v444 = vsub.f32 %v127, %v443
    %v445 = vand.u32 %v444, 4294901760
    %v446 = vsub.f32 %v444, %v445
    %v447 = vand.u32 %v446, 4294901760
    %448 = vmatpush1.msra.mxu0 %v447
    %v449 = vand.u32 %v125, 4294901760
    %v450 = vsub.f32 %v125, %v449
    %v451 = vand.u32 %v450, 4294901760
    %v452 = vsub.f32 %v450, %v451
    %v453 = vand.u32 %v452, 4294901760
    %454 = vmatprep.subr.mxu0 %v453
    %v455 = vand.u32 %v124, 4294901760
    %v456 = vsub.f32 %v124, %v455
    %v457 = vand.u32 %v456, 4294901760
    %v458 = vsub.f32 %v456, %v457
    %v459 = vand.u32 %v458, 4294901760
    %460 = vmatpush1.msra.mxu0 %v459
    %v461 = vand.u32 %v122, 4294901760
    %v462 = vsub.f32 %v122, %v461
    %v463 = vand.u32 %v462, 4294901760
    %v464 = vsub.f32 %v462, %v463
    %v465 = vand.u32 %v464, 4294901760
    %466 = vmatprep.subr.mxu0 %v465
    %v467 = vand.u32 %v121, 4294901760
    %v468 = vsub.f32 %v121, %v467
    %v469 = vand.u32 %v468, 4294901760
    %v470 = vsub.f32 %v468, %v469
    %v471 = vand.u32 %v470, 4294901760
    %472 = vmatpush1.msra.mxu0 %v471
    %v473 = vand.u32 %v119, 4294901760
    %v474 = vsub.f32 %v119, %v473
    %v475 = vand.u32 %v474, 4294901760
    %v476 = vsub.f32 %v474, %v475
    %v477 = vand.u32 %v476, 4294901760
    %478 = vmatprep.subr.mxu0 %v477
    %v479 = vand.u32 %v118, 4294901760
    %v480 = vsub.f32 %v118, %v479
    %v481 = vand.u32 %v480, 4294901760
    %v482 = vsub.f32 %v480, %v481
    %v483 = vand.u32 %v482, 4294901760
    %484 = vmatpush1.msra.mxu0 %v483
    %v485 = vand.u32 %v116, 4294901760
    %v486 = vsub.f32 %v116, %v485
    %v487 = vand.u32 %v486, 4294901760
    %v488 = vsub.f32 %v486, %v487
    %v489 = vand.u32 %v488, 4294901760
    %490 = vmatprep.subr.mxu0 %v489
    %v491 = vand.u32 %v115, 4294901760
    %v492 = vsub.f32 %v115, %v491
    %v493 = vand.u32 %v492, 4294901760
    %v494 = vsub.f32 %v492, %v493
    %v495 = vand.u32 %v494, 4294901760
    %496 = vmatpush1.msra.mxu0 %v495
    %v497 = vand.u32 %v113, 4294901760
    %v498 = vsub.f32 %v113, %v497
    %v499 = vand.u32 %v498, 4294901760
    %v500 = vsub.f32 %v498, %v499
    %v501 = vand.u32 %v500, 4294901760
    %502 = vmatprep.subr.mxu0 %v501
    %v503 = vand.u32 %v112, 4294901760
    %v504 = vsub.f32 %v112, %v503
    %v505 = vand.u32 %v504, 4294901760
    %v506 = vsub.f32 %v504, %v505
    %v507 = vand.u32 %v506, 4294901760
    %508 = vmatpush1.msra.mxu0 %v507
    %v509 = vand.u32 %v110, 4294901760
    %v510 = vsub.f32 %v110, %v509
    %v511 = vand.u32 %v510, 4294901760
    %v512 = vsub.f32 %v510, %v511
    %v513 = vand.u32 %v512, 4294901760
    %514 = vmatprep.subr.mxu0 %v513
    %v515 = vand.u32 %v109, 4294901760
    %v516 = vsub.f32 %v109, %v515
    %v517 = vand.u32 %v516, 4294901760
    %v518 = vsub.f32 %v516, %v517
    %v519 = vand.u32 %v518, 4294901760
    %520 = vmatpush1.msra.mxu0 %v519
    %v521 = vand.u32 %v107, 4294901760
    %v522 = vsub.f32 %v107, %v521
    %v523 = vand.u32 %v522, 4294901760
    %v524 = vsub.f32 %v522, %v523
    %v525 = vand.u32 %v524, 4294901760
    %526 = vmatprep.subr.mxu0 %v525
    %v527 = vand.u32 %v106, 4294901760
    %v528 = vsub.f32 %v106, %v527
    %v529 = vand.u32 %v528, 4294901760
    %v530 = vsub.f32 %v528, %v529
    %v531 = vand.u32 %v530, 4294901760
    %532 = vmatpush1.msra.mxu0 %v531
    %v533 = vand.u32 %v104, 4294901760
    %v534 = vsub.f32 %v104, %v533
    %v535 = vand.u32 %v534, 4294901760
    %v536 = vsub.f32 %v534, %v535
    %v537 = vand.u32 %v536, 4294901760
    %538 = vmatprep.subr.mxu0 %v537
    %v539 = vand.u32 %v103, 4294901760
    %v540 = vsub.f32 %v103, %v539
    %v541 = vand.u32 %v540, 4294901760
    %v542 = vsub.f32 %v540, %v541
    %v543 = vand.u32 %v542, 4294901760
    %544 = vmatpush1.msra.mxu0 %v543
    %545 = vmatprep.subr.mxu0 0.0
    %546 = vmatpush2.msra.mxu0 0.0
    %547 = vmatprep.subr.mxu0 0.0
    %548 = vmatpush2.msra.mxu0 0.0
    %549 = vmatprep.subr.mxu0 0.0
    %550 = vmatpush2.msra.mxu0 0.0
    %551 = vmatprep.subr.mxu0 0.0
    %552 = vmatpush2.msra.mxu0 0.0
    %553 = vmatprep.subr.mxu0 0.0
    %554 = vmatpush2.msra.mxu0 0.0
    %555 = vmatprep.subr.mxu0 0.0
    %556 = vmatpush2.msra.mxu0 0.0
    %557 = vmatprep.subr.mxu0 0.0
    %558 = vmatpush2.msra.mxu0 0.0
    %559 = vmatprep.subr.mxu0 0.0
    %560 = vmatpush2.msra.mxu0 0.0
    %561 = vmatprep.subr.mxu0 0.0
    %562 = vmatpush2.msra.mxu0 0.0
    %563 = vmatprep.subr.mxu0 0.0
    %564 = vmatpush2.msra.mxu0 0.0
    %565 = vmatprep.subr.mxu0 0.0
    %566 = vmatpush2.msra.mxu0 0.0
    %567 = vmatprep.subr.mxu0 0.0
    %568 = vmatpush2.msra.mxu0 0.0
    %569 = vmatprep.subr.mxu0 0.0
    %570 = vmatpush2.msra.mxu0 0.0
    %571 = vmatprep.subr.mxu0 0.0
    %572 = vmatpush2.msra.mxu0 0.0
    %573 = vmatprep.subr.mxu0 0.0
    %574 = vmatpush2.msra.mxu0 0.0
    %575 = vmatprep.subr.mxu0 0.0
    %576 = vmatpush2.msra.mxu0 0.0
    %577 = vmatprep.mubr.f32.mxu0 0.0
    %v578 = vand.u32 %v95, 4294901760
    %579 = vmatmul.mubr.f32.gmra.mxu0 %v578
    %v580 = vpop.f32.mrf.mxu0
    %v581 = vadd.f32 %v272, %v580
    %v582 = vpop.f32.mrf.mxu0
    %v583 = vadd.f32 %v274, %v582
    %584 = vmatprep.mubr.f32.mxu0 0.0
    %v585 = vand.u32 %v96, 4294901760
    %586 = vmatmul.mubr.f32.gmra.mxu0 %v585
    %v587 = vpop.f32.mrf.mxu0
    %v588 = vadd.f32 %v283, %v587
    %v589 = vpop.f32.mrf.mxu0
    %v590 = vadd.f32 %v285, %v589
    %591 = vmatprep.mubr.f32.mxu0 0.0
    %v592 = vand.u32 %v97, 4294901760
    %593 = vmatmul.mubr.f32.gmra.mxu0 %v592
    %v594 = vpop.f32.mrf.mxu0
    %v595 = vadd.f32 %v294, %v594
    %v596 = vpop.f32.mrf.mxu0
    %v597 = vadd.f32 %v296, %v596
    %598 = vmatprep.mubr.f32.mxu0 0.0
    %v599 = vand.u32 %v98, 4294901760
    %600 = vmatmul.mubr.f32.gmra.mxu0 %v599
    %v601 = vpop.f32.mrf.mxu0
    %v602 = vadd.f32 %v305, %v601
    %v603 = vpop.f32.mrf.mxu0
    %v604 = vadd.f32 %v307, %v603
    %605 = vmatprep.mubr.f32.mxu0 0.0
    %v606 = vand.u32 %v99, 4294901760
    %607 = vmatmul.mubr.f32.gmra.mxu0 %v606
    %v608 = vpop.f32.mrf.mxu0
    %v609 = vadd.f32 %v316, %v608
    %v610 = vpop.f32.mrf.mxu0
    %v611 = vadd.f32 %v318, %v610
    %612 = vmatprep.mubr.f32.mxu0 0.0
    %v613 = vand.u32 %v100, 4294901760
    %614 = vmatmul.mubr.f32.gmra.mxu0 %v613
    %v615 = vpop.f32.mrf.mxu0
    %v616 = vadd.f32 %v327, %v615
    %v617 = vpop.f32.mrf.mxu0
    %v618 = vadd.f32 %v329, %v617
    %619 = vmatprep.mubr.f32.mxu0 0.0
    %v620 = vand.u32 %v101, 4294901760
    %621 = vmatmul.mubr.f32.gmra.mxu0 %v620
    %v622 = vpop.f32.mrf.mxu0
    %v623 = vadd.f32 %v338, %v622
    %v624 = vpop.f32.mrf.mxu0
    %v625 = vadd.f32 %v340, %v624
    %626 = vmatprep.mubr.f32.mxu0 0.0
    %v627 = vand.u32 %v102, 4294901760
    %628 = vmatmul.mubr.f32.gmra.mxu0 %v627
    %v629 = vpop.f32.mrf.mxu0
    %v630 = vadd.f32 %v349, %v629
    %v631 = vpop.f32.mrf.mxu0
    %v632 = vadd.f32 %v351, %v631
    %633 = vdwg.mxu0
    %v634 = vand.u32 %v149, 4294901760
    %v635 = vsub.f32 %v149, %v634
    %636 = vmatprep.subr.mxu0 %v635
    %v637 = vand.u32 %v148, 4294901760
    %v638 = vsub.f32 %v148, %v637
    %639 = vmatpush1.msra.mxu0 %v638
    %v640 = vand.u32 %v146, 4294901760
    %v641 = vsub.f32 %v146, %v640
    %642 = vmatprep.subr.mxu0 %v641
    %v643 = vand.u32 %v145, 4294901760
    %v644 = vsub.f32 %v145, %v643
    %645 = vmatpush1.msra.mxu0 %v644
    %v646 = vand.u32 %v143, 4294901760
    %v647 = vsub.f32 %v143, %v646
    %648 = vmatprep.subr.mxu0 %v647
    %v649 = vand.u32 %v142, 4294901760
    %v650 = vsub.f32 %v142, %v649
    %651 = vmatpush1.msra.mxu0 %v650
    %v652 = vand.u32 %v140, 4294901760
    %v653 = vsub.f32 %v140, %v652
    %654 = vmatprep.subr.mxu0 %v653
    %v655 = vand.u32 %v139, 4294901760
    %v656 = vsub.f32 %v139, %v655
    %657 = vmatpush1.msra.mxu0 %v656
    %v658 = vand.u32 %v137, 4294901760
    %v659 = vsub.f32 %v137, %v658
    %660 = vmatprep.subr.mxu0 %v659
    %v661 = vand.u32 %v136, 4294901760
    %v662 = vsub.f32 %v136, %v661
    %663 = vmatpush1.msra.mxu0 %v662
    %v664 = vand.u32 %v134, 4294901760
    %v665 = vsub.f32 %v134, %v664
    %666 = vmatprep.subr.mxu0 %v665
    %v667 = vand.u32 %v133, 4294901760
    %v668 = vsub.f32 %v133, %v667
    %669 = vmatpush1.msra.mxu0 %v668
    %v670 = vand.u32 %v131, 4294901760
    %v671 = vsub.f32 %v131, %v670
    %672 = vmatprep.subr.mxu0 %v671
    %v673 = vand.u32 %v130, 4294901760
    %v674 = vsub.f32 %v130, %v673
    %675 = vmatpush1.msra.mxu0 %v674
    %v676 = vand.u32 %v128, 4294901760
    %v677 = vsub.f32 %v128, %v676
    %678 = vmatprep.subr.mxu0 %v677
    %v679 = vand.u32 %v127, 4294901760
    %v680 = vsub.f32 %v127, %v679
    %681 = vmatpush1.msra.mxu0 %v680
    %v682 = vand.u32 %v125, 4294901760
    %v683 = vsub.f32 %v125, %v682
    %684 = vmatprep.subr.mxu0 %v683
    %v685 = vand.u32 %v124, 4294901760
    %v686 = vsub.f32 %v124, %v685
    %687 = vmatpush1.msra.mxu0 %v686
    %v688 = vand.u32 %v122, 4294901760
    %v689 = vsub.f32 %v122, %v688
    %690 = vmatprep.subr.mxu0 %v689
    %v691 = vand.u32 %v121, 4294901760
    %v692 = vsub.f32 %v121, %v691
    %693 = vmatpush1.msra.mxu0 %v692
    %v694 = vand.u32 %v119, 4294901760
    %v695 = vsub.f32 %v119, %v694
    %696 = vmatprep.subr.mxu0 %v695
    %v697 = vand.u32 %v118, 4294901760
    %v698 = vsub.f32 %v118, %v697
    %699 = vmatpush1.msra.mxu0 %v698
    %v700 = vand.u32 %v116, 4294901760
    %v701 = vsub.f32 %v116, %v700
    %702 = vmatprep.subr.mxu0 %v701
    %v703 = vand.u32 %v115, 4294901760
    %v704 = vsub.f32 %v115, %v703
    %705 = vmatpush1.msra.mxu0 %v704
    %v706 = vand.u32 %v113, 4294901760
    %v707 = vsub.f32 %v113, %v706
    %708 = vmatprep.subr.mxu0 %v707
    %v709 = vand.u32 %v112, 4294901760
    %v710 = vsub.f32 %v112, %v709
    %711 = vmatpush1.msra.mxu0 %v710
    %v712 = vand.u32 %v110, 4294901760
    %v713 = vsub.f32 %v110, %v712
    %714 = vmatprep.subr.mxu0 %v713
    %v715 = vand.u32 %v109, 4294901760
    %v716 = vsub.f32 %v109, %v715
    %717 = vmatpush1.msra.mxu0 %v716
    %v718 = vand.u32 %v107, 4294901760
    %v719 = vsub.f32 %v107, %v718
    %720 = vmatprep.subr.mxu0 %v719
    %v721 = vand.u32 %v106, 4294901760
    %v722 = vsub.f32 %v106, %v721
    %723 = vmatpush1.msra.mxu0 %v722
    %v724 = vand.u32 %v104, 4294901760
    %v725 = vsub.f32 %v104, %v724
    %726 = vmatprep.subr.mxu0 %v725
    %v727 = vand.u32 %v103, 4294901760
    %v728 = vsub.f32 %v103, %v727
    %729 = vmatpush1.msra.mxu0 %v728
    %730 = vmatprep.subr.mxu0 0.0
    %731 = vmatpush2.msra.mxu0 0.0
    %732 = vmatprep.subr.mxu0 0.0
    %733 = vmatpush2.msra.mxu0 0.0
    %734 = vmatprep.subr.mxu0 0.0
    %735 = vmatpush2.msra.mxu0 0.0
    %736 = vmatprep.subr.mxu0 0.0
    %737 = vmatpush2.msra.mxu0 0.0
    %738 = vmatprep.subr.mxu0 0.0
    %739 = vmatpush2.msra.mxu0 0.0
    %740 = vmatprep.subr.mxu0 0.0
    %741 = vmatpush2.msra.mxu0 0.0
    %742 = vmatprep.subr.mxu0 0.0
    %743 = vmatpush2.msra.mxu0 0.0
    %744 = vmatprep.subr.mxu0 0.0
    %745 = vmatpush2.msra.mxu0 0.0
    %746 = vmatprep.subr.mxu0 0.0
    %747 = vmatpush2.msra.mxu0 0.0
    %748 = vmatprep.subr.mxu0 0.0
    %749 = vmatpush2.msra.mxu0 0.0
    %750 = vmatprep.subr.mxu0 0.0
    %751 = vmatpush2.msra.mxu0 0.0
    %752 = vmatprep.subr.mxu0 0.0
    %753 = vmatpush2.msra.mxu0 0.0
    %754 = vmatprep.subr.mxu0 0.0
    %755 = vmatpush2.msra.mxu0 0.0
    %756 = vmatprep.subr.mxu0 0.0
    %757 = vmatpush2.msra.mxu0 0.0
    %758 = vmatprep.subr.mxu0 0.0
    %759 = vmatpush2.msra.mxu0 0.0
    %760 = vmatprep.subr.mxu0 0.0
    %761 = vmatpush2.msra.mxu0 0.0
    %762 = vmatprep.mubr.f32.mxu0 0.0
    %v763 = vand.u32 %v95, 4294901760
    %v764 = vsub.f32 %v95, %v763
    %765 = vmatmul.mubr.f32.gmra.mxu0 %v764
    %v766 = vpop.f32.mrf.mxu0
    %v767 = vadd.f32 %v581, %v766
    %v768 = vpop.f32.mrf.mxu0
    %v769 = vadd.f32 %v583, %v768
    %770 = vmatprep.mubr.f32.mxu0 0.0
    %v771 = vand.u32 %v96, 4294901760
    %v772 = vsub.f32 %v96, %v771
    %773 = vmatmul.mubr.f32.gmra.mxu0 %v772
    %v774 = vpop.f32.mrf.mxu0
    %v775 = vadd.f32 %v588, %v774
    %v776 = vpop.f32.mrf.mxu0
    %v777 = vadd.f32 %v590, %v776
    %778 = vmatprep.mubr.f32.mxu0 0.0
    %v779 = vand.u32 %v97, 4294901760
    %v780 = vsub.f32 %v97, %v779
    %781 = vmatmul.mubr.f32.gmra.mxu0 %v780
    %v782 = vpop.f32.mrf.mxu0
    %v783 = vadd.f32 %v595, %v782
    %v784 = vpop.f32.mrf.mxu0
    %v785 = vadd.f32 %v597, %v784
    %786 = vmatprep.mubr.f32.mxu0 0.0
    %v787 = vand.u32 %v98, 4294901760
    %v788 = vsub.f32 %v98, %v787
    %789 = vmatmul.mubr.f32.gmra.mxu0 %v788
    %v790 = vpop.f32.mrf.mxu0
    %v791 = vadd.f32 %v602, %v790
    %v792 = vpop.f32.mrf.mxu0
    %v793 = vadd.f32 %v604, %v792
    %794 = vmatprep.mubr.f32.mxu0 0.0
    %v795 = vand.u32 %v99, 4294901760
    %v796 = vsub.f32 %v99, %v795
    %797 = vmatmul.mubr.f32.gmra.mxu0 %v796
    %v798 = vpop.f32.mrf.mxu0
    %v799 = vadd.f32 %v609, %v798
    %v800 = vpop.f32.mrf.mxu0
    %v801 = vadd.f32 %v611, %v800
    %802 = vmatprep.mubr.f32.mxu0 0.0
    %v803 = vand.u32 %v100, 4294901760
    %v804 = vsub.f32 %v100, %v803
    %805 = vmatmul.mubr.f32.gmra.mxu0 %v804
    %v806 = vpop.f32.mrf.mxu0
    %v807 = vadd.f32 %v616, %v806
    %v808 = vpop.f32.mrf.mxu0
    %v809 = vadd.f32 %v618, %v808
    %810 = vmatprep.mubr.f32.mxu0 0.0
    %v811 = vand.u32 %v101, 4294901760
    %v812 = vsub.f32 %v101, %v811
    %813 = vmatmul.mubr.f32.gmra.mxu0 %v812
    %v814 = vpop.f32.mrf.mxu0
    %v815 = vadd.f32 %v623, %v814
    %v816 = vpop.f32.mrf.mxu0
    %v817 = vadd.f32 %v625, %v816
    %818 = vmatprep.mubr.f32.mxu0 0.0
    %v819 = vand.u32 %v102, 4294901760
    %v820 = vsub.f32 %v102, %v819
    %821 = vmatmul.mubr.f32.gmra.mxu0 %v820
    %v822 = vpop.f32.mrf.mxu0
    %v823 = vadd.f32 %v630, %v822
    %v824 = vpop.f32.mrf.mxu0
    %v825 = vadd.f32 %v632, %v824
    %826 = vdwg.mxu0
    %v827 = vand.u32 %v149, 4294901760
    %828 = vmatprep.subr.mxu0 %v827
    %v829 = vand.u32 %v148, 4294901760
    %830 = vmatpush1.msra.mxu0 %v829
    %v831 = vand.u32 %v146, 4294901760
    %832 = vmatprep.subr.mxu0 %v831
    %v833 = vand.u32 %v145, 4294901760
    %834 = vmatpush1.msra.mxu0 %v833
    %v835 = vand.u32 %v143, 4294901760
    %836 = vmatprep.subr.mxu0 %v835
    %v837 = vand.u32 %v142, 4294901760
    %838 = vmatpush1.msra.mxu0 %v837
    %v839 = vand.u32 %v140, 4294901760
    %840 = vmatprep.subr.mxu0 %v839
    %v841 = vand.u32 %v139, 4294901760
    %842 = vmatpush1.msra.mxu0 %v841
    %v843 = vand.u32 %v137, 4294901760
    %844 = vmatprep.subr.mxu0 %v843
    %v845 = vand.u32 %v136, 4294901760
    %846 = vmatpush1.msra.mxu0 %v845
    %v847 = vand.u32 %v134, 4294901760
    %848 = vmatprep.subr.mxu0 %v847
    %v849 = vand.u32 %v133, 4294901760
    %850 = vmatpush1.msra.mxu0 %v849
    %v851 = vand.u32 %v131, 4294901760
    %852 = vmatprep.subr.mxu0 %v851
    %v853 = vand.u32 %v130, 4294901760
    %854 = vmatpush1.msra.mxu0 %v853
    %v855 = vand.u32 %v128, 4294901760
    %856 = vmatprep.subr.mxu0 %v855
    %v857 = vand.u32 %v127, 4294901760
    %858 = vmatpush1.msra.mxu0 %v857
    %v859 = vand.u32 %v125, 4294901760
    %860 = vmatprep.subr.mxu0 %v859
    %v861 = vand.u32 %v124, 4294901760
    %862 = vmatpush1.msra.mxu0 %v861
    %v863 = vand.u32 %v122, 4294901760
    %864 = vmatprep.subr.mxu0 %v863
    %v865 = vand.u32 %v121, 4294901760
    %866 = vmatpush1.msra.mxu0 %v865
    %v867 = vand.u32 %v119, 4294901760
    %868 = vmatprep.subr.mxu0 %v867
    %v869 = vand.u32 %v118, 4294901760
    %870 = vmatpush1.msra.mxu0 %v869
    %v871 = vand.u32 %v116, 4294901760
    %872 = vmatprep.subr.mxu0 %v871
    %v873 = vand.u32 %v115, 4294901760
    %874 = vmatpush1.msra.mxu0 %v873
    %v875 = vand.u32 %v113, 4294901760
    %876 = vmatprep.subr.mxu0 %v875
    %v877 = vand.u32 %v112, 4294901760
    %878 = vmatpush1.msra.mxu0 %v877
    %v879 = vand.u32 %v110, 4294901760
    %880 = vmatprep.subr.mxu0 %v879
    %v881 = vand.u32 %v109, 4294901760
    %882 = vmatpush1.msra.mxu0 %v881
    %v883 = vand.u32 %v107, 4294901760
    %884 = vmatprep.subr.mxu0 %v883
    %v885 = vand.u32 %v106, 4294901760
    %886 = vmatpush1.msra.mxu0 %v885
    %v887 = vand.u32 %v104, 4294901760
    %888 = vmatprep.subr.mxu0 %v887
    %v889 = vand.u32 %v103, 4294901760
    %890 = vmatpush1.msra.mxu0 %v889
    %891 = vmatprep.subr.mxu0 0.0
    %892 = vmatpush2.msra.mxu0 0.0
    %893 = vmatprep.subr.mxu0 0.0
    %894 = vmatpush2.msra.mxu0 0.0
    %895 = vmatprep.subr.mxu0 0.0
    %896 = vmatpush2.msra.mxu0 0.0
    %897 = vmatprep.subr.mxu0 0.0
    %898 = vmatpush2.msra.mxu0 0.0
    %899 = vmatprep.subr.mxu0 0.0
    %900 = vmatpush2.msra.mxu0 0.0
    %901 = vmatprep.subr.mxu0 0.0
    %902 = vmatpush2.msra.mxu0 0.0
    %903 = vmatprep.subr.mxu0 0.0
    %904 = vmatpush2.msra.mxu0 0.0
    %905 = vmatprep.subr.mxu0 0.0
    %906 = vmatpush2.msra.mxu0 0.0
    %907 = vmatprep.subr.mxu0 0.0
    %908 = vmatpush2.msra.mxu0 0.0
    %909 = vmatprep.subr.mxu0 0.0
    %910 = vmatpush2.msra.mxu0 0.0
    %911 = vmatprep.subr.mxu0 0.0
    %912 = vmatpush2.msra.mxu0 0.0
    %913 = vmatprep.subr.mxu0 0.0
    %914 = vmatpush2.msra.mxu0 0.0
    %915 = vmatprep.subr.mxu0 0.0
    %916 = vmatpush2.msra.mxu0 0.0
    %917 = vmatprep.subr.mxu0 0.0
    %918 = vmatpush2.msra.mxu0 0.0
    %919 = vmatprep.subr.mxu0 0.0
    %920 = vmatpush2.msra.mxu0 0.0
    %921 = vmatprep.subr.mxu0 0.0
    %922 = vmatpush2.msra.mxu0 0.0
    %923 = vmatprep.mubr.f32.mxu0 0.0
    %v924 = vand.u32 %v95, 4294901760
    %v925 = vsub.f32 %v95, %v924
    %v926 = vand.u32 %v925, 4294901760
    %927 = vmatmul.mubr.f32.gmra.mxu0 %v926
    %v928 = vpop.f32.mrf.mxu0
    %v929 = vadd.f32 %v767, %v928
    %v930 = vpop.f32.mrf.mxu0
    %v931 = vadd.f32 %v769, %v930
    %932 = vmatprep.mubr.f32.mxu0 0.0
    %v933 = vand.u32 %v96, 4294901760
    %v934 = vsub.f32 %v96, %v933
    %v935 = vand.u32 %v934, 4294901760
    %936 = vmatmul.mubr.f32.gmra.mxu0 %v935
    %v937 = vpop.f32.mrf.mxu0
    %v938 = vadd.f32 %v775, %v937
    %v939 = vpop.f32.mrf.mxu0
    %v940 = vadd.f32 %v777, %v939
    %941 = vmatprep.mubr.f32.mxu0 0.0
    %v942 = vand.u32 %v97, 4294901760
    %v943 = vsub.f32 %v97, %v942
    %v944 = vand.u32 %v943, 4294901760
    %945 = vmatmul.mubr.f32.gmra.mxu0 %v944
    %v946 = vpop.f32.mrf.mxu0
    %v947 = vadd.f32 %v783, %v946
    %v948 = vpop.f32.mrf.mxu0
    %v949 = vadd.f32 %v785, %v948
    %950 = vmatprep.mubr.f32.mxu0 0.0
    %v951 = vand.u32 %v98, 4294901760
    %v952 = vsub.f32 %v98, %v951
    %v953 = vand.u32 %v952, 4294901760
    %954 = vmatmul.mubr.f32.gmra.mxu0 %v953
    %v955 = vpop.f32.mrf.mxu0
    %v956 = vadd.f32 %v791, %v955
    %v957 = vpop.f32.mrf.mxu0
    %v958 = vadd.f32 %v793, %v957
    %959 = vmatprep.mubr.f32.mxu0 0.0
    %v960 = vand.u32 %v99, 4294901760
    %v961 = vsub.f32 %v99, %v960
    %v962 = vand.u32 %v961, 4294901760
    %963 = vmatmul.mubr.f32.gmra.mxu0 %v962
    %v964 = vpop.f32.mrf.mxu0
    %v965 = vadd.f32 %v799, %v964
    %v966 = vpop.f32.mrf.mxu0
    %v967 = vadd.f32 %v801, %v966
    %968 = vmatprep.mubr.f32.mxu0 0.0
    %v969 = vand.u32 %v100, 4294901760
    %v970 = vsub.f32 %v100, %v969
    %v971 = vand.u32 %v970, 4294901760
    %972 = vmatmul.mubr.f32.gmra.mxu0 %v971
    %v973 = vpop.f32.mrf.mxu0
    %v974 = vadd.f32 %v807, %v973
    %v975 = vpop.f32.mrf.mxu0
    %v976 = vadd.f32 %v809, %v975
    %977 = vmatprep.mubr.f32.mxu0 0.0
    %v978 = vand.u32 %v101, 4294901760
    %v979 = vsub.f32 %v101, %v978
    %v980 = vand.u32 %v979, 4294901760
    %981 = vmatmul.mubr.f32.gmra.mxu0 %v980
    %v982 = vpop.f32.mrf.mxu0
    %v983 = vadd.f32 %v815, %v982
    %v984 = vpop.f32.mrf.mxu0
    %v985 = vadd.f32 %v817, %v984
    %986 = vmatprep.mubr.f32.mxu0 0.0
    %v987 = vand.u32 %v102, 4294901760
    %v988 = vsub.f32 %v102, %v987
    %v989 = vand.u32 %v988, 4294901760
    %990 = vmatmul.mubr.f32.gmra.mxu0 %v989
    %v991 = vpop.f32.mrf.mxu0
    %v992 = vadd.f32 %v823, %v991
    %v993 = vpop.f32.mrf.mxu0
    %v994 = vadd.f32 %v825, %v993
    %995 = vdwg.mxu0
    %v996 = vand.u32 %v149, 4294901760
    %v997 = vsub.f32 %v149, %v996
    %v998 = vand.u32 %v997, 4294901760
    %999 = vmatprep.subr.mxu0 %v998
    %v1000 = vand.u32 %v148, 4294901760
    %v1001 = vsub.f32 %v148, %v1000
    %v1002 = vand.u32 %v1001, 4294901760
    %1003 = vmatpush1.msra.mxu0 %v1002
    %v1004 = vand.u32 %v146, 4294901760
    %v1005 = vsub.f32 %v146, %v1004
    %v1006 = vand.u32 %v1005, 4294901760
    %1007 = vmatprep.subr.mxu0 %v1006
    %v1008 = vand.u32 %v145, 4294901760
    %v1009 = vsub.f32 %v145, %v1008
    %v1010 = vand.u32 %v1009, 4294901760
    %1011 = vmatpush1.msra.mxu0 %v1010
    %v1012 = vand.u32 %v143, 4294901760
    %v1013 = vsub.f32 %v143, %v1012
    %v1014 = vand.u32 %v1013, 4294901760
    %1015 = vmatprep.subr.mxu0 %v1014
    %v1016 = vand.u32 %v142, 4294901760
    %v1017 = vsub.f32 %v142, %v1016
    %v1018 = vand.u32 %v1017, 4294901760
    %1019 = vmatpush1.msra.mxu0 %v1018
    %v1020 = vand.u32 %v140, 4294901760
    %v1021 = vsub.f32 %v140, %v1020
    %v1022 = vand.u32 %v1021, 4294901760
    %1023 = vmatprep.subr.mxu0 %v1022
    %v1024 = vand.u32 %v139, 4294901760
    %v1025 = vsub.f32 %v139, %v1024
    %v1026 = vand.u32 %v1025, 4294901760
    %1027 = vmatpush1.msra.mxu0 %v1026
    %v1028 = vand.u32 %v137, 4294901760
    %v1029 = vsub.f32 %v137, %v1028
    %v1030 = vand.u32 %v1029, 4294901760
    %1031 = vmatprep.subr.mxu0 %v1030
    %v1032 = vand.u32 %v136, 4294901760
    %v1033 = vsub.f32 %v136, %v1032
    %v1034 = vand.u32 %v1033, 4294901760
    %1035 = vmatpush1.msra.mxu0 %v1034
    %v1036 = vand.u32 %v134, 4294901760
    %v1037 = vsub.f32 %v134, %v1036
    %v1038 = vand.u32 %v1037, 4294901760
    %1039 = vmatprep.subr.mxu0 %v1038
    %v1040 = vand.u32 %v133, 4294901760
    %v1041 = vsub.f32 %v133, %v1040
    %v1042 = vand.u32 %v1041, 4294901760
    %1043 = vmatpush1.msra.mxu0 %v1042
    %v1044 = vand.u32 %v131, 4294901760
    %v1045 = vsub.f32 %v131, %v1044
    %v1046 = vand.u32 %v1045, 4294901760
    %1047 = vmatprep.subr.mxu0 %v1046
    %v1048 = vand.u32 %v130, 4294901760
    %v1049 = vsub.f32 %v130, %v1048
    %v1050 = vand.u32 %v1049, 4294901760
    %1051 = vmatpush1.msra.mxu0 %v1050
    %v1052 = vand.u32 %v128, 4294901760
    %v1053 = vsub.f32 %v128, %v1052
    %v1054 = vand.u32 %v1053, 4294901760
    %1055 = vmatprep.subr.mxu0 %v1054
    %v1056 = vand.u32 %v127, 4294901760
    %v1057 = vsub.f32 %v127, %v1056
    %v1058 = vand.u32 %v1057, 4294901760
    %1059 = vmatpush1.msra.mxu0 %v1058
    %v1060 = vand.u32 %v125, 4294901760
    %v1061 = vsub.f32 %v125, %v1060
    %v1062 = vand.u32 %v1061, 4294901760
    %1063 = vmatprep.subr.mxu0 %v1062
    %v1064 = vand.u32 %v124, 4294901760
    %v1065 = vsub.f32 %v124, %v1064
    %v1066 = vand.u32 %v1065, 4294901760
    %1067 = vmatpush1.msra.mxu0 %v1066
    %v1068 = vand.u32 %v122, 4294901760
    %v1069 = vsub.f32 %v122, %v1068
    %v1070 = vand.u32 %v1069, 4294901760
    %1071 = vmatprep.subr.mxu0 %v1070
    %v1072 = vand.u32 %v121, 4294901760
    %v1073 = vsub.f32 %v121, %v1072
    %v1074 = vand.u32 %v1073, 4294901760
    %1075 = vmatpush1.msra.mxu0 %v1074
    %v1076 = vand.u32 %v119, 4294901760
    %v1077 = vsub.f32 %v119, %v1076
    %v1078 = vand.u32 %v1077, 4294901760
    %1079 = vmatprep.subr.mxu0 %v1078
    %v1080 = vand.u32 %v118, 4294901760
    %v1081 = vsub.f32 %v118, %v1080
    %v1082 = vand.u32 %v1081, 4294901760
    %1083 = vmatpush1.msra.mxu0 %v1082
    %v1084 = vand.u32 %v116, 4294901760
    %v1085 = vsub.f32 %v116, %v1084
    %v1086 = vand.u32 %v1085, 4294901760
    %1087 = vmatprep.subr.mxu0 %v1086
    %v1088 = vand.u32 %v115, 4294901760
    %v1089 = vsub.f32 %v115, %v1088
    %v1090 = vand.u32 %v1089, 4294901760
    %1091 = vmatpush1.msra.mxu0 %v1090
    %v1092 = vand.u32 %v113, 4294901760
    %v1093 = vsub.f32 %v113, %v1092
    %v1094 = vand.u32 %v1093, 4294901760
    %1095 = vmatprep.subr.mxu0 %v1094
    %v1096 = vand.u32 %v112, 4294901760
    %v1097 = vsub.f32 %v112, %v1096
    %v1098 = vand.u32 %v1097, 4294901760
    %1099 = vmatpush1.msra.mxu0 %v1098
    %v1100 = vand.u32 %v110, 4294901760
    %v1101 = vsub.f32 %v110, %v1100
    %v1102 = vand.u32 %v1101, 4294901760
    %1103 = vmatprep.subr.mxu0 %v1102
    %v1104 = vand.u32 %v109, 4294901760
    %v1105 = vsub.f32 %v109, %v1104
    %v1106 = vand.u32 %v1105, 4294901760
    %1107 = vmatpush1.msra.mxu0 %v1106
    %v1108 = vand.u32 %v107, 4294901760
    %v1109 = vsub.f32 %v107, %v1108
    %v1110 = vand.u32 %v1109, 4294901760
    %1111 = vmatprep.subr.mxu0 %v1110
    %v1112 = vand.u32 %v106, 4294901760
    %v1113 = vsub.f32 %v106, %v1112
    %v1114 = vand.u32 %v1113, 4294901760
    %1115 = vmatpush1.msra.mxu0 %v1114
    %v1116 = vand.u32 %v104, 4294901760
    %v1117 = vsub.f32 %v104, %v1116
    %v1118 = vand.u32 %v1117, 4294901760
    %1119 = vmatprep.subr.mxu0 %v1118
    %v1120 = vand.u32 %v103, 4294901760
    %v1121 = vsub.f32 %v103, %v1120
    %v1122 = vand.u32 %v1121, 4294901760
    %1123 = vmatpush1.msra.mxu0 %v1122
    %1124 = vmatprep.subr.mxu0 0.0
    %1125 = vmatpush2.msra.mxu0 0.0
    %1126 = vmatprep.subr.mxu0 0.0
    %1127 = vmatpush2.msra.mxu0 0.0
    %1128 = vmatprep.subr.mxu0 0.0
    %1129 = vmatpush2.msra.mxu0 0.0
    %1130 = vmatprep.subr.mxu0 0.0
    %1131 = vmatpush2.msra.mxu0 0.0
    %1132 = vmatprep.subr.mxu0 0.0
    %1133 = vmatpush2.msra.mxu0 0.0
    %1134 = vmatprep.subr.mxu0 0.0
    %1135 = vmatpush2.msra.mxu0 0.0
    %1136 = vmatprep.subr.mxu0 0.0
    %1137 = vmatpush2.msra.mxu0 0.0
    %1138 = vmatprep.subr.mxu0 0.0
    %1139 = vmatpush2.msra.mxu0 0.0
    %1140 = vmatprep.subr.mxu0 0.0
    %1141 = vmatpush2.msra.mxu0 0.0
    %1142 = vmatprep.subr.mxu0 0.0
    %1143 = vmatpush2.msra.mxu0 0.0
    %1144 = vmatprep.subr.mxu0 0.0
    %1145 = vmatpush2.msra.mxu0 0.0
    %1146 = vmatprep.subr.mxu0 0.0
    %1147 = vmatpush2.msra.mxu0 0.0
    %1148 = vmatprep.subr.mxu0 0.0
    %1149 = vmatpush2.msra.mxu0 0.0
    %1150 = vmatprep.subr.mxu0 0.0
    %1151 = vmatpush2.msra.mxu0 0.0
    %1152 = vmatprep.subr.mxu0 0.0
    %1153 = vmatpush2.msra.mxu0 0.0
    %1154 = vmatprep.subr.mxu0 0.0
    %1155 = vmatpush2.msra.mxu0 0.0
    %1156 = vmatprep.mubr.f32.mxu0 0.0
    %v1157 = vand.u32 %v95, 4294901760
    %1158 = vmatmul.mubr.f32.gmra.mxu0 %v1157
    %v1159 = vpop.f32.mrf.mxu0
    %v1160 = vadd.f32 %v929, %v1159
    %v1161 = vpop.f32.mrf.mxu0
    %v1162 = vadd.f32 %v931, %v1161
    %1163 = vmatprep.mubr.f32.mxu0 0.0
    %v1164 = vand.u32 %v96, 4294901760
    %1165 = vmatmul.mubr.f32.gmra.mxu0 %v1164
    %v1166 = vpop.f32.mrf.mxu0
    %v1167 = vadd.f32 %v938, %v1166
    %v1168 = vpop.f32.mrf.mxu0
    %v1169 = vadd.f32 %v940, %v1168
    %1170 = vmatprep.mubr.f32.mxu0 0.0
    %v1171 = vand.u32 %v97, 4294901760
    %1172 = vmatmul.mubr.f32.gmra.mxu0 %v1171
    %v1173 = vpop.f32.mrf.mxu0
    %v1174 = vadd.f32 %v947, %v1173
    %v1175 = vpop.f32.mrf.mxu0
    %v1176 = vadd.f32 %v949, %v1175
    %1177 = vmatprep.mubr.f32.mxu0 0.0
    %v1178 = vand.u32 %v98, 4294901760
    %1179 = vmatmul.mubr.f32.gmra.mxu0 %v1178
    %v1180 = vpop.f32.mrf.mxu0
    %v1181 = vadd.f32 %v956, %v1180
    %v1182 = vpop.f32.mrf.mxu0
    %v1183 = vadd.f32 %v958, %v1182
    %1184 = vmatprep.mubr.f32.mxu0 0.0
    %v1185 = vand.u32 %v99, 4294901760
    %1186 = vmatmul.mubr.f32.gmra.mxu0 %v1185
    %v1187 = vpop.f32.mrf.mxu0
    %v1188 = vadd.f32 %v965, %v1187
    %v1189 = vpop.f32.mrf.mxu0
    %v1190 = vadd.f32 %v967, %v1189
    %1191 = vmatprep.mubr.f32.mxu0 0.0
    %v1192 = vand.u32 %v100, 4294901760
    %1193 = vmatmul.mubr.f32.gmra.mxu0 %v1192
    %v1194 = vpop.f32.mrf.mxu0
    %v1195 = vadd.f32 %v974, %v1194
    %v1196 = vpop.f32.mrf.mxu0
    %v1197 = vadd.f32 %v976, %v1196
    %1198 = vmatprep.mubr.f32.mxu0 0.0
    %v1199 = vand.u32 %v101, 4294901760
    %1200 = vmatmul.mubr.f32.gmra.mxu0 %v1199
    %v1201 = vpop.f32.mrf.mxu0
    %v1202 = vadd.f32 %v983, %v1201
    %v1203 = vpop.f32.mrf.mxu0
    %v1204 = vadd.f32 %v985, %v1203
    %1205 = vmatprep.mubr.f32.mxu0 0.0
    %v1206 = vand.u32 %v102, 4294901760
    %1207 = vmatmul.mubr.f32.gmra.mxu0 %v1206
    %v1208 = vpop.f32.mrf.mxu0
    %v1209 = vadd.f32 %v992, %v1208
    %v1210 = vpop.f32.mrf.mxu0
    %v1211 = vadd.f32 %v994, %v1210
    %1212 = vdwg.mxu0
    %v1213 = vand.u32 %v149, 4294901760
    %1214 = vmatprep.subr.mxu0 %v1213
    %v1215 = vand.u32 %v148, 4294901760
    %1216 = vmatpush1.msra.mxu0 %v1215
    %v1217 = vand.u32 %v146, 4294901760
    %1218 = vmatprep.subr.mxu0 %v1217
    %v1219 = vand.u32 %v145, 4294901760
    %1220 = vmatpush1.msra.mxu0 %v1219
    %v1221 = vand.u32 %v143, 4294901760
    %1222 = vmatprep.subr.mxu0 %v1221
    %v1223 = vand.u32 %v142, 4294901760
    %1224 = vmatpush1.msra.mxu0 %v1223
    %v1225 = vand.u32 %v140, 4294901760
    %1226 = vmatprep.subr.mxu0 %v1225
    %v1227 = vand.u32 %v139, 4294901760
    %1228 = vmatpush1.msra.mxu0 %v1227
    %v1229 = vand.u32 %v137, 4294901760
    %1230 = vmatprep.subr.mxu0 %v1229
    %v1231 = vand.u32 %v136, 4294901760
    %1232 = vmatpush1.msra.mxu0 %v1231
    %v1233 = vand.u32 %v134, 4294901760
    %1234 = vmatprep.subr.mxu0 %v1233
    %v1235 = vand.u32 %v133, 4294901760
    %1236 = vmatpush1.msra.mxu0 %v1235
    %v1237 = vand.u32 %v131, 4294901760
    %1238 = vmatprep.subr.mxu0 %v1237
    %v1239 = vand.u32 %v130, 4294901760
    %1240 = vmatpush1.msra.mxu0 %v1239
    %v1241 = vand.u32 %v128, 4294901760
    %1242 = vmatprep.subr.mxu0 %v1241
    %v1243 = vand.u32 %v127, 4294901760
    %1244 = vmatpush1.msra.mxu0 %v1243
    %v1245 = vand.u32 %v125, 4294901760
    %1246 = vmatprep.subr.mxu0 %v1245
    %v1247 = vand.u32 %v124, 4294901760
    %1248 = vmatpush1.msra.mxu0 %v1247
    %v1249 = vand.u32 %v122, 4294901760
    %1250 = vmatprep.subr.mxu0 %v1249
    %v1251 = vand.u32 %v121, 4294901760
    %1252 = vmatpush1.msra.mxu0 %v1251
    %v1253 = vand.u32 %v119, 4294901760
    %1254 = vmatprep.subr.mxu0 %v1253
    %v1255 = vand.u32 %v118, 4294901760
    %1256 = vmatpush1.msra.mxu0 %v1255
    %v1257 = vand.u32 %v116, 4294901760
    %1258 = vmatprep.subr.mxu0 %v1257
    %v1259 = vand.u32 %v115, 4294901760
    %1260 = vmatpush1.msra.mxu0 %v1259
    %v1261 = vand.u32 %v113, 4294901760
    %1262 = vmatprep.subr.mxu0 %v1261
    %v1263 = vand.u32 %v112, 4294901760
    %1264 = vmatpush1.msra.mxu0 %v1263
    %v1265 = vand.u32 %v110, 4294901760
    %1266 = vmatprep.subr.mxu0 %v1265
    %v1267 = vand.u32 %v109, 4294901760
    %1268 = vmatpush1.msra.mxu0 %v1267
    %v1269 = vand.u32 %v107, 4294901760
    %1270 = vmatprep.subr.mxu0 %v1269
    %v1271 = vand.u32 %v106, 4294901760
    %1272 = vmatpush1.msra.mxu0 %v1271
    %v1273 = vand.u32 %v104, 4294901760
    %1274 = vmatprep.subr.mxu0 %v1273
    %v1275 = vand.u32 %v103, 4294901760
    %1276 = vmatpush1.msra.mxu0 %v1275
    %1277 = vmatprep.subr.mxu0 0.0
    %1278 = vmatpush2.msra.mxu0 0.0
    %1279 = vmatprep.subr.mxu0 0.0
    %1280 = vmatpush2.msra.mxu0 0.0
    %1281 = vmatprep.subr.mxu0 0.0
    %1282 = vmatpush2.msra.mxu0 0.0
    %1283 = vmatprep.subr.mxu0 0.0
    %1284 = vmatpush2.msra.mxu0 0.0
    %1285 = vmatprep.subr.mxu0 0.0
    %1286 = vmatpush2.msra.mxu0 0.0
    %1287 = vmatprep.subr.mxu0 0.0
    %1288 = vmatpush2.msra.mxu0 0.0
    %1289 = vmatprep.subr.mxu0 0.0
    %1290 = vmatpush2.msra.mxu0 0.0
    %1291 = vmatprep.subr.mxu0 0.0
    %1292 = vmatpush2.msra.mxu0 0.0
    %1293 = vmatprep.subr.mxu0 0.0
    %1294 = vmatpush2.msra.mxu0 0.0
    %1295 = vmatprep.subr.mxu0 0.0
    %1296 = vmatpush2.msra.mxu0 0.0
    %1297 = vmatprep.subr.mxu0 0.0
    %1298 = vmatpush2.msra.mxu0 0.0
    %1299 = vmatprep.subr.mxu0 0.0
    %1300 = vmatpush2.msra.mxu0 0.0
    %1301 = vmatprep.subr.mxu0 0.0
    %1302 = vmatpush2.msra.mxu0 0.0
    %1303 = vmatprep.subr.mxu0 0.0
    %1304 = vmatpush2.msra.mxu0 0.0
    %1305 = vmatprep.subr.mxu0 0.0
    %1306 = vmatpush2.msra.mxu0 0.0
    %1307 = vmatprep.subr.mxu0 0.0
    %1308 = vmatpush2.msra.mxu0 0.0
    %1309 = vmatprep.mubr.f32.mxu0 0.0
    %v1310 = vand.u32 %v95, 4294901760
    %1311 = vmatmul.mubr.f32.gmra.mxu0 %v1310
    %v1312 = vpop.f32.mrf.mxu0
    %v1313 = vadd.f32 %v1160, %v1312
    %v1314 = vpop.f32.mrf.mxu0
    %v1315 = vadd.f32 %v1162, %v1314
    %1316 = vmatprep.mubr.f32.mxu0 0.0
    %v1317 = vand.u32 %v96, 4294901760
    %1318 = vmatmul.mubr.f32.gmra.mxu0 %v1317
    %v1319 = vpop.f32.mrf.mxu0
    %v1320 = vadd.f32 %v1167, %v1319
    %v1321 = vpop.f32.mrf.mxu0
    %v1322 = vadd.f32 %v1169, %v1321
    %1323 = vmatprep.mubr.f32.mxu0 0.0
    %v1324 = vand.u32 %v97, 4294901760
    %1325 = vmatmul.mubr.f32.gmra.mxu0 %v1324
    %v1326 = vpop.f32.mrf.mxu0
    %v1327 = vadd.f32 %v1174, %v1326
    %v1328 = vpop.f32.mrf.mxu0
    %v1329 = vadd.f32 %v1176, %v1328
    %1330 = vmatprep.mubr.f32.mxu0 0.0
    %v1331 = vand.u32 %v98, 4294901760
    %1332 = vmatmul.mubr.f32.gmra.mxu0 %v1331
    %v1333 = vpop.f32.mrf.mxu0
    %v1334 = vadd.f32 %v1181, %v1333
    %v1335 = vpop.f32.mrf.mxu0
    %v1336 = vadd.f32 %v1183, %v1335
    %1337 = vmatprep.mubr.f32.mxu0 0.0
    %v1338 = vand.u32 %v99, 4294901760
    %1339 = vmatmul.mubr.f32.gmra.mxu0 %v1338
    %v1340 = vpop.f32.mrf.mxu0
    %v1341 = vadd.f32 %v1188, %v1340
    %v1342 = vpop.f32.mrf.mxu0
    %v1343 = vadd.f32 %v1190, %v1342
    %1344 = vmatprep.mubr.f32.mxu0 0.0
    %v1345 = vand.u32 %v100, 4294901760
    %1346 = vmatmul.mubr.f32.gmra.mxu0 %v1345
    %v1347 = vpop.f32.mrf.mxu0
    %v1348 = vadd.f32 %v1195, %v1347
    %v1349 = vpop.f32.mrf.mxu0
    %v1350 = vadd.f32 %v1197, %v1349
    %1351 = vmatprep.mubr.f32.mxu0 0.0
    %v1352 = vand.u32 %v101, 4294901760
    %1353 = vmatmul.mubr.f32.gmra.mxu0 %v1352
    %v1354 = vpop.f32.mrf.mxu0
    %v1355 = vadd.f32 %v1202, %v1354
    %v1356 = vpop.f32.mrf.mxu0
    %v1357 = vadd.f32 %v1204, %v1356
    %1358 = vmatprep.mubr.f32.mxu0 0.0
    %v1359 = vand.u32 %v102, 4294901760
    %1360 = vmatmul.mubr.f32.gmra.mxu0 %v1359
    %v1361 = vpop.f32.mrf.mxu0
    %v1362 = vadd.f32 %v1209, %v1361
    %v1363 = vpop.f32.mrf.mxu0
    %v1364 = vadd.f32 %v1211, %v1363
    %1365 = vdwg.mxu0
    %1366 = vmatprep.subr.mxu0 0.0
    %v1367 = vand.u32 %v150, 4294901760
    %1368 = vmatpush1.msra.mxu0 %v1367
    %1369 = vmatprep.subr.mxu0 0.0
    %v1370 = vand.u32 %v147, 4294901760
    %1371 = vmatpush1.msra.mxu0 %v1370
    %1372 = vmatprep.subr.mxu0 0.0
    %v1373 = vand.u32 %v144, 4294901760
    %1374 = vmatpush1.msra.mxu0 %v1373
    %1375 = vmatprep.subr.mxu0 0.0
    %v1376 = vand.u32 %v141, 4294901760
    %1377 = vmatpush1.msra.mxu0 %v1376
    %1378 = vmatprep.subr.mxu0 0.0
    %v1379 = vand.u32 %v138, 4294901760
    %1380 = vmatpush1.msra.mxu0 %v1379
    %1381 = vmatprep.subr.mxu0 0.0
    %v1382 = vand.u32 %v135, 4294901760
    %1383 = vmatpush1.msra.mxu0 %v1382
    %1384 = vmatprep.subr.mxu0 0.0
    %v1385 = vand.u32 %v132, 4294901760
    %1386 = vmatpush1.msra.mxu0 %v1385
    %1387 = vmatprep.subr.mxu0 0.0
    %v1388 = vand.u32 %v129, 4294901760
    %1389 = vmatpush1.msra.mxu0 %v1388
    %1390 = vmatprep.subr.mxu0 0.0
    %v1391 = vand.u32 %v126, 4294901760
    %1392 = vmatpush1.msra.mxu0 %v1391
    %1393 = vmatprep.subr.mxu0 0.0
    %v1394 = vand.u32 %v123, 4294901760
    %1395 = vmatpush1.msra.mxu0 %v1394
    %1396 = vmatprep.subr.mxu0 0.0
    %v1397 = vand.u32 %v120, 4294901760
    %1398 = vmatpush1.msra.mxu0 %v1397
    %1399 = vmatprep.subr.mxu0 0.0
    %v1400 = vand.u32 %v117, 4294901760
    %1401 = vmatpush1.msra.mxu0 %v1400
    %1402 = vmatprep.subr.mxu0 0.0
    %v1403 = vand.u32 %v114, 4294901760
    %1404 = vmatpush1.msra.mxu0 %v1403
    %1405 = vmatprep.subr.mxu0 0.0
    %v1406 = vand.u32 %v111, 4294901760
    %1407 = vmatpush1.msra.mxu0 %v1406
    %1408 = vmatprep.subr.mxu0 0.0
    %v1409 = vand.u32 %v108, 4294901760
    %1410 = vmatpush1.msra.mxu0 %v1409
    %1411 = vmatprep.subr.mxu0 0.0
    %v1412 = vand.u32 %v105, 4294901760
    %1413 = vmatpush1.msra.mxu0 %v1412
    %1414 = vmatprep.subr.mxu0 0.0
    %1415 = vmatpush2.msra.mxu0 0.0
    %1416 = vmatprep.subr.mxu0 0.0
    %1417 = vmatpush2.msra.mxu0 0.0
    %1418 = vmatprep.subr.mxu0 0.0
    %1419 = vmatpush2.msra.mxu0 0.0
    %1420 = vmatprep.subr.mxu0 0.0
    %1421 = vmatpush2.msra.mxu0 0.0
    %1422 = vmatprep.subr.mxu0 0.0
    %1423 = vmatpush2.msra.mxu0 0.0
    %1424 = vmatprep.subr.mxu0 0.0
    %1425 = vmatpush2.msra.mxu0 0.0
    %1426 = vmatprep.subr.mxu0 0.0
    %1427 = vmatpush2.msra.mxu0 0.0
    %1428 = vmatprep.subr.mxu0 0.0
    %1429 = vmatpush2.msra.mxu0 0.0
    %1430 = vmatprep.subr.mxu0 0.0
    %1431 = vmatpush2.msra.mxu0 0.0
    %1432 = vmatprep.subr.mxu0 0.0
    %1433 = vmatpush2.msra.mxu0 0.0
    %1434 = vmatprep.subr.mxu0 0.0
    %1435 = vmatpush2.msra.mxu0 0.0
    %1436 = vmatprep.subr.mxu0 0.0
    %1437 = vmatpush2.msra.mxu0 0.0
    %1438 = vmatprep.subr.mxu0 0.0
    %1439 = vmatpush2.msra.mxu0 0.0
    %1440 = vmatprep.subr.mxu0 0.0
    %1441 = vmatpush2.msra.mxu0 0.0
    %1442 = vmatprep.subr.mxu0 0.0
    %1443 = vmatpush2.msra.mxu0 0.0
    %1444 = vmatprep.subr.mxu0 0.0
    %1445 = vmatpush2.msra.mxu0 0.0
    %1446 = vmatprep.mubr.f32.mxu0 0.0
    %v1447 = vand.u32 %v95, 4294901760
    %v1448 = vsub.f32 %v95, %v1447
    %v1449 = vand.u32 %v1448, 4294901760
    %v1450 = vsub.f32 %v1448, %v1449
    %v1451 = vand.u32 %v1450, 4294901760
    %1452 = vmatmul.mubr.f32.gmra.mxu0 %v1451
    %v1453 = vpop.f32.mrf.mxu0
    %v1454 = vadd.f32 %v164, %v1453
    %v1455 = vpop.f32.mrf.mxu0
    %1456 = vmatprep.mubr.f32.mxu0 0.0
    %v1457 = vand.u32 %v96, 4294901760
    %v1458 = vsub.f32 %v96, %v1457
    %v1459 = vand.u32 %v1458, 4294901760
    %v1460 = vsub.f32 %v1458, %v1459
    %v1461 = vand.u32 %v1460, 4294901760
    %1462 = vmatmul.mubr.f32.gmra.mxu0 %v1461
    %v1463 = vpop.f32.mrf.mxu0
    %v1464 = vadd.f32 %v164, %v1463
    %v1465 = vpop.f32.mrf.mxu0
    %1466 = vmatprep.mubr.f32.mxu0 0.0
    %v1467 = vand.u32 %v97, 4294901760
    %v1468 = vsub.f32 %v97, %v1467
    %v1469 = vand.u32 %v1468, 4294901760
    %v1470 = vsub.f32 %v1468, %v1469
    %v1471 = vand.u32 %v1470, 4294901760
    %1472 = vmatmul.mubr.f32.gmra.mxu0 %v1471
    %v1473 = vpop.f32.mrf.mxu0
    %v1474 = vadd.f32 %v164, %v1473
    %v1475 = vpop.f32.mrf.mxu0
    %1476 = vmatprep.mubr.f32.mxu0 0.0
    %v1477 = vand.u32 %v98, 4294901760
    %v1478 = vsub.f32 %v98, %v1477
    %v1479 = vand.u32 %v1478, 4294901760
    %v1480 = vsub.f32 %v1478, %v1479
    %v1481 = vand.u32 %v1480, 4294901760
    %1482 = vmatmul.mubr.f32.gmra.mxu0 %v1481
    %v1483 = vpop.f32.mrf.mxu0
    %v1484 = vadd.f32 %v164, %v1483
    %v1485 = vpop.f32.mrf.mxu0
    %1486 = vmatprep.mubr.f32.mxu0 0.0
    %v1487 = vand.u32 %v99, 4294901760
    %v1488 = vsub.f32 %v99, %v1487
    %v1489 = vand.u32 %v1488, 4294901760
    %v1490 = vsub.f32 %v1488, %v1489
    %v1491 = vand.u32 %v1490, 4294901760
    %1492 = vmatmul.mubr.f32.gmra.mxu0 %v1491
    %v1493 = vpop.f32.mrf.mxu0
    %v1494 = vadd.f32 %v164, %v1493
    %v1495 = vpop.f32.mrf.mxu0
    %1496 = vmatprep.mubr.f32.mxu0 0.0
    %v1497 = vand.u32 %v100, 4294901760
    %v1498 = vsub.f32 %v100, %v1497
    %v1499 = vand.u32 %v1498, 4294901760
    %v1500 = vsub.f32 %v1498, %v1499
    %v1501 = vand.u32 %v1500, 4294901760
    %1502 = vmatmul.mubr.f32.gmra.mxu0 %v1501
    %v1503 = vpop.f32.mrf.mxu0
    %v1504 = vadd.f32 %v164, %v1503
    %v1505 = vpop.f32.mrf.mxu0
    %1506 = vmatprep.mubr.f32.mxu0 0.0
    %v1507 = vand.u32 %v101, 4294901760
    %v1508 = vsub.f32 %v101, %v1507
    %v1509 = vand.u32 %v1508, 4294901760
    %v1510 = vsub.f32 %v1508, %v1509
    %v1511 = vand.u32 %v1510, 4294901760
    %1512 = vmatmul.mubr.f32.gmra.mxu0 %v1511
    %v1513 = vpop.f32.mrf.mxu0
    %v1514 = vadd.f32 %v164, %v1513
    %v1515 = vpop.f32.mrf.mxu0
    %1516 = vmatprep.mubr.f32.mxu0 0.0
    %v1517 = vand.u32 %v102, 4294901760
    %v1518 = vsub.f32 %v102, %v1517
    %v1519 = vand.u32 %v1518, 4294901760
    %v1520 = vsub.f32 %v1518, %v1519
    %v1521 = vand.u32 %v1520, 4294901760
    %1522 = vmatmul.mubr.f32.gmra.mxu0 %v1521
    %v1523 = vpop.f32.mrf.mxu0
    %v1524 = vadd.f32 %v164, %v1523
    %v1525 = vpop.f32.mrf.mxu0
    %1526 = vdwg.mxu0
    %1527 = vmatprep.subr.mxu0 0.0
    %v1528 = vand.u32 %v150, 4294901760
    %v1529 = vsub.f32 %v150, %v1528
    %v1530 = vand.u32 %v1529, 4294901760
    %v1531 = vsub.f32 %v1529, %v1530
    %v1532 = vand.u32 %v1531, 4294901760
    %1533 = vmatpush1.msra.mxu0 %v1532
    %1534 = vmatprep.subr.mxu0 0.0
    %v1535 = vand.u32 %v147, 4294901760
    %v1536 = vsub.f32 %v147, %v1535
    %v1537 = vand.u32 %v1536, 4294901760
    %v1538 = vsub.f32 %v1536, %v1537
    %v1539 = vand.u32 %v1538, 4294901760
    %1540 = vmatpush1.msra.mxu0 %v1539
    %1541 = vmatprep.subr.mxu0 0.0
    %v1542 = vand.u32 %v144, 4294901760
    %v1543 = vsub.f32 %v144, %v1542
    %v1544 = vand.u32 %v1543, 4294901760
    %v1545 = vsub.f32 %v1543, %v1544
    %v1546 = vand.u32 %v1545, 4294901760
    %1547 = vmatpush1.msra.mxu0 %v1546
    %1548 = vmatprep.subr.mxu0 0.0
    %v1549 = vand.u32 %v141, 4294901760
    %v1550 = vsub.f32 %v141, %v1549
    %v1551 = vand.u32 %v1550, 4294901760
    %v1552 = vsub.f32 %v1550, %v1551
    %v1553 = vand.u32 %v1552, 4294901760
    %1554 = vmatpush1.msra.mxu0 %v1553
    %1555 = vmatprep.subr.mxu0 0.0
    %v1556 = vand.u32 %v138, 4294901760
    %v1557 = vsub.f32 %v138, %v1556
    %v1558 = vand.u32 %v1557, 4294901760
    %v1559 = vsub.f32 %v1557, %v1558
    %v1560 = vand.u32 %v1559, 4294901760
    %1561 = vmatpush1.msra.mxu0 %v1560
    %1562 = vmatprep.subr.mxu0 0.0
    %v1563 = vand.u32 %v135, 4294901760
    %v1564 = vsub.f32 %v135, %v1563
    %v1565 = vand.u32 %v1564, 4294901760
    %v1566 = vsub.f32 %v1564, %v1565
    %v1567 = vand.u32 %v1566, 4294901760
    %1568 = vmatpush1.msra.mxu0 %v1567
    %1569 = vmatprep.subr.mxu0 0.0
    %v1570 = vand.u32 %v132, 4294901760
    %v1571 = vsub.f32 %v132, %v1570
    %v1572 = vand.u32 %v1571, 4294901760
    %v1573 = vsub.f32 %v1571, %v1572
    %v1574 = vand.u32 %v1573, 4294901760
    %1575 = vmatpush1.msra.mxu0 %v1574
    %1576 = vmatprep.subr.mxu0 0.0
    %v1577 = vand.u32 %v129, 4294901760
    %v1578 = vsub.f32 %v129, %v1577
    %v1579 = vand.u32 %v1578, 4294901760
    %v1580 = vsub.f32 %v1578, %v1579
    %v1581 = vand.u32 %v1580, 4294901760
    %1582 = vmatpush1.msra.mxu0 %v1581
    %1583 = vmatprep.subr.mxu0 0.0
    %v1584 = vand.u32 %v126, 4294901760
    %v1585 = vsub.f32 %v126, %v1584
    %v1586 = vand.u32 %v1585, 4294901760
    %v1587 = vsub.f32 %v1585, %v1586
    %v1588 = vand.u32 %v1587, 4294901760
    %1589 = vmatpush1.msra.mxu0 %v1588
    %1590 = vmatprep.subr.mxu0 0.0
    %v1591 = vand.u32 %v123, 4294901760
    %v1592 = vsub.f32 %v123, %v1591
    %v1593 = vand.u32 %v1592, 4294901760
    %v1594 = vsub.f32 %v1592, %v1593
    %v1595 = vand.u32 %v1594, 4294901760
    %1596 = vmatpush1.msra.mxu0 %v1595
    %1597 = vmatprep.subr.mxu0 0.0
    %v1598 = vand.u32 %v120, 4294901760
    %v1599 = vsub.f32 %v120, %v1598
    %v1600 = vand.u32 %v1599, 4294901760
    %v1601 = vsub.f32 %v1599, %v1600
    %v1602 = vand.u32 %v1601, 4294901760
    %1603 = vmatpush1.msra.mxu0 %v1602
    %1604 = vmatprep.subr.mxu0 0.0
    %v1605 = vand.u32 %v117, 4294901760
    %v1606 = vsub.f32 %v117, %v1605
    %v1607 = vand.u32 %v1606, 4294901760
    %v1608 = vsub.f32 %v1606, %v1607
    %v1609 = vand.u32 %v1608, 4294901760
    %1610 = vmatpush1.msra.mxu0 %v1609
    %1611 = vmatprep.subr.mxu0 0.0
    %v1612 = vand.u32 %v114, 4294901760
    %v1613 = vsub.f32 %v114, %v1612
    %v1614 = vand.u32 %v1613, 4294901760
    %v1615 = vsub.f32 %v1613, %v1614
    %v1616 = vand.u32 %v1615, 4294901760
    %1617 = vmatpush1.msra.mxu0 %v1616
    %1618 = vmatprep.subr.mxu0 0.0
    %v1619 = vand.u32 %v111, 4294901760
    %v1620 = vsub.f32 %v111, %v1619
    %v1621 = vand.u32 %v1620, 4294901760
    %v1622 = vsub.f32 %v1620, %v1621
    %v1623 = vand.u32 %v1622, 4294901760
    %1624 = vmatpush1.msra.mxu0 %v1623
    %1625 = vmatprep.subr.mxu0 0.0
    %v1626 = vand.u32 %v108, 4294901760
    %v1627 = vsub.f32 %v108, %v1626
    %v1628 = vand.u32 %v1627, 4294901760
    %v1629 = vsub.f32 %v1627, %v1628
    %v1630 = vand.u32 %v1629, 4294901760
    %1631 = vmatpush1.msra.mxu0 %v1630
    %1632 = vmatprep.subr.mxu0 0.0
    %v1633 = vand.u32 %v105, 4294901760
    %v1634 = vsub.f32 %v105, %v1633
    %v1635 = vand.u32 %v1634, 4294901760
    %v1636 = vsub.f32 %v1634, %v1635
    %v1637 = vand.u32 %v1636, 4294901760
    %1638 = vmatpush1.msra.mxu0 %v1637
    %1639 = vmatprep.subr.mxu0 0.0
    %1640 = vmatpush2.msra.mxu0 0.0
    %1641 = vmatprep.subr.mxu0 0.0
    %1642 = vmatpush2.msra.mxu0 0.0
    %1643 = vmatprep.subr.mxu0 0.0
    %1644 = vmatpush2.msra.mxu0 0.0
    %1645 = vmatprep.subr.mxu0 0.0
    %1646 = vmatpush2.msra.mxu0 0.0
    %1647 = vmatprep.subr.mxu0 0.0
    %1648 = vmatpush2.msra.mxu0 0.0
    %1649 = vmatprep.subr.mxu0 0.0
    %1650 = vmatpush2.msra.mxu0 0.0
    %1651 = vmatprep.subr.mxu0 0.0
    %1652 = vmatpush2.msra.mxu0 0.0
    %1653 = vmatprep.subr.mxu0 0.0
    %1654 = vmatpush2.msra.mxu0 0.0
    %1655 = vmatprep.subr.mxu0 0.0
    %1656 = vmatpush2.msra.mxu0 0.0
    %1657 = vmatprep.subr.mxu0 0.0
    %1658 = vmatpush2.msra.mxu0 0.0
    %1659 = vmatprep.subr.mxu0 0.0
    %1660 = vmatpush2.msra.mxu0 0.0
    %1661 = vmatprep.subr.mxu0 0.0
    %1662 = vmatpush2.msra.mxu0 0.0
    %1663 = vmatprep.subr.mxu0 0.0
    %1664 = vmatpush2.msra.mxu0 0.0
    %1665 = vmatprep.subr.mxu0 0.0
    %1666 = vmatpush2.msra.mxu0 0.0
    %1667 = vmatprep.subr.mxu0 0.0
    %1668 = vmatpush2.msra.mxu0 0.0
    %1669 = vmatprep.subr.mxu0 0.0
    %1670 = vmatpush2.msra.mxu0 0.0
    %1671 = vmatprep.mubr.f32.mxu0 0.0
    %v1672 = vand.u32 %v95, 4294901760
    %1673 = vmatmul.mubr.f32.gmra.mxu0 %v1672
    %v1674 = vpop.f32.mrf.mxu0
    %v1675 = vadd.f32 %v1454, %v1674
    %v1676 = vpop.f32.mrf.mxu0
    %1677 = vmatprep.mubr.f32.mxu0 0.0
    %v1678 = vand.u32 %v96, 4294901760
    %1679 = vmatmul.mubr.f32.gmra.mxu0 %v1678
    %v1680 = vpop.f32.mrf.mxu0
    %v1681 = vadd.f32 %v1464, %v1680
    %v1682 = vpop.f32.mrf.mxu0
    %1683 = vmatprep.mubr.f32.mxu0 0.0
    %v1684 = vand.u32 %v97, 4294901760
    %1685 = vmatmul.mubr.f32.gmra.mxu0 %v1684
    %v1686 = vpop.f32.mrf.mxu0
    %v1687 = vadd.f32 %v1474, %v1686
    %v1688 = vpop.f32.mrf.mxu0
    %1689 = vmatprep.mubr.f32.mxu0 0.0
    %v1690 = vand.u32 %v98, 4294901760
    %1691 = vmatmul.mubr.f32.gmra.mxu0 %v1690
    %v1692 = vpop.f32.mrf.mxu0
    %v1693 = vadd.f32 %v1484, %v1692
    %v1694 = vpop.f32.mrf.mxu0
    %1695 = vmatprep.mubr.f32.mxu0 0.0
    %v1696 = vand.u32 %v99, 4294901760
    %1697 = vmatmul.mubr.f32.gmra.mxu0 %v1696
    %v1698 = vpop.f32.mrf.mxu0
    %v1699 = vadd.f32 %v1494, %v1698
    %v1700 = vpop.f32.mrf.mxu0
    %1701 = vmatprep.mubr.f32.mxu0 0.0
    %v1702 = vand.u32 %v100, 4294901760
    %1703 = vmatmul.mubr.f32.gmra.mxu0 %v1702
    %v1704 = vpop.f32.mrf.mxu0
    %v1705 = vadd.f32 %v1504, %v1704
    %v1706 = vpop.f32.mrf.mxu0
    %1707 = vmatprep.mubr.f32.mxu0 0.0
    %v1708 = vand.u32 %v101, 4294901760
    %1709 = vmatmul.mubr.f32.gmra.mxu0 %v1708
    %v1710 = vpop.f32.mrf.mxu0
    %v1711 = vadd.f32 %v1514, %v1710
    %v1712 = vpop.f32.mrf.mxu0
    %1713 = vmatprep.mubr.f32.mxu0 0.0
    %v1714 = vand.u32 %v102, 4294901760
    %1715 = vmatmul.mubr.f32.gmra.mxu0 %v1714
    %v1716 = vpop.f32.mrf.mxu0
    %v1717 = vadd.f32 %v1524, %v1716
    %v1718 = vpop.f32.mrf.mxu0
    %1719 = vdwg.mxu0
    %1720 = vmatprep.subr.mxu0 0.0
    %v1721 = vand.u32 %v150, 4294901760
    %v1722 = vsub.f32 %v150, %v1721
    %1723 = vmatpush1.msra.mxu0 %v1722
    %1724 = vmatprep.subr.mxu0 0.0
    %v1725 = vand.u32 %v147, 4294901760
    %v1726 = vsub.f32 %v147, %v1725
    %1727 = vmatpush1.msra.mxu0 %v1726
    %1728 = vmatprep.subr.mxu0 0.0
    %v1729 = vand.u32 %v144, 4294901760
    %v1730 = vsub.f32 %v144, %v1729
    %1731 = vmatpush1.msra.mxu0 %v1730
    %1732 = vmatprep.subr.mxu0 0.0
    %v1733 = vand.u32 %v141, 4294901760
    %v1734 = vsub.f32 %v141, %v1733
    %1735 = vmatpush1.msra.mxu0 %v1734
    %1736 = vmatprep.subr.mxu0 0.0
    %v1737 = vand.u32 %v138, 4294901760
    %v1738 = vsub.f32 %v138, %v1737
    %1739 = vmatpush1.msra.mxu0 %v1738
    %1740 = vmatprep.subr.mxu0 0.0
    %v1741 = vand.u32 %v135, 4294901760
    %v1742 = vsub.f32 %v135, %v1741
    %1743 = vmatpush1.msra.mxu0 %v1742
    %1744 = vmatprep.subr.mxu0 0.0
    %v1745 = vand.u32 %v132, 4294901760
    %v1746 = vsub.f32 %v132, %v1745
    %1747 = vmatpush1.msra.mxu0 %v1746
    %1748 = vmatprep.subr.mxu0 0.0
    %v1749 = vand.u32 %v129, 4294901760
    %v1750 = vsub.f32 %v129, %v1749
    %1751 = vmatpush1.msra.mxu0 %v1750
    %1752 = vmatprep.subr.mxu0 0.0
    %v1753 = vand.u32 %v126, 4294901760
    %v1754 = vsub.f32 %v126, %v1753
    %1755 = vmatpush1.msra.mxu0 %v1754
    %1756 = vmatprep.subr.mxu0 0.0
    %v1757 = vand.u32 %v123, 4294901760
    %v1758 = vsub.f32 %v123, %v1757
    %1759 = vmatpush1.msra.mxu0 %v1758
    %1760 = vmatprep.subr.mxu0 0.0
    %v1761 = vand.u32 %v120, 4294901760
    %v1762 = vsub.f32 %v120, %v1761
    %1763 = vmatpush1.msra.mxu0 %v1762
    %1764 = vmatprep.subr.mxu0 0.0
    %v1765 = vand.u32 %v117, 4294901760
    %v1766 = vsub.f32 %v117, %v1765
    %1767 = vmatpush1.msra.mxu0 %v1766
    %1768 = vmatprep.subr.mxu0 0.0
    %v1769 = vand.u32 %v114, 4294901760
    %v1770 = vsub.f32 %v114, %v1769
    %1771 = vmatpush1.msra.mxu0 %v1770
    %1772 = vmatprep.subr.mxu0 0.0
    %v1773 = vand.u32 %v111, 4294901760
    %v1774 = vsub.f32 %v111, %v1773
    %1775 = vmatpush1.msra.mxu0 %v1774
    %1776 = vmatprep.subr.mxu0 0.0
    %v1777 = vand.u32 %v108, 4294901760
    %v1778 = vsub.f32 %v108, %v1777
    %1779 = vmatpush1.msra.mxu0 %v1778
    %1780 = vmatprep.subr.mxu0 0.0
    %v1781 = vand.u32 %v105, 4294901760
    %v1782 = vsub.f32 %v105, %v1781
    %1783 = vmatpush1.msra.mxu0 %v1782
    %1784 = vmatprep.subr.mxu0 0.0
    %1785 = vmatpush2.msra.mxu0 0.0
    %1786 = vmatprep.subr.mxu0 0.0
    %1787 = vmatpush2.msra.mxu0 0.0
    %1788 = vmatprep.subr.mxu0 0.0
    %1789 = vmatpush2.msra.mxu0 0.0
    %1790 = vmatprep.subr.mxu0 0.0
    %1791 = vmatpush2.msra.mxu0 0.0
    %1792 = vmatprep.subr.mxu0 0.0
    %1793 = vmatpush2.msra.mxu0 0.0
    %1794 = vmatprep.subr.mxu0 0.0
    %1795 = vmatpush2.msra.mxu0 0.0
    %1796 = vmatprep.subr.mxu0 0.0
    %1797 = vmatpush2.msra.mxu0 0.0
    %1798 = vmatprep.subr.mxu0 0.0
    %1799 = vmatpush2.msra.mxu0 0.0
    %1800 = vmatprep.subr.mxu0 0.0
    %1801 = vmatpush2.msra.mxu0 0.0
    %1802 = vmatprep.subr.mxu0 0.0
    %1803 = vmatpush2.msra.mxu0 0.0
    %1804 = vmatprep.subr.mxu0 0.0
    %1805 = vmatpush2.msra.mxu0 0.0
    %1806 = vmatprep.subr.mxu0 0.0
    %1807 = vmatpush2.msra.mxu0 0.0
    %1808 = vmatprep.subr.mxu0 0.0
    %1809 = vmatpush2.msra.mxu0 0.0
    %1810 = vmatprep.subr.mxu0 0.0
    %1811 = vmatpush2.msra.mxu0 0.0
    %1812 = vmatprep.subr.mxu0 0.0
    %1813 = vmatpush2.msra.mxu0 0.0
    %1814 = vmatprep.subr.mxu0 0.0
    %1815 = vmatpush2.msra.mxu0 0.0
    %1816 = vmatprep.mubr.f32.mxu0 0.0
    %v1817 = vand.u32 %v95, 4294901760
    %v1818 = vsub.f32 %v95, %v1817
    %1819 = vmatmul.mubr.f32.gmra.mxu0 %v1818
    %v1820 = vpop.f32.mrf.mxu0
    %v1821 = vadd.f32 %v1675, %v1820
    %v1822 = vpop.f32.mrf.mxu0
    %1823 = vmatprep.mubr.f32.mxu0 0.0
    %v1824 = vand.u32 %v96, 4294901760
    %v1825 = vsub.f32 %v96, %v1824
    %1826 = vmatmul.mubr.f32.gmra.mxu0 %v1825
    %v1827 = vpop.f32.mrf.mxu0
    %v1828 = vadd.f32 %v1681, %v1827
    %v1829 = vpop.f32.mrf.mxu0
    %1830 = vmatprep.mubr.f32.mxu0 0.0
    %v1831 = vand.u32 %v97, 4294901760
    %v1832 = vsub.f32 %v97, %v1831
    %1833 = vmatmul.mubr.f32.gmra.mxu0 %v1832
    %v1834 = vpop.f32.mrf.mxu0
    %v1835 = vadd.f32 %v1687, %v1834
    %v1836 = vpop.f32.mrf.mxu0
    %1837 = vmatprep.mubr.f32.mxu0 0.0
    %v1838 = vand.u32 %v98, 4294901760
    %v1839 = vsub.f32 %v98, %v1838
    %1840 = vmatmul.mubr.f32.gmra.mxu0 %v1839
    %v1841 = vpop.f32.mrf.mxu0
    %v1842 = vadd.f32 %v1693, %v1841
    %v1843 = vpop.f32.mrf.mxu0
    %1844 = vmatprep.mubr.f32.mxu0 0.0
    %v1845 = vand.u32 %v99, 4294901760
    %v1846 = vsub.f32 %v99, %v1845
    %1847 = vmatmul.mubr.f32.gmra.mxu0 %v1846
    %v1848 = vpop.f32.mrf.mxu0
    %v1849 = vadd.f32 %v1699, %v1848
    %v1850 = vpop.f32.mrf.mxu0
    %1851 = vmatprep.mubr.f32.mxu0 0.0
    %v1852 = vand.u32 %v100, 4294901760
    %v1853 = vsub.f32 %v100, %v1852
    %1854 = vmatmul.mubr.f32.gmra.mxu0 %v1853
    %v1855 = vpop.f32.mrf.mxu0
    %v1856 = vadd.f32 %v1705, %v1855
    %v1857 = vpop.f32.mrf.mxu0
    %1858 = vmatprep.mubr.f32.mxu0 0.0
    %v1859 = vand.u32 %v101, 4294901760
    %v1860 = vsub.f32 %v101, %v1859
    %1861 = vmatmul.mubr.f32.gmra.mxu0 %v1860
    %v1862 = vpop.f32.mrf.mxu0
    %v1863 = vadd.f32 %v1711, %v1862
    %v1864 = vpop.f32.mrf.mxu0
    %1865 = vmatprep.mubr.f32.mxu0 0.0
    %v1866 = vand.u32 %v102, 4294901760
    %v1867 = vsub.f32 %v102, %v1866
    %1868 = vmatmul.mubr.f32.gmra.mxu0 %v1867
    %v1869 = vpop.f32.mrf.mxu0
    %v1870 = vadd.f32 %v1717, %v1869
    %v1871 = vpop.f32.mrf.mxu0
    %1872 = vdwg.mxu0
    %1873 = vmatprep.subr.mxu0 0.0
    %v1874 = vand.u32 %v150, 4294901760
    %1875 = vmatpush1.msra.mxu0 %v1874
    %1876 = vmatprep.subr.mxu0 0.0
    %v1877 = vand.u32 %v147, 4294901760
    %1878 = vmatpush1.msra.mxu0 %v1877
    %1879 = vmatprep.subr.mxu0 0.0
    %v1880 = vand.u32 %v144, 4294901760
    %1881 = vmatpush1.msra.mxu0 %v1880
    %1882 = vmatprep.subr.mxu0 0.0
    %v1883 = vand.u32 %v141, 4294901760
    %1884 = vmatpush1.msra.mxu0 %v1883
    %1885 = vmatprep.subr.mxu0 0.0
    %v1886 = vand.u32 %v138, 4294901760
    %1887 = vmatpush1.msra.mxu0 %v1886
    %1888 = vmatprep.subr.mxu0 0.0
    %v1889 = vand.u32 %v135, 4294901760
    %1890 = vmatpush1.msra.mxu0 %v1889
    %1891 = vmatprep.subr.mxu0 0.0
    %v1892 = vand.u32 %v132, 4294901760
    %1893 = vmatpush1.msra.mxu0 %v1892
    %1894 = vmatprep.subr.mxu0 0.0
    %v1895 = vand.u32 %v129, 4294901760
    %1896 = vmatpush1.msra.mxu0 %v1895
    %1897 = vmatprep.subr.mxu0 0.0
    %v1898 = vand.u32 %v126, 4294901760
    %1899 = vmatpush1.msra.mxu0 %v1898
    %1900 = vmatprep.subr.mxu0 0.0
    %v1901 = vand.u32 %v123, 4294901760
    %1902 = vmatpush1.msra.mxu0 %v1901
    %1903 = vmatprep.subr.mxu0 0.0
    %v1904 = vand.u32 %v120, 4294901760
    %1905 = vmatpush1.msra.mxu0 %v1904
    %1906 = vmatprep.subr.mxu0 0.0
    %v1907 = vand.u32 %v117, 4294901760
    %1908 = vmatpush1.msra.mxu0 %v1907
    %1909 = vmatprep.subr.mxu0 0.0
    %v1910 = vand.u32 %v114, 4294901760
    %1911 = vmatpush1.msra.mxu0 %v1910
    %1912 = vmatprep.subr.mxu0 0.0
    %v1913 = vand.u32 %v111, 4294901760
    %1914 = vmatpush1.msra.mxu0 %v1913
    %1915 = vmatprep.subr.mxu0 0.0
    %v1916 = vand.u32 %v108, 4294901760
    %1917 = vmatpush1.msra.mxu0 %v1916
    %1918 = vmatprep.subr.mxu0 0.0
    %v1919 = vand.u32 %v105, 4294901760
    %1920 = vmatpush1.msra.mxu0 %v1919
    %1921 = vmatprep.subr.mxu0 0.0
    %1922 = vmatpush2.msra.mxu0 0.0
    %1923 = vmatprep.subr.mxu0 0.0
    %1924 = vmatpush2.msra.mxu0 0.0
    %1925 = vmatprep.subr.mxu0 0.0
    %1926 = vmatpush2.msra.mxu0 0.0
    %1927 = vmatprep.subr.mxu0 0.0
    %1928 = vmatpush2.msra.mxu0 0.0
    %1929 = vmatprep.subr.mxu0 0.0
    %1930 = vmatpush2.msra.mxu0 0.0
    %1931 = vmatprep.subr.mxu0 0.0
    %1932 = vmatpush2.msra.mxu0 0.0
    %1933 = vmatprep.subr.mxu0 0.0
    %1934 = vmatpush2.msra.mxu0 0.0
    %1935 = vmatprep.subr.mxu0 0.0
    %1936 = vmatpush2.msra.mxu0 0.0
    %1937 = vmatprep.subr.mxu0 0.0
    %1938 = vmatpush2.msra.mxu0 0.0
    %1939 = vmatprep.subr.mxu0 0.0
    %1940 = vmatpush2.msra.mxu0 0.0
    %1941 = vmatprep.subr.mxu0 0.0
    %1942 = vmatpush2.msra.mxu0 0.0
    %1943 = vmatprep.subr.mxu0 0.0
    %1944 = vmatpush2.msra.mxu0 0.0
    %1945 = vmatprep.subr.mxu0 0.0
    %1946 = vmatpush2.msra.mxu0 0.0
    %1947 = vmatprep.subr.mxu0 0.0
    %1948 = vmatpush2.msra.mxu0 0.0
    %1949 = vmatprep.subr.mxu0 0.0
    %1950 = vmatpush2.msra.mxu0 0.0
    %1951 = vmatprep.subr.mxu0 0.0
    %1952 = vmatpush2.msra.mxu0 0.0
    %1953 = vmatprep.mubr.f32.mxu0 0.0
    %v1954 = vand.u32 %v95, 4294901760
    %v1955 = vsub.f32 %v95, %v1954
    %v1956 = vand.u32 %v1955, 4294901760
    %1957 = vmatmul.mubr.f32.gmra.mxu0 %v1956
    %v1958 = vpop.f32.mrf.mxu0
    %v1959 = vadd.f32 %v1821, %v1958
    %v1960 = vpop.f32.mrf.mxu0
    %1961 = vmatprep.mubr.f32.mxu0 0.0
    %v1962 = vand.u32 %v96, 4294901760
    %v1963 = vsub.f32 %v96, %v1962
    %v1964 = vand.u32 %v1963, 4294901760
    %1965 = vmatmul.mubr.f32.gmra.mxu0 %v1964
    %v1966 = vpop.f32.mrf.mxu0
    %v1967 = vadd.f32 %v1828, %v1966
    %v1968 = vpop.f32.mrf.mxu0
    %1969 = vmatprep.mubr.f32.mxu0 0.0
    %v1970 = vand.u32 %v97, 4294901760
    %v1971 = vsub.f32 %v97, %v1970
    %v1972 = vand.u32 %v1971, 4294901760
    %1973 = vmatmul.mubr.f32.gmra.mxu0 %v1972
    %v1974 = vpop.f32.mrf.mxu0
    %v1975 = vadd.f32 %v1835, %v1974
    %v1976 = vpop.f32.mrf.mxu0
    %1977 = vmatprep.mubr.f32.mxu0 0.0
    %v1978 = vand.u32 %v98, 4294901760
    %v1979 = vsub.f32 %v98, %v1978
    %v1980 = vand.u32 %v1979, 4294901760
    %1981 = vmatmul.mubr.f32.gmra.mxu0 %v1980
    %v1982 = vpop.f32.mrf.mxu0
    %v1983 = vadd.f32 %v1842, %v1982
    %v1984 = vpop.f32.mrf.mxu0
    %1985 = vmatprep.mubr.f32.mxu0 0.0
    %v1986 = vand.u32 %v99, 4294901760
    %v1987 = vsub.f32 %v99, %v1986
    %v1988 = vand.u32 %v1987, 4294901760
    %1989 = vmatmul.mubr.f32.gmra.mxu0 %v1988
    %v1990 = vpop.f32.mrf.mxu0
    %v1991 = vadd.f32 %v1849, %v1990
    %v1992 = vpop.f32.mrf.mxu0
    %1993 = vmatprep.mubr.f32.mxu0 0.0
    %v1994 = vand.u32 %v100, 4294901760
    %v1995 = vsub.f32 %v100, %v1994
    %v1996 = vand.u32 %v1995, 4294901760
    %1997 = vmatmul.mubr.f32.gmra.mxu0 %v1996
    %v1998 = vpop.f32.mrf.mxu0
    %v1999 = vadd.f32 %v1856, %v1998
    %v2000 = vpop.f32.mrf.mxu0
    %2001 = vmatprep.mubr.f32.mxu0 0.0
    %v2002 = vand.u32 %v101, 4294901760
    %v2003 = vsub.f32 %v101, %v2002
    %v2004 = vand.u32 %v2003, 4294901760
    %2005 = vmatmul.mubr.f32.gmra.mxu0 %v2004
    %v2006 = vpop.f32.mrf.mxu0
    %v2007 = vadd.f32 %v1863, %v2006
    %v2008 = vpop.f32.mrf.mxu0
    %2009 = vmatprep.mubr.f32.mxu0 0.0
    %v2010 = vand.u32 %v102, 4294901760
    %v2011 = vsub.f32 %v102, %v2010
    %v2012 = vand.u32 %v2011, 4294901760
    %2013 = vmatmul.mubr.f32.gmra.mxu0 %v2012
    %v2014 = vpop.f32.mrf.mxu0
    %v2015 = vadd.f32 %v1870, %v2014
    %v2016 = vpop.f32.mrf.mxu0
    %2017 = vdwg.mxu0
    %2018 = vmatprep.subr.mxu0 0.0
    %v2019 = vand.u32 %v150, 4294901760
    %v2020 = vsub.f32 %v150, %v2019
    %v2021 = vand.u32 %v2020, 4294901760
    %2022 = vmatpush1.msra.mxu0 %v2021
    %2023 = vmatprep.subr.mxu0 0.0
    %v2024 = vand.u32 %v147, 4294901760
    %v2025 = vsub.f32 %v147, %v2024
    %v2026 = vand.u32 %v2025, 4294901760
    %2027 = vmatpush1.msra.mxu0 %v2026
    %2028 = vmatprep.subr.mxu0 0.0
    %v2029 = vand.u32 %v144, 4294901760
    %v2030 = vsub.f32 %v144, %v2029
    %v2031 = vand.u32 %v2030, 4294901760
    %2032 = vmatpush1.msra.mxu0 %v2031
    %2033 = vmatprep.subr.mxu0 0.0
    %v2034 = vand.u32 %v141, 4294901760
    %v2035 = vsub.f32 %v141, %v2034
    %v2036 = vand.u32 %v2035, 4294901760
    %2037 = vmatpush1.msra.mxu0 %v2036
    %2038 = vmatprep.subr.mxu0 0.0
    %v2039 = vand.u32 %v138, 4294901760
    %v2040 = vsub.f32 %v138, %v2039
    %v2041 = vand.u32 %v2040, 4294901760
    %2042 = vmatpush1.msra.mxu0 %v2041
    %2043 = vmatprep.subr.mxu0 0.0
    %v2044 = vand.u32 %v135, 4294901760
    %v2045 = vsub.f32 %v135, %v2044
    %v2046 = vand.u32 %v2045, 4294901760
    %2047 = vmatpush1.msra.mxu0 %v2046
    %2048 = vmatprep.subr.mxu0 0.0
    %v2049 = vand.u32 %v132, 4294901760
    %v2050 = vsub.f32 %v132, %v2049
    %v2051 = vand.u32 %v2050, 4294901760
    %2052 = vmatpush1.msra.mxu0 %v2051
    %2053 = vmatprep.subr.mxu0 0.0
    %v2054 = vand.u32 %v129, 4294901760
    %v2055 = vsub.f32 %v129, %v2054
    %v2056 = vand.u32 %v2055, 4294901760
    %2057 = vmatpush1.msra.mxu0 %v2056
    %2058 = vmatprep.subr.mxu0 0.0
    %v2059 = vand.u32 %v126, 4294901760
    %v2060 = vsub.f32 %v126, %v2059
    %v2061 = vand.u32 %v2060, 4294901760
    %2062 = vmatpush1.msra.mxu0 %v2061
    %2063 = vmatprep.subr.mxu0 0.0
    %v2064 = vand.u32 %v123, 4294901760
    %v2065 = vsub.f32 %v123, %v2064
    %v2066 = vand.u32 %v2065, 4294901760
    %2067 = vmatpush1.msra.mxu0 %v2066
    %2068 = vmatprep.subr.mxu0 0.0
    %v2069 = vand.u32 %v120, 4294901760
    %v2070 = vsub.f32 %v120, %v2069
    %v2071 = vand.u32 %v2070, 4294901760
    %2072 = vmatpush1.msra.mxu0 %v2071
    %2073 = vmatprep.subr.mxu0 0.0
    %v2074 = vand.u32 %v117, 4294901760
    %v2075 = vsub.f32 %v117, %v2074
    %v2076 = vand.u32 %v2075, 4294901760
    %2077 = vmatpush1.msra.mxu0 %v2076
    %2078 = vmatprep.subr.mxu0 0.0
    %v2079 = vand.u32 %v114, 4294901760
    %v2080 = vsub.f32 %v114, %v2079
    %v2081 = vand.u32 %v2080, 4294901760
    %2082 = vmatpush1.msra.mxu0 %v2081
    %2083 = vmatprep.subr.mxu0 0.0
    %v2084 = vand.u32 %v111, 4294901760
    %v2085 = vsub.f32 %v111, %v2084
    %v2086 = vand.u32 %v2085, 4294901760
    %2087 = vmatpush1.msra.mxu0 %v2086
    %2088 = vmatprep.subr.mxu0 0.0
    %v2089 = vand.u32 %v108, 4294901760
    %v2090 = vsub.f32 %v108, %v2089
    %v2091 = vand.u32 %v2090, 4294901760
    %2092 = vmatpush1.msra.mxu0 %v2091
    %2093 = vmatprep.subr.mxu0 0.0
    %v2094 = vand.u32 %v105, 4294901760
    %v2095 = vsub.f32 %v105, %v2094
    %v2096 = vand.u32 %v2095, 4294901760
    %2097 = vmatpush1.msra.mxu0 %v2096
    %2098 = vmatprep.subr.mxu0 0.0
    %2099 = vmatpush2.msra.mxu0 0.0
    %2100 = vmatprep.subr.mxu0 0.0
    %2101 = vmatpush2.msra.mxu0 0.0
    %2102 = vmatprep.subr.mxu0 0.0
    %2103 = vmatpush2.msra.mxu0 0.0
    %2104 = vmatprep.subr.mxu0 0.0
    %2105 = vmatpush2.msra.mxu0 0.0
    %2106 = vmatprep.subr.mxu0 0.0
    %2107 = vmatpush2.msra.mxu0 0.0
    %2108 = vmatprep.subr.mxu0 0.0
    %2109 = vmatpush2.msra.mxu0 0.0
    %2110 = vmatprep.subr.mxu0 0.0
    %2111 = vmatpush2.msra.mxu0 0.0
    %2112 = vmatprep.subr.mxu0 0.0
    %2113 = vmatpush2.msra.mxu0 0.0
    %2114 = vmatprep.subr.mxu0 0.0
    %2115 = vmatpush2.msra.mxu0 0.0
    %2116 = vmatprep.subr.mxu0 0.0
    %2117 = vmatpush2.msra.mxu0 0.0
    %2118 = vmatprep.subr.mxu0 0.0
    %2119 = vmatpush2.msra.mxu0 0.0
    %2120 = vmatprep.subr.mxu0 0.0
    %2121 = vmatpush2.msra.mxu0 0.0
    %2122 = vmatprep.subr.mxu0 0.0
    %2123 = vmatpush2.msra.mxu0 0.0
    %2124 = vmatprep.subr.mxu0 0.0
    %2125 = vmatpush2.msra.mxu0 0.0
    %2126 = vmatprep.subr.mxu0 0.0
    %2127 = vmatpush2.msra.mxu0 0.0
    %2128 = vmatprep.subr.mxu0 0.0
    %2129 = vmatpush2.msra.mxu0 0.0
    %2130 = vmatprep.mubr.f32.mxu0 0.0
    %v2131 = vand.u32 %v95, 4294901760
    %2132 = vmatmul.mubr.f32.gmra.mxu0 %v2131
    %v2133 = vpop.f32.mrf.mxu0
    %v2134 = vadd.f32 %v1959, %v2133
    %v2135 = vpop.f32.mrf.mxu0
    %2136 = vmatprep.mubr.f32.mxu0 0.0
    %v2137 = vand.u32 %v96, 4294901760
    %2138 = vmatmul.mubr.f32.gmra.mxu0 %v2137
    %v2139 = vpop.f32.mrf.mxu0
    %v2140 = vadd.f32 %v1967, %v2139
    %v2141 = vpop.f32.mrf.mxu0
    %2142 = vmatprep.mubr.f32.mxu0 0.0
    %v2143 = vand.u32 %v97, 4294901760
    %2144 = vmatmul.mubr.f32.gmra.mxu0 %v2143
    %v2145 = vpop.f32.mrf.mxu0
    %v2146 = vadd.f32 %v1975, %v2145
    %v2147 = vpop.f32.mrf.mxu0
    %2148 = vmatprep.mubr.f32.mxu0 0.0
    %v2149 = vand.u32 %v98, 4294901760
    %2150 = vmatmul.mubr.f32.gmra.mxu0 %v2149
    %v2151 = vpop.f32.mrf.mxu0
    %v2152 = vadd.f32 %v1983, %v2151
    %v2153 = vpop.f32.mrf.mxu0
    %2154 = vmatprep.mubr.f32.mxu0 0.0
    %v2155 = vand.u32 %v99, 4294901760
    %2156 = vmatmul.mubr.f32.gmra.mxu0 %v2155
    %v2157 = vpop.f32.mrf.mxu0
    %v2158 = vadd.f32 %v1991, %v2157
    %v2159 = vpop.f32.mrf.mxu0
    %2160 = vmatprep.mubr.f32.mxu0 0.0
    %v2161 = vand.u32 %v100, 4294901760
    %2162 = vmatmul.mubr.f32.gmra.mxu0 %v2161
    %v2163 = vpop.f32.mrf.mxu0
    %v2164 = vadd.f32 %v1999, %v2163
    %v2165 = vpop.f32.mrf.mxu0
    %2166 = vmatprep.mubr.f32.mxu0 0.0
    %v2167 = vand.u32 %v101, 4294901760
    %2168 = vmatmul.mubr.f32.gmra.mxu0 %v2167
    %v2169 = vpop.f32.mrf.mxu0
    %v2170 = vadd.f32 %v2007, %v2169
    %v2171 = vpop.f32.mrf.mxu0
    %2172 = vmatprep.mubr.f32.mxu0 0.0
    %v2173 = vand.u32 %v102, 4294901760
    %2174 = vmatmul.mubr.f32.gmra.mxu0 %v2173
    %v2175 = vpop.f32.mrf.mxu0
    %v2176 = vadd.f32 %v2015, %v2175
    %v2177 = vpop.f32.mrf.mxu0
    %2178 = vdwg.mxu0
    %2179 = vmatprep.subr.mxu0 0.0
    %v2180 = vand.u32 %v150, 4294901760
    %2181 = vmatpush1.msra.mxu0 %v2180
    %2182 = vmatprep.subr.mxu0 0.0
    %v2183 = vand.u32 %v147, 4294901760
    %2184 = vmatpush1.msra.mxu0 %v2183
    %2185 = vmatprep.subr.mxu0 0.0
    %v2186 = vand.u32 %v144, 4294901760
    %2187 = vmatpush1.msra.mxu0 %v2186
    %2188 = vmatprep.subr.mxu0 0.0
    %v2189 = vand.u32 %v141, 4294901760
    %2190 = vmatpush1.msra.mxu0 %v2189
    %2191 = vmatprep.subr.mxu0 0.0
    %v2192 = vand.u32 %v138, 4294901760
    %2193 = vmatpush1.msra.mxu0 %v2192
    %2194 = vmatprep.subr.mxu0 0.0
    %v2195 = vand.u32 %v135, 4294901760
    %2196 = vmatpush1.msra.mxu0 %v2195
    %2197 = vmatprep.subr.mxu0 0.0
    %v2198 = vand.u32 %v132, 4294901760
    %2199 = vmatpush1.msra.mxu0 %v2198
    %2200 = vmatprep.subr.mxu0 0.0
    %v2201 = vand.u32 %v129, 4294901760
    %2202 = vmatpush1.msra.mxu0 %v2201
    %2203 = vmatprep.subr.mxu0 0.0
    %v2204 = vand.u32 %v126, 4294901760
    %2205 = vmatpush1.msra.mxu0 %v2204
    %2206 = vmatprep.subr.mxu0 0.0
    %v2207 = vand.u32 %v123, 4294901760
    %2208 = vmatpush1.msra.mxu0 %v2207
    %2209 = vmatprep.subr.mxu0 0.0
    %v2210 = vand.u32 %v120, 4294901760
    %2211 = vmatpush1.msra.mxu0 %v2210
    %2212 = vmatprep.subr.mxu0 0.0
    %v2213 = vand.u32 %v117, 4294901760
    %2214 = vmatpush1.msra.mxu0 %v2213
    %2215 = vmatprep.subr.mxu0 0.0
    %v2216 = vand.u32 %v114, 4294901760
    %2217 = vmatpush1.msra.mxu0 %v2216
    %2218 = vmatprep.subr.mxu0 0.0
    %v2219 = vand.u32 %v111, 4294901760
    %2220 = vmatpush1.msra.mxu0 %v2219
    %2221 = vmatprep.subr.mxu0 0.0
    %v2222 = vand.u32 %v108, 4294901760
    %2223 = vmatpush1.msra.mxu0 %v2222
    %2224 = vmatprep.subr.mxu0 0.0
    %v2225 = vand.u32 %v105, 4294901760
    %2226 = vmatpush1.msra.mxu0 %v2225
    %2227 = vmatprep.subr.mxu0 0.0
    %2228 = vmatpush2.msra.mxu0 0.0
    %2229 = vmatprep.subr.mxu0 0.0
    %2230 = vmatpush2.msra.mxu0 0.0
    %2231 = vmatprep.subr.mxu0 0.0
    %2232 = vmatpush2.msra.mxu0 0.0
    %2233 = vmatprep.subr.mxu0 0.0
    %2234 = vmatpush2.msra.mxu0 0.0
    %2235 = vmatprep.subr.mxu0 0.0
    %2236 = vmatpush2.msra.mxu0 0.0
    %2237 = vmatprep.subr.mxu0 0.0
    %2238 = vmatpush2.msra.mxu0 0.0
    %2239 = vmatprep.subr.mxu0 0.0
    %2240 = vmatpush2.msra.mxu0 0.0
    %2241 = vmatprep.subr.mxu0 0.0
    %2242 = vmatpush2.msra.mxu0 0.0
    %2243 = vmatprep.subr.mxu0 0.0
    %2244 = vmatpush2.msra.mxu0 0.0
    %2245 = vmatprep.subr.mxu0 0.0
    %2246 = vmatpush2.msra.mxu0 0.0
    %2247 = vmatprep.subr.mxu0 0.0
    %2248 = vmatpush2.msra.mxu0 0.0
    %2249 = vmatprep.subr.mxu0 0.0
    %2250 = vmatpush2.msra.mxu0 0.0
    %2251 = vmatprep.subr.mxu0 0.0
    %2252 = vmatpush2.msra.mxu0 0.0
    %2253 = vmatprep.subr.mxu0 0.0
    %2254 = vmatpush2.msra.mxu0 0.0
    %2255 = vmatprep.subr.mxu0 0.0
    %2256 = vmatpush2.msra.mxu0 0.0
    %2257 = vmatprep.subr.mxu0 0.0
    %2258 = vmatpush2.msra.mxu0 0.0
    %2259 = vmatprep.mubr.f32.mxu0 0.0
    %v2260 = vand.u32 %v95, 4294901760
    %2261 = vmatmul.mubr.f32.gmra.mxu0 %v2260
    %v2262 = vpop.f32.mrf.mxu0
    %v2263 = vadd.f32 %v2134, %v2262
    %v2264 = vpop.f32.mrf.mxu0
    %2265 = vmatprep.mubr.f32.mxu0 0.0
    %v2266 = vand.u32 %v96, 4294901760
    %2267 = vmatmul.mubr.f32.gmra.mxu0 %v2266
    %v2268 = vpop.f32.mrf.mxu0
    %v2269 = vadd.f32 %v2140, %v2268
    %v2270 = vpop.f32.mrf.mxu0
    %2271 = vmatprep.mubr.f32.mxu0 0.0
    %v2272 = vand.u32 %v97, 4294901760
    %2273 = vmatmul.mubr.f32.gmra.mxu0 %v2272
    %v2274 = vpop.f32.mrf.mxu0
    %v2275 = vadd.f32 %v2146, %v2274
    %v2276 = vpop.f32.mrf.mxu0
    %2277 = vmatprep.mubr.f32.mxu0 0.0
    %v2278 = vand.u32 %v98, 4294901760
    %2279 = vmatmul.mubr.f32.gmra.mxu0 %v2278
    %v2280 = vpop.f32.mrf.mxu0
    %v2281 = vadd.f32 %v2152, %v2280
    %v2282 = vpop.f32.mrf.mxu0
    %2283 = vmatprep.mubr.f32.mxu0 0.0
    %v2284 = vand.u32 %v99, 4294901760
    %2285 = vmatmul.mubr.f32.gmra.mxu0 %v2284
    %v2286 = vpop.f32.mrf.mxu0
    %v2287 = vadd.f32 %v2158, %v2286
    %v2288 = vpop.f32.mrf.mxu0
    %2289 = vmatprep.mubr.f32.mxu0 0.0
    %v2290 = vand.u32 %v100, 4294901760
    %2291 = vmatmul.mubr.f32.gmra.mxu0 %v2290
    %v2292 = vpop.f32.mrf.mxu0
    %v2293 = vadd.f32 %v2164, %v2292
    %v2294 = vpop.f32.mrf.mxu0
    %2295 = vmatprep.mubr.f32.mxu0 0.0
    %v2296 = vand.u32 %v101, 4294901760
    %2297 = vmatmul.mubr.f32.gmra.mxu0 %v2296
    %v2298 = vpop.f32.mrf.mxu0
    %v2299 = vadd.f32 %v2170, %v2298
    %v2300 = vpop.f32.mrf.mxu0
    %2301 = vmatprep.mubr.f32.mxu0 0.0
    %v2302 = vand.u32 %v102, 4294901760
    %2303 = vmatmul.mubr.f32.gmra.mxu0 %v2302
    %v2304 = vpop.f32.mrf.mxu0
    %v2305 = vadd.f32 %v2176, %v2304
    %v2306 = vpop.f32.mrf.mxu0
    %2307 = vdwg.mxu0
    %2308 = vst [vmem:[#allocation2] sm:$0xff] %v1313
    %2309 = vst [vmem:[#allocation2 + $0x8] sm:$0xff] %v1315
    %2310 = vst [vmem:[#allocation2 + $0x10] sm:$0xff] %v2263
    %2311 = vst [vmem:[#allocation2 + $0x18] sm:$0xff] %v1320
    %2312 = vst [vmem:[#allocation2 + $0x20] sm:$0xff] %v1322
    %2313 = vst [vmem:[#allocation2 + $0x28] sm:$0xff] %v2269
    %2314 = vst [vmem:[#allocation2 + $0x30] sm:$0xff] %v1327
    %2315 = vst [vmem:[#allocation2 + $0x38] sm:$0xff] %v1329
    %2316 = vst [vmem:[#allocation2 + $0x40] sm:$0xff] %v2275
    %2317 = vst [vmem:[#allocation2 + $0x48] sm:$0xff] %v1334
    %2318 = vst [vmem:[#allocation2 + $0x50] sm:$0xff] %v1336
    %2319 = vst [vmem:[#allocation2 + $0x58] sm:$0xff] %v2281
    %2320 = vst [vmem:[#allocation2 + $0x60] sm:$0xff] %v1341
    %2321 = vst [vmem:[#allocation2 + $0x68] sm:$0xff] %v1343
    %2322 = vst [vmem:[#allocation2 + $0x70] sm:$0xff] %v2287
    %2323 = vst [vmem:[#allocation2 + $0x78] sm:$0xff] %v1348
    %2324 = vst [vmem:[#allocation2 + $0x80] sm:$0xff] %v1350
    %2325 = vst [vmem:[#allocation2 + $0x88] sm:$0xff] %v2293
    %2326 = vst [vmem:[#allocation2 + $0x90] sm:$0xff] %v1355
    %2327 = vst [vmem:[#allocation2 + $0x98] sm:$0xff] %v1357
    %2328 = vst [vmem:[#allocation2 + $0xa0] sm:$0xff] %v2299
    %2329 = vst [vmem:[#allocation2 + $0xa8] sm:$0xff] %v1362
    %2330 = vst [vmem:[#allocation2 + $0xb0] sm:$0xff] %v1364
    %2331 = vst [vmem:[#allocation2 + $0xb8] sm:$0xff] %v2305
    %v2332 = vld [vmem:[#allocation11] sm:$0xff]
    %v2333 = vld [vmem:[#allocation11 + $0x8] sm:$0xff]
    %v2334 = vld [vmem:[#allocation11 + $0x10] sm:$0xff]
    %v2335 = vld [vmem:[#allocation11 + $0x18] sm:$0xff]
    %v2336 = vld [vmem:[#allocation11 + $0x20] sm:$0xff]
    %v2337 = vld [vmem:[#allocation11 + $0x28] sm:$0xff]
    %v2338 = vld [vmem:[#allocation11 + $0x30] sm:$0xff]
    %v2339 = vld [vmem:[#allocation11 + $0x38] sm:$0xff]
    %v2340 = vld [vmem:[#allocation11 + $0x40] sm:$0xff]
    %v2341 = vld [vmem:[#allocation11 + $0x48] sm:$0xff]
    %v2342 = vld [vmem:[#allocation11 + $0x50] sm:$0xff]
    %v2343 = vld [vmem:[#allocation11 + $0x58] sm:$0xff]
    %v2344 = vld [vmem:[#allocation11 + $0x60] sm:$0xff]
    %v2345 = vld [vmem:[#allocation11 + $0x68] sm:$0xff]
    %v2346 = vld [vmem:[#allocation11 + $0x70] sm:$0xff]
    %v2347 = vld [vmem:[#allocation11 + $0x78] sm:$0xff]
    %v2348 = vld [vmem:[#allocation11 + $0x80] sm:$0xff]
    %v2349 = vld [vmem:[#allocation11 + $0x88] sm:$0xff]
    %v2350 = vld [vmem:[#allocation11 + $0x90] sm:$0xff]
    %v2351 = vld [vmem:[#allocation11 + $0x98] sm:$0xff]
    %v2352 = vld [vmem:[#allocation11 + $0xa0] sm:$0xff]
    %v2353 = vld [vmem:[#allocation11 + $0xa8] sm:$0xff]
    %v2354 = vld [vmem:[#allocation11 + $0xb0] sm:$0xff]
    %v2355 = vld [vmem:[#allocation11 + $0xb8] sm:$0xff]
    %v2356 = vld [vmem:[#allocation11 + $0xc0] sm:$0xff]
    %v2357 = vld [vmem:[#allocation11 + $0xc8] sm:$0xff]
    %v2358 = vld [vmem:[#allocation11 + $0xd0] sm:$0xff]
    %v2359 = vld [vmem:[#allocation11 + $0xd8] sm:$0xff]
    %v2360 = vld [vmem:[#allocation11 + $0xe0] sm:$0xff]
    %v2361 = vld [vmem:[#allocation11 + $0xe8] sm:$0xff]
    %v2362 = vld [vmem:[#allocation11 + $0xf0] sm:$0xff]
    %v2363 = vld [vmem:[#allocation11 + $0xf8] sm:$0xff]
    %v2364 = vld [vmem:[#allocation12] sm:$0xff]
    %v2365 = vld [vmem:[#allocation12 + $0x8] sm:$0xff]
    %v2366 = vld [vmem:[#allocation12 + $0x10] sm:$0xff]
    %v2367 = vld [vmem:[#allocation12 + $0x18] sm:$0xff]
    %v2368 = vld [vmem:[#allocation12 + $0x20] sm:$0xff]
    %v2369 = vld [vmem:[#allocation12 + $0x28] sm:$0xff]
    %v2370 = vld [vmem:[#allocation12 + $0x30] sm:$0xff]
    %v2371 = vld [vmem:[#allocation12 + $0x38] sm:$0xff]
    %v2372 = vld [vmem:[#allocation12 + $0x40] sm:$0xff]
    %v2373 = vld [vmem:[#allocation12 + $0x48] sm:$0xff]
    %v2374 = vld [vmem:[#allocation12 + $0x50] sm:$0xff]
    %v2375 = vld [vmem:[#allocation12 + $0x58] sm:$0xff]
    %v2376 = vld [vmem:[#allocation12 + $0x60] sm:$0xff]
    %v2377 = vld [vmem:[#allocation12 + $0x68] sm:$0xff]
    %v2378 = vld [vmem:[#allocation12 + $0x70] sm:$0xff]
    %v2379 = vld [vmem:[#allocation12 + $0x78] sm:$0xff]
    %v2380 = vld [vmem:[%s5] sm:$0x1]
    %v2382 = vlaneseq
    %v2383 = vshrl.u32 %v2382, 7
    %v2384 = vsub.s32 0, %v2383
    %v2385 = vrot.slane %v2380, %v2384
    %v2387 = vld [vmem:[%s6] sm:$0x1]
    %v2389 = vlaneseq
    %v2390 = vshrl.u32 %v2389, 7
    %v2391 = vsub.s32 0, %v2390
    %v2392 = vrot.slane %v2387, %v2391
    %v2394 = vld [vmem:[#allocation3] sm:$0xff]
    loop: start=0, step=1, limit=4
    $region58: #{tpu_custom_call.1} parent=1 // loop_pre_header
      _
    $region59: #{tpu_custom_call.1} parent=1 // loop_header
      %s2396 = sphi 0, %s2400
      %p2397 = scmp.ge.s32.totalorder %s2396, 4
      %v2401 = vphi %v2394, %v5463
    $region60: #{tpu_custom_call.1} parent=1 // loop_header_branch
      %2399 = sbr.rel (%p2397) target = $region64
    $region61: #{tpu_custom_call.1} parent=1 // loop_body
      %s2402 = smul.u32 %s2396, 2
      %s2403 = smul.u32 %s2402, 3
      %s2404 = smul.addr %s2403, 8
      %s2405 = scalar_lea.vmem [#allocation2], %s2404
      %v2406 = vld [vmem:[%s2405] sm:$0xff]
      %v2407 = vld [vmem:[%s2405 + $0x8] sm:$0xff]
      %v2408 = vld [vmem:[%s2405 + $0x10] sm:$0xff]
      %v2409 = vand.u32 %v2363, 4294901760
      %2410 = vmatprep.subr.mxu0 %v2409
      %v2411 = vand.u32 %v2362, 4294901760
      %2412 = vmatpush1.msra.mxu0 %v2411
      %v2413 = vand.u32 %v2361, 4294901760
      %2414 = vmatprep.subr.mxu0 %v2413
      %v2415 = vand.u32 %v2360, 4294901760
      %2416 = vmatpush1.msra.mxu0 %v2415
      %v2417 = vand.u32 %v2359, 4294901760
      %2418 = vmatprep.subr.mxu0 %v2417
      %v2419 = vand.u32 %v2358, 4294901760
      %2420 = vmatpush1.msra.mxu0 %v2419
      %v2421 = vand.u32 %v2357, 4294901760
      %2422 = vmatprep.subr.mxu0 %v2421
      %v2423 = vand.u32 %v2356, 4294901760
      %2424 = vmatpush1.msra.mxu0 %v2423
      %v2425 = vand.u32 %v2355, 4294901760
      %2426 = vmatprep.subr.mxu0 %v2425
      %v2427 = vand.u32 %v2354, 4294901760
      %2428 = vmatpush1.msra.mxu0 %v2427
      %v2429 = vand.u32 %v2353, 4294901760
      %2430 = vmatprep.subr.mxu0 %v2429
      %v2431 = vand.u32 %v2352, 4294901760
      %2432 = vmatpush1.msra.mxu0 %v2431
      %v2433 = vand.u32 %v2351, 4294901760
      %2434 = vmatprep.subr.mxu0 %v2433
      %v2435 = vand.u32 %v2350, 4294901760
      %2436 = vmatpush1.msra.mxu0 %v2435
      %v2437 = vand.u32 %v2349, 4294901760
      %2438 = vmatprep.subr.mxu0 %v2437
      %v2439 = vand.u32 %v2348, 4294901760
      %2440 = vmatpush1.msra.mxu0 %v2439
      %v2441 = vand.u32 %v2347, 4294901760
      %2442 = vmatprep.subr.mxu0 %v2441
      %v2443 = vand.u32 %v2346, 4294901760
      %2444 = vmatpush1.msra.mxu0 %v2443
      %v2445 = vand.u32 %v2345, 4294901760
      %2446 = vmatprep.subr.mxu0 %v2445
      %v2447 = vand.u32 %v2344, 4294901760
      %2448 = vmatpush1.msra.mxu0 %v2447
      %v2449 = vand.u32 %v2343, 4294901760
      %2450 = vmatprep.subr.mxu0 %v2449
      %v2451 = vand.u32 %v2342, 4294901760
      %2452 = vmatpush1.msra.mxu0 %v2451
      %v2453 = vand.u32 %v2341, 4294901760
      %2454 = vmatprep.subr.mxu0 %v2453
      %v2455 = vand.u32 %v2340, 4294901760
      %2456 = vmatpush1.msra.mxu0 %v2455
      %v2457 = vand.u32 %v2339, 4294901760
      %2458 = vmatprep.subr.mxu0 %v2457
      %v2459 = vand.u32 %v2338, 4294901760
      %2460 = vmatpush1.msra.mxu0 %v2459
      %v2461 = vand.u32 %v2337, 4294901760
      %2462 = vmatprep.subr.mxu0 %v2461
      %v2463 = vand.u32 %v2336, 4294901760
      %2464 = vmatpush1.msra.mxu0 %v2463
      %v2465 = vand.u32 %v2335, 4294901760
      %2466 = vmatprep.subr.mxu0 %v2465
      %v2467 = vand.u32 %v2334, 4294901760
      %2468 = vmatpush1.msra.mxu0 %v2467
      %v2469 = vand.u32 %v2333, 4294901760
      %2470 = vmatprep.subr.mxu0 %v2469
      %v2471 = vand.u32 %v2332, 4294901760
      %2472 = vmatpush1.msra.mxu0 %v2471
      %2473 = vmatprep.subr.mxu0 0.0
      %2474 = vmatpush2.msra.mxu0 0.0
      %2475 = vmatprep.subr.mxu0 0.0
      %2476 = vmatpush2.msra.mxu0 0.0
      %2477 = vmatprep.subr.mxu0 0.0
      %2478 = vmatpush2.msra.mxu0 0.0
      %2479 = vmatprep.subr.mxu0 0.0
      %2480 = vmatpush2.msra.mxu0 0.0
      %2481 = vmatprep.subr.mxu0 0.0
      %2482 = vmatpush2.msra.mxu0 0.0
      %2483 = vmatprep.subr.mxu0 0.0
      %2484 = vmatpush2.msra.mxu0 0.0
      %2485 = vmatprep.subr.mxu0 0.0
      %2486 = vmatpush2.msra.mxu0 0.0
      %2487 = vmatprep.subr.mxu0 0.0
      %2488 = vmatpush2.msra.mxu0 0.0
      %2489 = vmatprep.subr.mxu0 0.0
      %2490 = vmatpush2.msra.mxu0 0.0
      %2491 = vmatprep.subr.mxu0 0.0
      %2492 = vmatpush2.msra.mxu0 0.0
      %2493 = vmatprep.subr.mxu0 0.0
      %2494 = vmatpush2.msra.mxu0 0.0
      %2495 = vmatprep.subr.mxu0 0.0
      %2496 = vmatpush2.msra.mxu0 0.0
      %2497 = vmatprep.subr.mxu0 0.0
      %2498 = vmatpush2.msra.mxu0 0.0
      %2499 = vmatprep.subr.mxu0 0.0
      %2500 = vmatpush2.msra.mxu0 0.0
      %2501 = vmatprep.subr.mxu0 0.0
      %2502 = vmatpush2.msra.mxu0 0.0
      %2503 = vmatprep.subr.mxu0 0.0
      %2504 = vmatpush2.msra.mxu0 0.0
      %2505 = vmatprep.mubr.f32.mxu0 0.0
      %v2506 = vand.u32 %v2401, 4294901760
      %v2507 = vsub.f32 %v2401, %v2506
      %v2508 = vand.u32 %v2507, 4294901760
      %v2509 = vsub.f32 %v2507, %v2508
      %v2510 = vand.u32 %v2509, 4294901760
      %2511 = vmatmul.mubr.f32.gmra.mxu0 %v2510
      %v2512 = vpop.f32.mrf.mxu0
      %v2513 = vadd.f32 0.0, %v2512
      %v2514 = vpop.f32.mrf.mxu0
      %v2515 = vadd.f32 0.0, %v2514
      %2516 = vdwg.mxu0
      %v2517 = vand.u32 %v2363, 4294901760
      %v2518 = vsub.f32 %v2363, %v2517
      %v2519 = vand.u32 %v2518, 4294901760
      %v2520 = vsub.f32 %v2518, %v2519
      %v2521 = vand.u32 %v2520, 4294901760
      %2522 = vmatprep.subr.mxu0 %v2521
      %v2523 = vand.u32 %v2362, 4294901760
      %v2524 = vsub.f32 %v2362, %v2523
      %v2525 = vand.u32 %v2524, 4294901760
      %v2526 = vsub.f32 %v2524, %v2525
      %v2527 = vand.u32 %v2526, 4294901760
      %2528 = vmatpush1.msra.mxu0 %v2527
      %v2529 = vand.u32 %v2361, 4294901760
      %v2530 = vsub.f32 %v2361, %v2529
      %v2531 = vand.u32 %v2530, 4294901760
      %v2532 = vsub.f32 %v2530, %v2531
      %v2533 = vand.u32 %v2532, 4294901760
      %2534 = vmatprep.subr.mxu0 %v2533
      %v2535 = vand.u32 %v2360, 4294901760
      %v2536 = vsub.f32 %v2360, %v2535
      %v2537 = vand.u32 %v2536, 4294901760
      %v2538 = vsub.f32 %v2536, %v2537
      %v2539 = vand.u32 %v2538, 4294901760
      %2540 = vmatpush1.msra.mxu0 %v2539
      %v2541 = vand.u32 %v2359, 4294901760
      %v2542 = vsub.f32 %v2359, %v2541
      %v2543 = vand.u32 %v2542, 4294901760
      %v2544 = vsub.f32 %v2542, %v2543
      %v2545 = vand.u32 %v2544, 4294901760
      %2546 = vmatprep.subr.mxu0 %v2545
      %v2547 = vand.u32 %v2358, 4294901760
      %v2548 = vsub.f32 %v2358, %v2547
      %v2549 = vand.u32 %v2548, 4294901760
      %v2550 = vsub.f32 %v2548, %v2549
      %v2551 = vand.u32 %v2550, 4294901760
      %2552 = vmatpush1.msra.mxu0 %v2551
      %v2553 = vand.u32 %v2357, 4294901760
      %v2554 = vsub.f32 %v2357, %v2553
      %v2555 = vand.u32 %v2554, 4294901760
      %v2556 = vsub.f32 %v2554, %v2555
      %v2557 = vand.u32 %v2556, 4294901760
      %2558 = vmatprep.subr.mxu0 %v2557
      %v2559 = vand.u32 %v2356, 4294901760
      %v2560 = vsub.f32 %v2356, %v2559
      %v2561 = vand.u32 %v2560, 4294901760
      %v2562 = vsub.f32 %v2560, %v2561
      %v2563 = vand.u32 %v2562, 4294901760
      %2564 = vmatpush1.msra.mxu0 %v2563
      %v2565 = vand.u32 %v2355, 4294901760
      %v2566 = vsub.f32 %v2355, %v2565
      %v2567 = vand.u32 %v2566, 4294901760
      %v2568 = vsub.f32 %v2566, %v2567
      %v2569 = vand.u32 %v2568, 4294901760
      %2570 = vmatprep.subr.mxu0 %v2569
      %v2571 = vand.u32 %v2354, 4294901760
      %v2572 = vsub.f32 %v2354, %v2571
      %v2573 = vand.u32 %v2572, 4294901760
      %v2574 = vsub.f32 %v2572, %v2573
      %v2575 = vand.u32 %v2574, 4294901760
      %2576 = vmatpush1.msra.mxu0 %v2575
      %v2577 = vand.u32 %v2353, 4294901760
      %v2578 = vsub.f32 %v2353, %v2577
      %v2579 = vand.u32 %v2578, 4294901760
      %v2580 = vsub.f32 %v2578, %v2579
      %v2581 = vand.u32 %v2580, 4294901760
      %2582 = vmatprep.subr.mxu0 %v2581
      %v2583 = vand.u32 %v2352, 4294901760
      %v2584 = vsub.f32 %v2352, %v2583
      %v2585 = vand.u32 %v2584, 4294901760
      %v2586 = vsub.f32 %v2584, %v2585
      %v2587 = vand.u32 %v2586, 4294901760
      %2588 = vmatpush1.msra.mxu0 %v2587
      %v2589 = vand.u32 %v2351, 4294901760
      %v2590 = vsub.f32 %v2351, %v2589
      %v2591 = vand.u32 %v2590, 4294901760
      %v2592 = vsub.f32 %v2590, %v2591
      %v2593 = vand.u32 %v2592, 4294901760
      %2594 = vmatprep.subr.mxu0 %v2593
      %v2595 = vand.u32 %v2350, 4294901760
      %v2596 = vsub.f32 %v2350, %v2595
      %v2597 = vand.u32 %v2596, 4294901760
      %v2598 = vsub.f32 %v2596, %v2597
      %v2599 = vand.u32 %v2598, 4294901760
      %2600 = vmatpush1.msra.mxu0 %v2599
      %v2601 = vand.u32 %v2349, 4294901760
      %v2602 = vsub.f32 %v2349, %v2601
      %v2603 = vand.u32 %v2602, 4294901760
      %v2604 = vsub.f32 %v2602, %v2603
      %v2605 = vand.u32 %v2604, 4294901760
      %2606 = vmatprep.subr.mxu0 %v2605
      %v2607 = vand.u32 %v2348, 4294901760
      %v2608 = vsub.f32 %v2348, %v2607
      %v2609 = vand.u32 %v2608, 4294901760
      %v2610 = vsub.f32 %v2608, %v2609
      %v2611 = vand.u32 %v2610, 4294901760
      %2612 = vmatpush1.msra.mxu0 %v2611
      %v2613 = vand.u32 %v2347, 4294901760
      %v2614 = vsub.f32 %v2347, %v2613
      %v2615 = vand.u32 %v2614, 4294901760
      %v2616 = vsub.f32 %v2614, %v2615
      %v2617 = vand.u32 %v2616, 4294901760
      %2618 = vmatprep.subr.mxu0 %v2617
      %v2619 = vand.u32 %v2346, 4294901760
      %v2620 = vsub.f32 %v2346, %v2619
      %v2621 = vand.u32 %v2620, 4294901760
      %v2622 = vsub.f32 %v2620, %v2621
      %v2623 = vand.u32 %v2622, 4294901760
      %2624 = vmatpush1.msra.mxu0 %v2623
      %v2625 = vand.u32 %v2345, 4294901760
      %v2626 = vsub.f32 %v2345, %v2625
      %v2627 = vand.u32 %v2626, 4294901760
      %v2628 = vsub.f32 %v2626, %v2627
      %v2629 = vand.u32 %v2628, 4294901760
      %2630 = vmatprep.subr.mxu0 %v2629
      %v2631 = vand.u32 %v2344, 4294901760
      %v2632 = vsub.f32 %v2344, %v2631
      %v2633 = vand.u32 %v2632, 4294901760
      %v2634 = vsub.f32 %v2632, %v2633
      %v2635 = vand.u32 %v2634, 4294901760
      %2636 = vmatpush1.msra.mxu0 %v2635
      %v2637 = vand.u32 %v2343, 4294901760
      %v2638 = vsub.f32 %v2343, %v2637
      %v2639 = vand.u32 %v2638, 4294901760
      %v2640 = vsub.f32 %v2638, %v2639
      %v2641 = vand.u32 %v2640, 4294901760
      %2642 = vmatprep.subr.mxu0 %v2641
      %v2643 = vand.u32 %v2342, 4294901760
      %v2644 = vsub.f32 %v2342, %v2643
      %v2645 = vand.u32 %v2644, 4294901760
      %v2646 = vsub.f32 %v2644, %v2645
      %v2647 = vand.u32 %v2646, 4294901760
      %2648 = vmatpush1.msra.mxu0 %v2647
      %v2649 = vand.u32 %v2341, 4294901760
      %v2650 = vsub.f32 %v2341, %v2649
      %v2651 = vand.u32 %v2650, 4294901760
      %v2652 = vsub.f32 %v2650, %v2651
      %v2653 = vand.u32 %v2652, 4294901760
      %2654 = vmatprep.subr.mxu0 %v2653
      %v2655 = vand.u32 %v2340, 4294901760
      %v2656 = vsub.f32 %v2340, %v2655
      %v2657 = vand.u32 %v2656, 4294901760
      %v2658 = vsub.f32 %v2656, %v2657
      %v2659 = vand.u32 %v2658, 4294901760
      %2660 = vmatpush1.msra.mxu0 %v2659
      %v2661 = vand.u32 %v2339, 4294901760
      %v2662 = vsub.f32 %v2339, %v2661
      %v2663 = vand.u32 %v2662, 4294901760
      %v2664 = vsub.f32 %v2662, %v2663
      %v2665 = vand.u32 %v2664, 4294901760
      %2666 = vmatprep.subr.mxu0 %v2665
      %v2667 = vand.u32 %v2338, 4294901760
      %v2668 = vsub.f32 %v2338, %v2667
      %v2669 = vand.u32 %v2668, 4294901760
      %v2670 = vsub.f32 %v2668, %v2669
      %v2671 = vand.u32 %v2670, 4294901760
      %2672 = vmatpush1.msra.mxu0 %v2671
      %v2673 = vand.u32 %v2337, 4294901760
      %v2674 = vsub.f32 %v2337, %v2673
      %v2675 = vand.u32 %v2674, 4294901760
      %v2676 = vsub.f32 %v2674, %v2675
      %v2677 = vand.u32 %v2676, 4294901760
      %2678 = vmatprep.subr.mxu0 %v2677
      %v2679 = vand.u32 %v2336, 4294901760
      %v2680 = vsub.f32 %v2336, %v2679
      %v2681 = vand.u32 %v2680, 4294901760
      %v2682 = vsub.f32 %v2680, %v2681
      %v2683 = vand.u32 %v2682, 4294901760
      %2684 = vmatpush1.msra.mxu0 %v2683
      %v2685 = vand.u32 %v2335, 4294901760
      %v2686 = vsub.f32 %v2335, %v2685
      %v2687 = vand.u32 %v2686, 4294901760
      %v2688 = vsub.f32 %v2686, %v2687
      %v2689 = vand.u32 %v2688, 4294901760
      %2690 = vmatprep.subr.mxu0 %v2689
      %v2691 = vand.u32 %v2334, 4294901760
      %v2692 = vsub.f32 %v2334, %v2691
      %v2693 = vand.u32 %v2692, 4294901760
      %v2694 = vsub.f32 %v2692, %v2693
      %v2695 = vand.u32 %v2694, 4294901760
      %2696 = vmatpush1.msra.mxu0 %v2695
      %v2697 = vand.u32 %v2333, 4294901760
      %v2698 = vsub.f32 %v2333, %v2697
      %v2699 = vand.u32 %v2698, 4294901760
      %v2700 = vsub.f32 %v2698, %v2699
      %v2701 = vand.u32 %v2700, 4294901760
      %2702 = vmatprep.subr.mxu0 %v2701
      %v2703 = vand.u32 %v2332, 4294901760
      %v2704 = vsub.f32 %v2332, %v2703
      %v2705 = vand.u32 %v2704, 4294901760
      %v2706 = vsub.f32 %v2704, %v2705
      %v2707 = vand.u32 %v2706, 4294901760
      %2708 = vmatpush1.msra.mxu0 %v2707
      %2709 = vmatprep.subr.mxu0 0.0
      %2710 = vmatpush2.msra.mxu0 0.0
      %2711 = vmatprep.subr.mxu0 0.0
      %2712 = vmatpush2.msra.mxu0 0.0
      %2713 = vmatprep.subr.mxu0 0.0
      %2714 = vmatpush2.msra.mxu0 0.0
      %2715 = vmatprep.subr.mxu0 0.0
      %2716 = vmatpush2.msra.mxu0 0.0
      %2717 = vmatprep.subr.mxu0 0.0
      %2718 = vmatpush2.msra.mxu0 0.0
      %2719 = vmatprep.subr.mxu0 0.0
      %2720 = vmatpush2.msra.mxu0 0.0
      %2721 = vmatprep.subr.mxu0 0.0
      %2722 = vmatpush2.msra.mxu0 0.0
      %2723 = vmatprep.subr.mxu0 0.0
      %2724 = vmatpush2.msra.mxu0 0.0
      %2725 = vmatprep.subr.mxu0 0.0
      %2726 = vmatpush2.msra.mxu0 0.0
      %2727 = vmatprep.subr.mxu0 0.0
      %2728 = vmatpush2.msra.mxu0 0.0
      %2729 = vmatprep.subr.mxu0 0.0
      %2730 = vmatpush2.msra.mxu0 0.0
      %2731 = vmatprep.subr.mxu0 0.0
      %2732 = vmatpush2.msra.mxu0 0.0
      %2733 = vmatprep.subr.mxu0 0.0
      %2734 = vmatpush2.msra.mxu0 0.0
      %2735 = vmatprep.subr.mxu0 0.0
      %2736 = vmatpush2.msra.mxu0 0.0
      %2737 = vmatprep.subr.mxu0 0.0
      %2738 = vmatpush2.msra.mxu0 0.0
      %2739 = vmatprep.subr.mxu0 0.0
      %2740 = vmatpush2.msra.mxu0 0.0
      %2741 = vmatprep.mubr.f32.mxu0 0.0
      %v2742 = vand.u32 %v2401, 4294901760
      %2743 = vmatmul.mubr.f32.gmra.mxu0 %v2742
      %v2744 = vpop.f32.mrf.mxu0
      %v2745 = vadd.f32 %v2513, %v2744
      %v2746 = vpop.f32.mrf.mxu0
      %v2747 = vadd.f32 %v2515, %v2746
      %2748 = vdwg.mxu0
      %v2749 = vand.u32 %v2363, 4294901760
      %v2750 = vsub.f32 %v2363, %v2749
      %2751 = vmatprep.subr.mxu0 %v2750
      %v2752 = vand.u32 %v2362, 4294901760
      %v2753 = vsub.f32 %v2362, %v2752
      %2754 = vmatpush1.msra.mxu0 %v2753
      %v2755 = vand.u32 %v2361, 4294901760
      %v2756 = vsub.f32 %v2361, %v2755
      %2757 = vmatprep.subr.mxu0 %v2756
      %v2758 = vand.u32 %v2360, 4294901760
      %v2759 = vsub.f32 %v2360, %v2758
      %2760 = vmatpush1.msra.mxu0 %v2759
      %v2761 = vand.u32 %v2359, 4294901760
      %v2762 = vsub.f32 %v2359, %v2761
      %2763 = vmatprep.subr.mxu0 %v2762
      %v2764 = vand.u32 %v2358, 4294901760
      %v2765 = vsub.f32 %v2358, %v2764
      %2766 = vmatpush1.msra.mxu0 %v2765
      %v2767 = vand.u32 %v2357, 4294901760
      %v2768 = vsub.f32 %v2357, %v2767
      %2769 = vmatprep.subr.mxu0 %v2768
      %v2770 = vand.u32 %v2356, 4294901760
      %v2771 = vsub.f32 %v2356, %v2770
      %2772 = vmatpush1.msra.mxu0 %v2771
      %v2773 = vand.u32 %v2355, 4294901760
      %v2774 = vsub.f32 %v2355, %v2773
      %2775 = vmatprep.subr.mxu0 %v2774
      %v2776 = vand.u32 %v2354, 4294901760
      %v2777 = vsub.f32 %v2354, %v2776
      %2778 = vmatpush1.msra.mxu0 %v2777
      %v2779 = vand.u32 %v2353, 4294901760
      %v2780 = vsub.f32 %v2353, %v2779
      %2781 = vmatprep.subr.mxu0 %v2780
      %v2782 = vand.u32 %v2352, 4294901760
      %v2783 = vsub.f32 %v2352, %v2782
      %2784 = vmatpush1.msra.mxu0 %v2783
      %v2785 = vand.u32 %v2351, 4294901760
      %v2786 = vsub.f32 %v2351, %v2785
      %2787 = vmatprep.subr.mxu0 %v2786
      %v2788 = vand.u32 %v2350, 4294901760
      %v2789 = vsub.f32 %v2350, %v2788
      %2790 = vmatpush1.msra.mxu0 %v2789
      %v2791 = vand.u32 %v2349, 4294901760
      %v2792 = vsub.f32 %v2349, %v2791
      %2793 = vmatprep.subr.mxu0 %v2792
      %v2794 = vand.u32 %v2348, 4294901760
      %v2795 = vsub.f32 %v2348, %v2794
      %2796 = vmatpush1.msra.mxu0 %v2795
      %v2797 = vand.u32 %v2347, 4294901760
      %v2798 = vsub.f32 %v2347, %v2797
      %2799 = vmatprep.subr.mxu0 %v2798
      %v2800 = vand.u32 %v2346, 4294901760
      %v2801 = vsub.f32 %v2346, %v2800
      %2802 = vmatpush1.msra.mxu0 %v2801
      %v2803 = vand.u32 %v2345, 4294901760
      %v2804 = vsub.f32 %v2345, %v2803
      %2805 = vmatprep.subr.mxu0 %v2804
      %v2806 = vand.u32 %v2344, 4294901760
      %v2807 = vsub.f32 %v2344, %v2806
      %2808 = vmatpush1.msra.mxu0 %v2807
      %v2809 = vand.u32 %v2343, 4294901760
      %v2810 = vsub.f32 %v2343, %v2809
      %2811 = vmatprep.subr.mxu0 %v2810
      %v2812 = vand.u32 %v2342, 4294901760
      %v2813 = vsub.f32 %v2342, %v2812
      %2814 = vmatpush1.msra.mxu0 %v2813
      %v2815 = vand.u32 %v2341, 4294901760
      %v2816 = vsub.f32 %v2341, %v2815
      %2817 = vmatprep.subr.mxu0 %v2816
      %v2818 = vand.u32 %v2340, 4294901760
      %v2819 = vsub.f32 %v2340, %v2818
      %2820 = vmatpush1.msra.mxu0 %v2819
      %v2821 = vand.u32 %v2339, 4294901760
      %v2822 = vsub.f32 %v2339, %v2821
      %2823 = vmatprep.subr.mxu0 %v2822
      %v2824 = vand.u32 %v2338, 4294901760
      %v2825 = vsub.f32 %v2338, %v2824
      %2826 = vmatpush1.msra.mxu0 %v2825
      %v2827 = vand.u32 %v2337, 4294901760
      %v2828 = vsub.f32 %v2337, %v2827
      %2829 = vmatprep.subr.mxu0 %v2828
      %v2830 = vand.u32 %v2336, 4294901760
      %v2831 = vsub.f32 %v2336, %v2830
      %2832 = vmatpush1.msra.mxu0 %v2831
      %v2833 = vand.u32 %v2335, 4294901760
      %v2834 = vsub.f32 %v2335, %v2833
      %2835 = vmatprep.subr.mxu0 %v2834
      %v2836 = vand.u32 %v2334, 4294901760
      %v2837 = vsub.f32 %v2334, %v2836
      %2838 = vmatpush1.msra.mxu0 %v2837
      %v2839 = vand.u32 %v2333, 4294901760
      %v2840 = vsub.f32 %v2333, %v2839
      %2841 = vmatprep.subr.mxu0 %v2840
      %v2842 = vand.u32 %v2332, 4294901760
      %v2843 = vsub.f32 %v2332, %v2842
      %2844 = vmatpush1.msra.mxu0 %v2843
      %2845 = vmatprep.subr.mxu0 0.0
      %2846 = vmatpush2.msra.mxu0 0.0
      %2847 = vmatprep.subr.mxu0 0.0
      %2848 = vmatpush2.msra.mxu0 0.0
      %2849 = vmatprep.subr.mxu0 0.0
      %2850 = vmatpush2.msra.mxu0 0.0
      %2851 = vmatprep.subr.mxu0 0.0
      %2852 = vmatpush2.msra.mxu0 0.0
      %2853 = vmatprep.subr.mxu0 0.0
      %2854 = vmatpush2.msra.mxu0 0.0
      %2855 = vmatprep.subr.mxu0 0.0
      %2856 = vmatpush2.msra.mxu0 0.0
      %2857 = vmatprep.subr.mxu0 0.0
      %2858 = vmatpush2.msra.mxu0 0.0
      %2859 = vmatprep.subr.mxu0 0.0
      %2860 = vmatpush2.msra.mxu0 0.0
      %2861 = vmatprep.subr.mxu0 0.0
      %2862 = vmatpush2.msra.mxu0 0.0
      %2863 = vmatprep.subr.mxu0 0.0
      %2864 = vmatpush2.msra.mxu0 0.0
      %2865 = vmatprep.subr.mxu0 0.0
      %2866 = vmatpush2.msra.mxu0 0.0
      %2867 = vmatprep.subr.mxu0 0.0
      %2868 = vmatpush2.msra.mxu0 0.0
      %2869 = vmatprep.subr.mxu0 0.0
      %2870 = vmatpush2.msra.mxu0 0.0
      %2871 = vmatprep.subr.mxu0 0.0
      %2872 = vmatpush2.msra.mxu0 0.0
      %2873 = vmatprep.subr.mxu0 0.0
      %2874 = vmatpush2.msra.mxu0 0.0
      %2875 = vmatprep.subr.mxu0 0.0
      %2876 = vmatpush2.msra.mxu0 0.0
      %2877 = vmatprep.mubr.f32.mxu0 0.0
      %v2878 = vand.u32 %v2401, 4294901760
      %v2879 = vsub.f32 %v2401, %v2878
      %2880 = vmatmul.mubr.f32.gmra.mxu0 %v2879
      %v2881 = vpop.f32.mrf.mxu0
      %v2882 = vadd.f32 %v2745, %v2881
      %v2883 = vpop.f32.mrf.mxu0
      %v2884 = vadd.f32 %v2747, %v2883
      %2885 = vdwg.mxu0
      %v2886 = vand.u32 %v2363, 4294901760
      %2887 = vmatprep.subr.mxu0 %v2886
      %v2888 = vand.u32 %v2362, 4294901760
      %2889 = vmatpush1.msra.mxu0 %v2888
      %v2890 = vand.u32 %v2361, 4294901760
      %2891 = vmatprep.subr.mxu0 %v2890
      %v2892 = vand.u32 %v2360, 4294901760
      %2893 = vmatpush1.msra.mxu0 %v2892
      %v2894 = vand.u32 %v2359, 4294901760
      %2895 = vmatprep.subr.mxu0 %v2894
      %v2896 = vand.u32 %v2358, 4294901760
      %2897 = vmatpush1.msra.mxu0 %v2896
      %v2898 = vand.u32 %v2357, 4294901760
      %2899 = vmatprep.subr.mxu0 %v2898
      %v2900 = vand.u32 %v2356, 4294901760
      %2901 = vmatpush1.msra.mxu0 %v2900
      %v2902 = vand.u32 %v2355, 4294901760
      %2903 = vmatprep.subr.mxu0 %v2902
      %v2904 = vand.u32 %v2354, 4294901760
      %2905 = vmatpush1.msra.mxu0 %v2904
      %v2906 = vand.u32 %v2353, 4294901760
      %2907 = vmatprep.subr.mxu0 %v2906
      %v2908 = vand.u32 %v2352, 4294901760
      %2909 = vmatpush1.msra.mxu0 %v2908
      %v2910 = vand.u32 %v2351, 4294901760
      %2911 = vmatprep.subr.mxu0 %v2910
      %v2912 = vand.u32 %v2350, 4294901760
      %2913 = vmatpush1.msra.mxu0 %v2912
      %v2914 = vand.u32 %v2349, 4294901760
      %2915 = vmatprep.subr.mxu0 %v2914
      %v2916 = vand.u32 %v2348, 4294901760
      %2917 = vmatpush1.msra.mxu0 %v2916
      %v2918 = vand.u32 %v2347, 4294901760
      %2919 = vmatprep.subr.mxu0 %v2918
      %v2920 = vand.u32 %v2346, 4294901760
      %2921 = vmatpush1.msra.mxu0 %v2920
      %v2922 = vand.u32 %v2345, 4294901760
      %2923 = vmatprep.subr.mxu0 %v2922
      %v2924 = vand.u32 %v2344, 4294901760
      %2925 = vmatpush1.msra.mxu0 %v2924
      %v2926 = vand.u32 %v2343, 4294901760
      %2927 = vmatprep.subr.mxu0 %v2926
      %v2928 = vand.u32 %v2342, 4294901760
      %2929 = vmatpush1.msra.mxu0 %v2928
      %v2930 = vand.u32 %v2341, 4294901760
      %2931 = vmatprep.subr.mxu0 %v2930
      %v2932 = vand.u32 %v2340, 4294901760
      %2933 = vmatpush1.msra.mxu0 %v2932
      %v2934 = vand.u32 %v2339, 4294901760
      %2935 = vmatprep.subr.mxu0 %v2934
      %v2936 = vand.u32 %v2338, 4294901760
      %2937 = vmatpush1.msra.mxu0 %v2936
      %v2938 = vand.u32 %v2337, 4294901760
      %2939 = vmatprep.subr.mxu0 %v2938
      %v2940 = vand.u32 %v2336, 4294901760
      %2941 = vmatpush1.msra.mxu0 %v2940
      %v2942 = vand.u32 %v2335, 4294901760
      %2943 = vmatprep.subr.mxu0 %v2942
      %v2944 = vand.u32 %v2334, 4294901760
      %2945 = vmatpush1.msra.mxu0 %v2944
      %v2946 = vand.u32 %v2333, 4294901760
      %2947 = vmatprep.subr.mxu0 %v2946
      %v2948 = vand.u32 %v2332, 4294901760
      %2949 = vmatpush1.msra.mxu0 %v2948
      %2950 = vmatprep.subr.mxu0 0.0
      %2951 = vmatpush2.msra.mxu0 0.0
      %2952 = vmatprep.subr.mxu0 0.0
      %2953 = vmatpush2.msra.mxu0 0.0
      %2954 = vmatprep.subr.mxu0 0.0
      %2955 = vmatpush2.msra.mxu0 0.0
      %2956 = vmatprep.subr.mxu0 0.0
      %2957 = vmatpush2.msra.mxu0 0.0
      %2958 = vmatprep.subr.mxu0 0.0
      %2959 = vmatpush2.msra.mxu0 0.0
      %2960 = vmatprep.subr.mxu0 0.0
      %2961 = vmatpush2.msra.mxu0 0.0
      %2962 = vmatprep.subr.mxu0 0.0
      %2963 = vmatpush2.msra.mxu0 0.0
      %2964 = vmatprep.subr.mxu0 0.0
      %2965 = vmatpush2.msra.mxu0 0.0
      %2966 = vmatprep.subr.mxu0 0.0
      %2967 = vmatpush2.msra.mxu0 0.0
      %2968 = vmatprep.subr.mxu0 0.0
      %2969 = vmatpush2.msra.mxu0 0.0
      %2970 = vmatprep.subr.mxu0 0.0
      %2971 = vmatpush2.msra.mxu0 0.0
      %2972 = vmatprep.subr.mxu0 0.0
      %2973 = vmatpush2.msra.mxu0 0.0
      %2974 = vmatprep.subr.mxu0 0.0
      %2975 = vmatpush2.msra.mxu0 0.0
      %2976 = vmatprep.subr.mxu0 0.0
      %2977 = vmatpush2.msra.mxu0 0.0
      %2978 = vmatprep.subr.mxu0 0.0
      %2979 = vmatpush2.msra.mxu0 0.0
      %2980 = vmatprep.subr.mxu0 0.0
      %2981 = vmatpush2.msra.mxu0 0.0
      %2982 = vmatprep.mubr.f32.mxu0 0.0
      %v2983 = vand.u32 %v2401, 4294901760
      %v2984 = vsub.f32 %v2401, %v2983
      %v2985 = vand.u32 %v2984, 4294901760
      %2986 = vmatmul.mubr.f32.gmra.mxu0 %v2985
      %v2987 = vpop.f32.mrf.mxu0
      %v2988 = vadd.f32 %v2882, %v2987
      %v2989 = vpop.f32.mrf.mxu0
      %v2990 = vadd.f32 %v2884, %v2989
      %2991 = vdwg.mxu0
      %v2992 = vand.u32 %v2363, 4294901760
      %v2993 = vsub.f32 %v2363, %v2992
      %v2994 = vand.u32 %v2993, 4294901760
      %2995 = vmatprep.subr.mxu0 %v2994
      %v2996 = vand.u32 %v2362, 4294901760
      %v2997 = vsub.f32 %v2362, %v2996
      %v2998 = vand.u32 %v2997, 4294901760
      %2999 = vmatpush1.msra.mxu0 %v2998
      %v3000 = vand.u32 %v2361, 4294901760
      %v3001 = vsub.f32 %v2361, %v3000
      %v3002 = vand.u32 %v3001, 4294901760
      %3003 = vmatprep.subr.mxu0 %v3002
      %v3004 = vand.u32 %v2360, 4294901760
      %v3005 = vsub.f32 %v2360, %v3004
      %v3006 = vand.u32 %v3005, 4294901760
      %3007 = vmatpush1.msra.mxu0 %v3006
      %v3008 = vand.u32 %v2359, 4294901760
      %v3009 = vsub.f32 %v2359, %v3008
      %v3010 = vand.u32 %v3009, 4294901760
      %3011 = vmatprep.subr.mxu0 %v3010
      %v3012 = vand.u32 %v2358, 4294901760
      %v3013 = vsub.f32 %v2358, %v3012
      %v3014 = vand.u32 %v3013, 4294901760
      %3015 = vmatpush1.msra.mxu0 %v3014
      %v3016 = vand.u32 %v2357, 4294901760
      %v3017 = vsub.f32 %v2357, %v3016
      %v3018 = vand.u32 %v3017, 4294901760
      %3019 = vmatprep.subr.mxu0 %v3018
      %v3020 = vand.u32 %v2356, 4294901760
      %v3021 = vsub.f32 %v2356, %v3020
      %v3022 = vand.u32 %v3021, 4294901760
      %3023 = vmatpush1.msra.mxu0 %v3022
      %v3024 = vand.u32 %v2355, 4294901760
      %v3025 = vsub.f32 %v2355, %v3024
      %v3026 = vand.u32 %v3025, 4294901760
      %3027 = vmatprep.subr.mxu0 %v3026
      %v3028 = vand.u32 %v2354, 4294901760
      %v3029 = vsub.f32 %v2354, %v3028
      %v3030 = vand.u32 %v3029, 4294901760
      %3031 = vmatpush1.msra.mxu0 %v3030
      %v3032 = vand.u32 %v2353, 4294901760
      %v3033 = vsub.f32 %v2353, %v3032
      %v3034 = vand.u32 %v3033, 4294901760
      %3035 = vmatprep.subr.mxu0 %v3034
      %v3036 = vand.u32 %v2352, 4294901760
      %v3037 = vsub.f32 %v2352, %v3036
      %v3038 = vand.u32 %v3037, 4294901760
      %3039 = vmatpush1.msra.mxu0 %v3038
      %v3040 = vand.u32 %v2351, 4294901760
      %v3041 = vsub.f32 %v2351, %v3040
      %v3042 = vand.u32 %v3041, 4294901760
      %3043 = vmatprep.subr.mxu0 %v3042
      %v3044 = vand.u32 %v2350, 4294901760
      %v3045 = vsub.f32 %v2350, %v3044
      %v3046 = vand.u32 %v3045, 4294901760
      %3047 = vmatpush1.msra.mxu0 %v3046
      %v3048 = vand.u32 %v2349, 4294901760
      %v3049 = vsub.f32 %v2349, %v3048
      %v3050 = vand.u32 %v3049, 4294901760
      %3051 = vmatprep.subr.mxu0 %v3050
      %v3052 = vand.u32 %v2348, 4294901760
      %v3053 = vsub.f32 %v2348, %v3052
      %v3054 = vand.u32 %v3053, 4294901760
      %3055 = vmatpush1.msra.mxu0 %v3054
      %v3056 = vand.u32 %v2347, 4294901760
      %v3057 = vsub.f32 %v2347, %v3056
      %v3058 = vand.u32 %v3057, 4294901760
      %3059 = vmatprep.subr.mxu0 %v3058
      %v3060 = vand.u32 %v2346, 4294901760
      %v3061 = vsub.f32 %v2346, %v3060
      %v3062 = vand.u32 %v3061, 4294901760
      %3063 = vmatpush1.msra.mxu0 %v3062
      %v3064 = vand.u32 %v2345, 4294901760
      %v3065 = vsub.f32 %v2345, %v3064
      %v3066 = vand.u32 %v3065, 4294901760
      %3067 = vmatprep.subr.mxu0 %v3066
      %v3068 = vand.u32 %v2344, 4294901760
      %v3069 = vsub.f32 %v2344, %v3068
      %v3070 = vand.u32 %v3069, 4294901760
      %3071 = vmatpush1.msra.mxu0 %v3070
      %v3072 = vand.u32 %v2343, 4294901760
      %v3073 = vsub.f32 %v2343, %v3072
      %v3074 = vand.u32 %v3073, 4294901760
      %3075 = vmatprep.subr.mxu0 %v3074
      %v3076 = vand.u32 %v2342, 4294901760
      %v3077 = vsub.f32 %v2342, %v3076
      %v3078 = vand.u32 %v3077, 4294901760
      %3079 = vmatpush1.msra.mxu0 %v3078
      %v3080 = vand.u32 %v2341, 4294901760
      %v3081 = vsub.f32 %v2341, %v3080
      %v3082 = vand.u32 %v3081, 4294901760
      %3083 = vmatprep.subr.mxu0 %v3082
      %v3084 = vand.u32 %v2340, 4294901760
      %v3085 = vsub.f32 %v2340, %v3084
      %v3086 = vand.u32 %v3085, 4294901760
      %3087 = vmatpush1.msra.mxu0 %v3086
      %v3088 = vand.u32 %v2339, 4294901760
      %v3089 = vsub.f32 %v2339, %v3088
      %v3090 = vand.u32 %v3089, 4294901760
      %3091 = vmatprep.subr.mxu0 %v3090
      %v3092 = vand.u32 %v2338, 4294901760
      %v3093 = vsub.f32 %v2338, %v3092
      %v3094 = vand.u32 %v3093, 4294901760
      %3095 = vmatpush1.msra.mxu0 %v3094
      %v3096 = vand.u32 %v2337, 4294901760
      %v3097 = vsub.f32 %v2337, %v3096
      %v3098 = vand.u32 %v3097, 4294901760
      %3099 = vmatprep.subr.mxu0 %v3098
      %v3100 = vand.u32 %v2336, 4294901760
      %v3101 = vsub.f32 %v2336, %v3100
      %v3102 = vand.u32 %v3101, 4294901760
      %3103 = vmatpush1.msra.mxu0 %v3102
      %v3104 = vand.u32 %v2335, 4294901760
      %v3105 = vsub.f32 %v2335, %v3104
      %v3106 = vand.u32 %v3105, 4294901760
      %3107 = vmatprep.subr.mxu0 %v3106
      %v3108 = vand.u32 %v2334, 4294901760
      %v3109 = vsub.f32 %v2334, %v3108
      %v3110 = vand.u32 %v3109, 4294901760
      %3111 = vmatpush1.msra.mxu0 %v3110
      %v3112 = vand.u32 %v2333, 4294901760
      %v3113 = vsub.f32 %v2333, %v3112
      %v3114 = vand.u32 %v3113, 4294901760
      %3115 = vmatprep.subr.mxu0 %v3114
      %v3116 = vand.u32 %v2332, 4294901760
      %v3117 = vsub.f32 %v2332, %v3116
      %v3118 = vand.u32 %v3117, 4294901760
      %3119 = vmatpush1.msra.mxu0 %v3118
      %3120 = vmatprep.subr.mxu0 0.0
      %3121 = vmatpush2.msra.mxu0 0.0
      %3122 = vmatprep.subr.mxu0 0.0
      %3123 = vmatpush2.msra.mxu0 0.0
      %3124 = vmatprep.subr.mxu0 0.0
      %3125 = vmatpush2.msra.mxu0 0.0
      %3126 = vmatprep.subr.mxu0 0.0
      %3127 = vmatpush2.msra.mxu0 0.0
      %3128 = vmatprep.subr.mxu0 0.0
      %3129 = vmatpush2.msra.mxu0 0.0
      %3130 = vmatprep.subr.mxu0 0.0
      %3131 = vmatpush2.msra.mxu0 0.0
      %3132 = vmatprep.subr.mxu0 0.0
      %3133 = vmatpush2.msra.mxu0 0.0
      %3134 = vmatprep.subr.mxu0 0.0
      %3135 = vmatpush2.msra.mxu0 0.0
      %3136 = vmatprep.subr.mxu0 0.0
      %3137 = vmatpush2.msra.mxu0 0.0
      %3138 = vmatprep.subr.mxu0 0.0
      %3139 = vmatpush2.msra.mxu0 0.0
      %3140 = vmatprep.subr.mxu0 0.0
      %3141 = vmatpush2.msra.mxu0 0.0
      %3142 = vmatprep.subr.mxu0 0.0
      %3143 = vmatpush2.msra.mxu0 0.0
      %3144 = vmatprep.subr.mxu0 0.0
      %3145 = vmatpush2.msra.mxu0 0.0
      %3146 = vmatprep.subr.mxu0 0.0
      %3147 = vmatpush2.msra.mxu0 0.0
      %3148 = vmatprep.subr.mxu0 0.0
      %3149 = vmatpush2.msra.mxu0 0.0
      %3150 = vmatprep.subr.mxu0 0.0
      %3151 = vmatpush2.msra.mxu0 0.0
      %3152 = vmatprep.mubr.f32.mxu0 0.0
      %v3153 = vand.u32 %v2401, 4294901760
      %3154 = vmatmul.mubr.f32.gmra.mxu0 %v3153
      %v3155 = vpop.f32.mrf.mxu0
      %v3156 = vadd.f32 %v2988, %v3155
      %v3157 = vpop.f32.mrf.mxu0
      %v3158 = vadd.f32 %v2990, %v3157
      %3159 = vdwg.mxu0
      %v3160 = vand.u32 %v2363, 4294901760
      %3161 = vmatprep.subr.mxu0 %v3160
      %v3162 = vand.u32 %v2362, 4294901760
      %3163 = vmatpush1.msra.mxu0 %v3162
      %v3164 = vand.u32 %v2361, 4294901760
      %3165 = vmatprep.subr.mxu0 %v3164
      %v3166 = vand.u32 %v2360, 4294901760
      %3167 = vmatpush1.msra.mxu0 %v3166
      %v3168 = vand.u32 %v2359, 4294901760
      %3169 = vmatprep.subr.mxu0 %v3168
      %v3170 = vand.u32 %v2358, 4294901760
      %3171 = vmatpush1.msra.mxu0 %v3170
      %v3172 = vand.u32 %v2357, 4294901760
      %3173 = vmatprep.subr.mxu0 %v3172
      %v3174 = vand.u32 %v2356, 4294901760
      %3175 = vmatpush1.msra.mxu0 %v3174
      %v3176 = vand.u32 %v2355, 4294901760
      %3177 = vmatprep.subr.mxu0 %v3176
      %v3178 = vand.u32 %v2354, 4294901760
      %3179 = vmatpush1.msra.mxu0 %v3178
      %v3180 = vand.u32 %v2353, 4294901760
      %3181 = vmatprep.subr.mxu0 %v3180
      %v3182 = vand.u32 %v2352, 4294901760
      %3183 = vmatpush1.msra.mxu0 %v3182
      %v3184 = vand.u32 %v2351, 4294901760
      %3185 = vmatprep.subr.mxu0 %v3184
      %v3186 = vand.u32 %v2350, 4294901760
      %3187 = vmatpush1.msra.mxu0 %v3186
      %v3188 = vand.u32 %v2349, 4294901760
      %3189 = vmatprep.subr.mxu0 %v3188
      %v3190 = vand.u32 %v2348, 4294901760
      %3191 = vmatpush1.msra.mxu0 %v3190
      %v3192 = vand.u32 %v2347, 4294901760
      %3193 = vmatprep.subr.mxu0 %v3192
      %v3194 = vand.u32 %v2346, 4294901760
      %3195 = vmatpush1.msra.mxu0 %v3194
      %v3196 = vand.u32 %v2345, 4294901760
      %3197 = vmatprep.subr.mxu0 %v3196
      %v3198 = vand.u32 %v2344, 4294901760
      %3199 = vmatpush1.msra.mxu0 %v3198
      %v3200 = vand.u32 %v2343, 4294901760
      %3201 = vmatprep.subr.mxu0 %v3200
      %v3202 = vand.u32 %v2342, 4294901760
      %3203 = vmatpush1.msra.mxu0 %v3202
      %v3204 = vand.u32 %v2341, 4294901760
      %3205 = vmatprep.subr.mxu0 %v3204
      %v3206 = vand.u32 %v2340, 4294901760
      %3207 = vmatpush1.msra.mxu0 %v3206
      %v3208 = vand.u32 %v2339, 4294901760
      %3209 = vmatprep.subr.mxu0 %v3208
      %v3210 = vand.u32 %v2338, 4294901760
      %3211 = vmatpush1.msra.mxu0 %v3210
      %v3212 = vand.u32 %v2337, 4294901760
      %3213 = vmatprep.subr.mxu0 %v3212
      %v3214 = vand.u32 %v2336, 4294901760
      %3215 = vmatpush1.msra.mxu0 %v3214
      %v3216 = vand.u32 %v2335, 4294901760
      %3217 = vmatprep.subr.mxu0 %v3216
      %v3218 = vand.u32 %v2334, 4294901760
      %3219 = vmatpush1.msra.mxu0 %v3218
      %v3220 = vand.u32 %v2333, 4294901760
      %3221 = vmatprep.subr.mxu0 %v3220
      %v3222 = vand.u32 %v2332, 4294901760
      %3223 = vmatpush1.msra.mxu0 %v3222
      %3224 = vmatprep.subr.mxu0 0.0
      %3225 = vmatpush2.msra.mxu0 0.0
      %3226 = vmatprep.subr.mxu0 0.0
      %3227 = vmatpush2.msra.mxu0 0.0
      %3228 = vmatprep.subr.mxu0 0.0
      %3229 = vmatpush2.msra.mxu0 0.0
      %3230 = vmatprep.subr.mxu0 0.0
      %3231 = vmatpush2.msra.mxu0 0.0
      %3232 = vmatprep.subr.mxu0 0.0
      %3233 = vmatpush2.msra.mxu0 0.0
      %3234 = vmatprep.subr.mxu0 0.0
      %3235 = vmatpush2.msra.mxu0 0.0
      %3236 = vmatprep.subr.mxu0 0.0
      %3237 = vmatpush2.msra.mxu0 0.0
      %3238 = vmatprep.subr.mxu0 0.0
      %3239 = vmatpush2.msra.mxu0 0.0
      %3240 = vmatprep.subr.mxu0 0.0
      %3241 = vmatpush2.msra.mxu0 0.0
      %3242 = vmatprep.subr.mxu0 0.0
      %3243 = vmatpush2.msra.mxu0 0.0
      %3244 = vmatprep.subr.mxu0 0.0
      %3245 = vmatpush2.msra.mxu0 0.0
      %3246 = vmatprep.subr.mxu0 0.0
      %3247 = vmatpush2.msra.mxu0 0.0
      %3248 = vmatprep.subr.mxu0 0.0
      %3249 = vmatpush2.msra.mxu0 0.0
      %3250 = vmatprep.subr.mxu0 0.0
      %3251 = vmatpush2.msra.mxu0 0.0
      %3252 = vmatprep.subr.mxu0 0.0
      %3253 = vmatpush2.msra.mxu0 0.0
      %3254 = vmatprep.subr.mxu0 0.0
      %3255 = vmatpush2.msra.mxu0 0.0
      %3256 = vmatprep.mubr.f32.mxu0 0.0
      %v3257 = vand.u32 %v2401, 4294901760
      %3258 = vmatmul.mubr.f32.gmra.mxu0 %v3257
      %v3259 = vpop.f32.mrf.mxu0
      %v3260 = vadd.f32 %v3156, %v3259
      %v3261 = vpop.f32.mrf.mxu0
      %v3262 = vadd.f32 %v3158, %v3261
      %3263 = vdwg.mxu0
      %v3264 = vadd.f32 %v2406, %v3260
      %v3265 = vxor.u32 %v3264, 2147483648
      %v3266 = vmul.f32 %v3265, 1.442695
      %v3267 = vpow.pop %v3266
      %v3268 = vadd.f32 %v3267, 1.0
      %v3269 = vrcp.pop %v3268
      %v3270 = vmul.f32 1.0, %v3269
      %v3271 = vadd.f32 %v2407, %v3262
      %v3272 = vxor.u32 %v3271, 2147483648
      %v3273 = vmul.f32 %v3272, 1.442695
      %v3274 = vpow.pop %v3273
      %v3275 = vadd.f32 %v3274, 1.0
      %v3276 = vrcp.pop %v3275
      %v3277 = vmul.f32 1.0, %v3276
      %3278 = vmatprep.subr.mxu0 0.0
      %v3279 = vand.u32 %v2379, 4294901760
      %3280 = vmatpush1.msra.mxu0 %v3279
      %3281 = vmatprep.subr.mxu0 0.0
      %v3282 = vand.u32 %v2378, 4294901760
      %3283 = vmatpush1.msra.mxu0 %v3282
      %3284 = vmatprep.subr.mxu0 0.0
      %v3285 = vand.u32 %v2377, 4294901760
      %3286 = vmatpush1.msra.mxu0 %v3285
      %3287 = vmatprep.subr.mxu0 0.0
      %v3288 = vand.u32 %v2376, 4294901760
      %3289 = vmatpush1.msra.mxu0 %v3288
      %3290 = vmatprep.subr.mxu0 0.0
      %v3291 = vand.u32 %v2375, 4294901760
      %3292 = vmatpush1.msra.mxu0 %v3291
      %3293 = vmatprep.subr.mxu0 0.0
      %v3294 = vand.u32 %v2374, 4294901760
      %3295 = vmatpush1.msra.mxu0 %v3294
      %3296 = vmatprep.subr.mxu0 0.0
      %v3297 = vand.u32 %v2373, 4294901760
      %3298 = vmatpush1.msra.mxu0 %v3297
      %3299 = vmatprep.subr.mxu0 0.0
      %v3300 = vand.u32 %v2372, 4294901760
      %3301 = vmatpush1.msra.mxu0 %v3300
      %3302 = vmatprep.subr.mxu0 0.0
      %v3303 = vand.u32 %v2371, 4294901760
      %3304 = vmatpush1.msra.mxu0 %v3303
      %3305 = vmatprep.subr.mxu0 0.0
      %v3306 = vand.u32 %v2370, 4294901760
      %3307 = vmatpush1.msra.mxu0 %v3306
      %3308 = vmatprep.subr.mxu0 0.0
      %v3309 = vand.u32 %v2369, 4294901760
      %3310 = vmatpush1.msra.mxu0 %v3309
      %3311 = vmatprep.subr.mxu0 0.0
      %v3312 = vand.u32 %v2368, 4294901760
      %3313 = vmatpush1.msra.mxu0 %v3312
      %3314 = vmatprep.subr.mxu0 0.0
      %v3315 = vand.u32 %v2367, 4294901760
      %3316 = vmatpush1.msra.mxu0 %v3315
      %3317 = vmatprep.subr.mxu0 0.0
      %v3318 = vand.u32 %v2366, 4294901760
      %3319 = vmatpush1.msra.mxu0 %v3318
      %3320 = vmatprep.subr.mxu0 0.0
      %v3321 = vand.u32 %v2365, 4294901760
      %3322 = vmatpush1.msra.mxu0 %v3321
      %3323 = vmatprep.subr.mxu0 0.0
      %v3324 = vand.u32 %v2364, 4294901760
      %3325 = vmatpush1.msra.mxu0 %v3324
      %3326 = vmatprep.subr.mxu0 0.0
      %3327 = vmatpush2.msra.mxu0 0.0
      %3328 = vmatprep.subr.mxu0 0.0
      %3329 = vmatpush2.msra.mxu0 0.0
      %3330 = vmatprep.subr.mxu0 0.0
      %3331 = vmatpush2.msra.mxu0 0.0
      %3332 = vmatprep.subr.mxu0 0.0
      %3333 = vmatpush2.msra.mxu0 0.0
      %3334 = vmatprep.subr.mxu0 0.0
      %3335 = vmatpush2.msra.mxu0 0.0
      %3336 = vmatprep.subr.mxu0 0.0
      %3337 = vmatpush2.msra.mxu0 0.0
      %3338 = vmatprep.subr.mxu0 0.0
      %3339 = vmatpush2.msra.mxu0 0.0
      %3340 = vmatprep.subr.mxu0 0.0
      %3341 = vmatpush2.msra.mxu0 0.0
      %3342 = vmatprep.subr.mxu0 0.0
      %3343 = vmatpush2.msra.mxu0 0.0
      %3344 = vmatprep.subr.mxu0 0.0
      %3345 = vmatpush2.msra.mxu0 0.0
      %3346 = vmatprep.subr.mxu0 0.0
      %3347 = vmatpush2.msra.mxu0 0.0
      %3348 = vmatprep.subr.mxu0 0.0
      %3349 = vmatpush2.msra.mxu0 0.0
      %3350 = vmatprep.subr.mxu0 0.0
      %3351 = vmatpush2.msra.mxu0 0.0
      %3352 = vmatprep.subr.mxu0 0.0
      %3353 = vmatpush2.msra.mxu0 0.0
      %3354 = vmatprep.subr.mxu0 0.0
      %3355 = vmatpush2.msra.mxu0 0.0
      %3356 = vmatprep.subr.mxu0 0.0
      %3357 = vmatpush2.msra.mxu0 0.0
      %3358 = vmatprep.mubr.f32.mxu0 0.0
      %v3359 = vand.u32 %v2401, 4294901760
      %v3360 = vsub.f32 %v2401, %v3359
      %v3361 = vand.u32 %v3360, 4294901760
      %v3362 = vsub.f32 %v3360, %v3361
      %v3363 = vand.u32 %v3362, 4294901760
      %3364 = vmatmul.mubr.f32.gmra.mxu0 %v3363
      %v3365 = vpop.f32.mrf.mxu0
      %v3366 = vadd.f32 %v2385, %v3365
      %v3367 = vpop.f32.mrf.mxu0
      %3368 = vdwg.mxu0
      %3369 = vmatprep.subr.mxu0 0.0
      %v3370 = vand.u32 %v2379, 4294901760
      %v3371 = vsub.f32 %v2379, %v3370
      %v3372 = vand.u32 %v3371, 4294901760
      %v3373 = vsub.f32 %v3371, %v3372
      %v3374 = vand.u32 %v3373, 4294901760
      %3375 = vmatpush1.msra.mxu0 %v3374
      %3376 = vmatprep.subr.mxu0 0.0
      %v3377 = vand.u32 %v2378, 4294901760
      %v3378 = vsub.f32 %v2378, %v3377
      %v3379 = vand.u32 %v3378, 4294901760
      %v3380 = vsub.f32 %v3378, %v3379
      %v3381 = vand.u32 %v3380, 4294901760
      %3382 = vmatpush1.msra.mxu0 %v3381
      %3383 = vmatprep.subr.mxu0 0.0
      %v3384 = vand.u32 %v2377, 4294901760
      %v3385 = vsub.f32 %v2377, %v3384
      %v3386 = vand.u32 %v3385, 4294901760
      %v3387 = vsub.f32 %v3385, %v3386
      %v3388 = vand.u32 %v3387, 4294901760
      %3389 = vmatpush1.msra.mxu0 %v3388
      %3390 = vmatprep.subr.mxu0 0.0
      %v3391 = vand.u32 %v2376, 4294901760
      %v3392 = vsub.f32 %v2376, %v3391
      %v3393 = vand.u32 %v3392, 4294901760
      %v3394 = vsub.f32 %v3392, %v3393
      %v3395 = vand.u32 %v3394, 4294901760
      %3396 = vmatpush1.msra.mxu0 %v3395
      %3397 = vmatprep.subr.mxu0 0.0
      %v3398 = vand.u32 %v2375, 4294901760
      %v3399 = vsub.f32 %v2375, %v3398
      %v3400 = vand.u32 %v3399, 4294901760
      %v3401 = vsub.f32 %v3399, %v3400
      %v3402 = vand.u32 %v3401, 4294901760
      %3403 = vmatpush1.msra.mxu0 %v3402
      %3404 = vmatprep.subr.mxu0 0.0
      %v3405 = vand.u32 %v2374, 4294901760
      %v3406 = vsub.f32 %v2374, %v3405
      %v3407 = vand.u32 %v3406, 4294901760
      %v3408 = vsub.f32 %v3406, %v3407
      %v3409 = vand.u32 %v3408, 4294901760
      %3410 = vmatpush1.msra.mxu0 %v3409
      %3411 = vmatprep.subr.mxu0 0.0
      %v3412 = vand.u32 %v2373, 4294901760
      %v3413 = vsub.f32 %v2373, %v3412
      %v3414 = vand.u32 %v3413, 4294901760
      %v3415 = vsub.f32 %v3413, %v3414
      %v3416 = vand.u32 %v3415, 4294901760
      %3417 = vmatpush1.msra.mxu0 %v3416
      %3418 = vmatprep.subr.mxu0 0.0
      %v3419 = vand.u32 %v2372, 4294901760
      %v3420 = vsub.f32 %v2372, %v3419
      %v3421 = vand.u32 %v3420, 4294901760
      %v3422 = vsub.f32 %v3420, %v3421
      %v3423 = vand.u32 %v3422, 4294901760
      %3424 = vmatpush1.msra.mxu0 %v3423
      %3425 = vmatprep.subr.mxu0 0.0
      %v3426 = vand.u32 %v2371, 4294901760
      %v3427 = vsub.f32 %v2371, %v3426
      %v3428 = vand.u32 %v3427, 4294901760
      %v3429 = vsub.f32 %v3427, %v3428
      %v3430 = vand.u32 %v3429, 4294901760
      %3431 = vmatpush1.msra.mxu0 %v3430
      %3432 = vmatprep.subr.mxu0 0.0
      %v3433 = vand.u32 %v2370, 4294901760
      %v3434 = vsub.f32 %v2370, %v3433
      %v3435 = vand.u32 %v3434, 4294901760
      %v3436 = vsub.f32 %v3434, %v3435
      %v3437 = vand.u32 %v3436, 4294901760
      %3438 = vmatpush1.msra.mxu0 %v3437
      %3439 = vmatprep.subr.mxu0 0.0
      %v3440 = vand.u32 %v2369, 4294901760
      %v3441 = vsub.f32 %v2369, %v3440
      %v3442 = vand.u32 %v3441, 4294901760
      %v3443 = vsub.f32 %v3441, %v3442
      %v3444 = vand.u32 %v3443, 4294901760
      %3445 = vmatpush1.msra.mxu0 %v3444
      %3446 = vmatprep.subr.mxu0 0.0
      %v3447 = vand.u32 %v2368, 4294901760
      %v3448 = vsub.f32 %v2368, %v3447
      %v3449 = vand.u32 %v3448, 4294901760
      %v3450 = vsub.f32 %v3448, %v3449
      %v3451 = vand.u32 %v3450, 4294901760
      %3452 = vmatpush1.msra.mxu0 %v3451
      %3453 = vmatprep.subr.mxu0 0.0
      %v3454 = vand.u32 %v2367, 4294901760
      %v3455 = vsub.f32 %v2367, %v3454
      %v3456 = vand.u32 %v3455, 4294901760
      %v3457 = vsub.f32 %v3455, %v3456
      %v3458 = vand.u32 %v3457, 4294901760
      %3459 = vmatpush1.msra.mxu0 %v3458
      %3460 = vmatprep.subr.mxu0 0.0
      %v3461 = vand.u32 %v2366, 4294901760
      %v3462 = vsub.f32 %v2366, %v3461
      %v3463 = vand.u32 %v3462, 4294901760
      %v3464 = vsub.f32 %v3462, %v3463
      %v3465 = vand.u32 %v3464, 4294901760
      %3466 = vmatpush1.msra.mxu0 %v3465
      %3467 = vmatprep.subr.mxu0 0.0
      %v3468 = vand.u32 %v2365, 4294901760
      %v3469 = vsub.f32 %v2365, %v3468
      %v3470 = vand.u32 %v3469, 4294901760
      %v3471 = vsub.f32 %v3469, %v3470
      %v3472 = vand.u32 %v3471, 4294901760
      %3473 = vmatpush1.msra.mxu0 %v3472
      %3474 = vmatprep.subr.mxu0 0.0
      %v3475 = vand.u32 %v2364, 4294901760
      %v3476 = vsub.f32 %v2364, %v3475
      %v3477 = vand.u32 %v3476, 4294901760
      %v3478 = vsub.f32 %v3476, %v3477
      %v3479 = vand.u32 %v3478, 4294901760
      %3480 = vmatpush1.msra.mxu0 %v3479
      %3481 = vmatprep.subr.mxu0 0.0
      %3482 = vmatpush2.msra.mxu0 0.0
      %3483 = vmatprep.subr.mxu0 0.0
      %3484 = vmatpush2.msra.mxu0 0.0
      %3485 = vmatprep.subr.mxu0 0.0
      %3486 = vmatpush2.msra.mxu0 0.0
      %3487 = vmatprep.subr.mxu0 0.0
      %3488 = vmatpush2.msra.mxu0 0.0
      %3489 = vmatprep.subr.mxu0 0.0
      %3490 = vmatpush2.msra.mxu0 0.0
      %3491 = vmatprep.subr.mxu0 0.0
      %3492 = vmatpush2.msra.mxu0 0.0
      %3493 = vmatprep.subr.mxu0 0.0
      %3494 = vmatpush2.msra.mxu0 0.0
      %3495 = vmatprep.subr.mxu0 0.0
      %3496 = vmatpush2.msra.mxu0 0.0
      %3497 = vmatprep.subr.mxu0 0.0
      %3498 = vmatpush2.msra.mxu0 0.0
      %3499 = vmatprep.subr.mxu0 0.0
      %3500 = vmatpush2.msra.mxu0 0.0
      %3501 = vmatprep.subr.mxu0 0.0
      %3502 = vmatpush2.msra.mxu0 0.0
      %3503 = vmatprep.subr.mxu0 0.0
      %3504 = vmatpush2.msra.mxu0 0.0
      %3505 = vmatprep.subr.mxu0 0.0
      %3506 = vmatpush2.msra.mxu0 0.0
      %3507 = vmatprep.subr.mxu0 0.0
      %3508 = vmatpush2.msra.mxu0 0.0
      %3509 = vmatprep.subr.mxu0 0.0
      %3510 = vmatpush2.msra.mxu0 0.0
      %3511 = vmatprep.subr.mxu0 0.0
      %3512 = vmatpush2.msra.mxu0 0.0
      %3513 = vmatprep.mubr.f32.mxu0 0.0
      %v3514 = vand.u32 %v2401, 4294901760
      %3515 = vmatmul.mubr.f32.gmra.mxu0 %v3514
      %v3516 = vpop.f32.mrf.mxu0
      %v3517 = vadd.f32 %v3366, %v3516
      %v3518 = vpop.f32.mrf.mxu0
      %3519 = vdwg.mxu0
      %3520 = vmatprep.subr.mxu0 0.0
      %v3521 = vand.u32 %v2379, 4294901760
      %v3522 = vsub.f32 %v2379, %v3521
      %3523 = vmatpush1.msra.mxu0 %v3522
      %3524 = vmatprep.subr.mxu0 0.0
      %v3525 = vand.u32 %v2378, 4294901760
      %v3526 = vsub.f32 %v2378, %v3525
      %3527 = vmatpush1.msra.mxu0 %v3526
      %3528 = vmatprep.subr.mxu0 0.0
      %v3529 = vand.u32 %v2377, 4294901760
      %v3530 = vsub.f32 %v2377, %v3529
      %3531 = vmatpush1.msra.mxu0 %v3530
      %3532 = vmatprep.subr.mxu0 0.0
      %v3533 = vand.u32 %v2376, 4294901760
      %v3534 = vsub.f32 %v2376, %v3533
      %3535 = vmatpush1.msra.mxu0 %v3534
      %3536 = vmatprep.subr.mxu0 0.0
      %v3537 = vand.u32 %v2375, 4294901760
      %v3538 = vsub.f32 %v2375, %v3537
      %3539 = vmatpush1.msra.mxu0 %v3538
      %3540 = vmatprep.subr.mxu0 0.0
      %v3541 = vand.u32 %v2374, 4294901760
      %v3542 = vsub.f32 %v2374, %v3541
      %3543 = vmatpush1.msra.mxu0 %v3542
      %3544 = vmatprep.subr.mxu0 0.0
      %v3545 = vand.u32 %v2373, 4294901760
      %v3546 = vsub.f32 %v2373, %v3545
      %3547 = vmatpush1.msra.mxu0 %v3546
      %3548 = vmatprep.subr.mxu0 0.0
      %v3549 = vand.u32 %v2372, 4294901760
      %v3550 = vsub.f32 %v2372, %v3549
      %3551 = vmatpush1.msra.mxu0 %v3550
      %3552 = vmatprep.subr.mxu0 0.0
      %v3553 = vand.u32 %v2371, 4294901760
      %v3554 = vsub.f32 %v2371, %v3553
      %3555 = vmatpush1.msra.mxu0 %v3554
      %3556 = vmatprep.subr.mxu0 0.0
      %v3557 = vand.u32 %v2370, 4294901760
      %v3558 = vsub.f32 %v2370, %v3557
      %3559 = vmatpush1.msra.mxu0 %v3558
      %3560 = vmatprep.subr.mxu0 0.0
      %v3561 = vand.u32 %v2369, 4294901760
      %v3562 = vsub.f32 %v2369, %v3561
      %3563 = vmatpush1.msra.mxu0 %v3562
      %3564 = vmatprep.subr.mxu0 0.0
      %v3565 = vand.u32 %v2368, 4294901760
      %v3566 = vsub.f32 %v2368, %v3565
      %3567 = vmatpush1.msra.mxu0 %v3566
      %3568 = vmatprep.subr.mxu0 0.0
      %v3569 = vand.u32 %v2367, 4294901760
      %v3570 = vsub.f32 %v2367, %v3569
      %3571 = vmatpush1.msra.mxu0 %v3570
      %3572 = vmatprep.subr.mxu0 0.0
      %v3573 = vand.u32 %v2366, 4294901760
      %v3574 = vsub.f32 %v2366, %v3573
      %3575 = vmatpush1.msra.mxu0 %v3574
      %3576 = vmatprep.subr.mxu0 0.0
      %v3577 = vand.u32 %v2365, 4294901760
      %v3578 = vsub.f32 %v2365, %v3577
      %3579 = vmatpush1.msra.mxu0 %v3578
      %3580 = vmatprep.subr.mxu0 0.0
      %v3581 = vand.u32 %v2364, 4294901760
      %v3582 = vsub.f32 %v2364, %v3581
      %3583 = vmatpush1.msra.mxu0 %v3582
      %3584 = vmatprep.subr.mxu0 0.0
      %3585 = vmatpush2.msra.mxu0 0.0
      %3586 = vmatprep.subr.mxu0 0.0
      %3587 = vmatpush2.msra.mxu0 0.0
      %3588 = vmatprep.subr.mxu0 0.0
      %3589 = vmatpush2.msra.mxu0 0.0
      %3590 = vmatprep.subr.mxu0 0.0
      %3591 = vmatpush2.msra.mxu0 0.0
      %3592 = vmatprep.subr.mxu0 0.0
      %3593 = vmatpush2.msra.mxu0 0.0
      %3594 = vmatprep.subr.mxu0 0.0
      %3595 = vmatpush2.msra.mxu0 0.0
      %3596 = vmatprep.subr.mxu0 0.0
      %3597 = vmatpush2.msra.mxu0 0.0
      %3598 = vmatprep.subr.mxu0 0.0
      %3599 = vmatpush2.msra.mxu0 0.0
      %3600 = vmatprep.subr.mxu0 0.0
      %3601 = vmatpush2.msra.mxu0 0.0
      %3602 = vmatprep.subr.mxu0 0.0
      %3603 = vmatpush2.msra.mxu0 0.0
      %3604 = vmatprep.subr.mxu0 0.0
      %3605 = vmatpush2.msra.mxu0 0.0
      %3606 = vmatprep.subr.mxu0 0.0
      %3607 = vmatpush2.msra.mxu0 0.0
      %3608 = vmatprep.subr.mxu0 0.0
      %3609 = vmatpush2.msra.mxu0 0.0
      %3610 = vmatprep.subr.mxu0 0.0
      %3611 = vmatpush2.msra.mxu0 0.0
      %3612 = vmatprep.subr.mxu0 0.0
      %3613 = vmatpush2.msra.mxu0 0.0
      %3614 = vmatprep.subr.mxu0 0.0
      %3615 = vmatpush2.msra.mxu0 0.0
      %3616 = vmatprep.mubr.f32.mxu0 0.0
      %v3617 = vand.u32 %v2401, 4294901760
      %v3618 = vsub.f32 %v2401, %v3617
      %3619 = vmatmul.mubr.f32.gmra.mxu0 %v3618
      %v3620 = vpop.f32.mrf.mxu0
      %v3621 = vadd.f32 %v3517, %v3620
      %v3622 = vpop.f32.mrf.mxu0
      %3623 = vdwg.mxu0
      %3624 = vmatprep.subr.mxu0 0.0
      %v3625 = vand.u32 %v2379, 4294901760
      %3626 = vmatpush1.msra.mxu0 %v3625
      %3627 = vmatprep.subr.mxu0 0.0
      %v3628 = vand.u32 %v2378, 4294901760
      %3629 = vmatpush1.msra.mxu0 %v3628
      %3630 = vmatprep.subr.mxu0 0.0
      %v3631 = vand.u32 %v2377, 4294901760
      %3632 = vmatpush1.msra.mxu0 %v3631
      %3633 = vmatprep.subr.mxu0 0.0
      %v3634 = vand.u32 %v2376, 4294901760
      %3635 = vmatpush1.msra.mxu0 %v3634
      %3636 = vmatprep.subr.mxu0 0.0
      %v3637 = vand.u32 %v2375, 4294901760
      %3638 = vmatpush1.msra.mxu0 %v3637
      %3639 = vmatprep.subr.mxu0 0.0
      %v3640 = vand.u32 %v2374, 4294901760
      %3641 = vmatpush1.msra.mxu0 %v3640
      %3642 = vmatprep.subr.mxu0 0.0
      %v3643 = vand.u32 %v2373, 4294901760
      %3644 = vmatpush1.msra.mxu0 %v3643
      %3645 = vmatprep.subr.mxu0 0.0
      %v3646 = vand.u32 %v2372, 4294901760
      %3647 = vmatpush1.msra.mxu0 %v3646
      %3648 = vmatprep.subr.mxu0 0.0
      %v3649 = vand.u32 %v2371, 4294901760
      %3650 = vmatpush1.msra.mxu0 %v3649
      %3651 = vmatprep.subr.mxu0 0.0
      %v3652 = vand.u32 %v2370, 4294901760
      %3653 = vmatpush1.msra.mxu0 %v3652
      %3654 = vmatprep.subr.mxu0 0.0
      %v3655 = vand.u32 %v2369, 4294901760
      %3656 = vmatpush1.msra.mxu0 %v3655
      %3657 = vmatprep.subr.mxu0 0.0
      %v3658 = vand.u32 %v2368, 4294901760
      %3659 = vmatpush1.msra.mxu0 %v3658
      %3660 = vmatprep.subr.mxu0 0.0
      %v3661 = vand.u32 %v2367, 4294901760
      %3662 = vmatpush1.msra.mxu0 %v3661
      %3663 = vmatprep.subr.mxu0 0.0
      %v3664 = vand.u32 %v2366, 4294901760
      %3665 = vmatpush1.msra.mxu0 %v3664
      %3666 = vmatprep.subr.mxu0 0.0
      %v3667 = vand.u32 %v2365, 4294901760
      %3668 = vmatpush1.msra.mxu0 %v3667
      %3669 = vmatprep.subr.mxu0 0.0
      %v3670 = vand.u32 %v2364, 4294901760
      %3671 = vmatpush1.msra.mxu0 %v3670
      %3672 = vmatprep.subr.mxu0 0.0
      %3673 = vmatpush2.msra.mxu0 0.0
      %3674 = vmatprep.subr.mxu0 0.0
      %3675 = vmatpush2.msra.mxu0 0.0
      %3676 = vmatprep.subr.mxu0 0.0
      %3677 = vmatpush2.msra.mxu0 0.0
      %3678 = vmatprep.subr.mxu0 0.0
      %3679 = vmatpush2.msra.mxu0 0.0
      %3680 = vmatprep.subr.mxu0 0.0
      %3681 = vmatpush2.msra.mxu0 0.0
      %3682 = vmatprep.subr.mxu0 0.0
      %3683 = vmatpush2.msra.mxu0 0.0
      %3684 = vmatprep.subr.mxu0 0.0
      %3685 = vmatpush2.msra.mxu0 0.0
      %3686 = vmatprep.subr.mxu0 0.0
      %3687 = vmatpush2.msra.mxu0 0.0
      %3688 = vmatprep.subr.mxu0 0.0
      %3689 = vmatpush2.msra.mxu0 0.0
      %3690 = vmatprep.subr.mxu0 0.0
      %3691 = vmatpush2.msra.mxu0 0.0
      %3692 = vmatprep.subr.mxu0 0.0
      %3693 = vmatpush2.msra.mxu0 0.0
      %3694 = vmatprep.subr.mxu0 0.0
      %3695 = vmatpush2.msra.mxu0 0.0
      %3696 = vmatprep.subr.mxu0 0.0
      %3697 = vmatpush2.msra.mxu0 0.0
      %3698 = vmatprep.subr.mxu0 0.0
      %3699 = vmatpush2.msra.mxu0 0.0
      %3700 = vmatprep.subr.mxu0 0.0
      %3701 = vmatpush2.msra.mxu0 0.0
      %3702 = vmatprep.subr.mxu0 0.0
      %3703 = vmatpush2.msra.mxu0 0.0
      %3704 = vmatprep.mubr.f32.mxu0 0.0
      %v3705 = vand.u32 %v2401, 4294901760
      %v3706 = vsub.f32 %v2401, %v3705
      %v3707 = vand.u32 %v3706, 4294901760
      %3708 = vmatmul.mubr.f32.gmra.mxu0 %v3707
      %v3709 = vpop.f32.mrf.mxu0
      %v3710 = vadd.f32 %v3621, %v3709
      %v3711 = vpop.f32.mrf.mxu0
      %3712 = vdwg.mxu0
      %3713 = vmatprep.subr.mxu0 0.0
      %v3714 = vand.u32 %v2379, 4294901760
      %v3715 = vsub.f32 %v2379, %v3714
      %v3716 = vand.u32 %v3715, 4294901760
      %3717 = vmatpush1.msra.mxu0 %v3716
      %3718 = vmatprep.subr.mxu0 0.0
      %v3719 = vand.u32 %v2378, 4294901760
      %v3720 = vsub.f32 %v2378, %v3719
      %v3721 = vand.u32 %v3720, 4294901760
      %3722 = vmatpush1.msra.mxu0 %v3721
      %3723 = vmatprep.subr.mxu0 0.0
      %v3724 = vand.u32 %v2377, 4294901760
      %v3725 = vsub.f32 %v2377, %v3724
      %v3726 = vand.u32 %v3725, 4294901760
      %3727 = vmatpush1.msra.mxu0 %v3726
      %3728 = vmatprep.subr.mxu0 0.0
      %v3729 = vand.u32 %v2376, 4294901760
      %v3730 = vsub.f32 %v2376, %v3729
      %v3731 = vand.u32 %v3730, 4294901760
      %3732 = vmatpush1.msra.mxu0 %v3731
      %3733 = vmatprep.subr.mxu0 0.0
      %v3734 = vand.u32 %v2375, 4294901760
      %v3735 = vsub.f32 %v2375, %v3734
      %v3736 = vand.u32 %v3735, 4294901760
      %3737 = vmatpush1.msra.mxu0 %v3736
      %3738 = vmatprep.subr.mxu0 0.0
      %v3739 = vand.u32 %v2374, 4294901760
      %v3740 = vsub.f32 %v2374, %v3739
      %v3741 = vand.u32 %v3740, 4294901760
      %3742 = vmatpush1.msra.mxu0 %v3741
      %3743 = vmatprep.subr.mxu0 0.0
      %v3744 = vand.u32 %v2373, 4294901760
      %v3745 = vsub.f32 %v2373, %v3744
      %v3746 = vand.u32 %v3745, 4294901760
      %3747 = vmatpush1.msra.mxu0 %v3746
      %3748 = vmatprep.subr.mxu0 0.0
      %v3749 = vand.u32 %v2372, 4294901760
      %v3750 = vsub.f32 %v2372, %v3749
      %v3751 = vand.u32 %v3750, 4294901760
      %3752 = vmatpush1.msra.mxu0 %v3751
      %3753 = vmatprep.subr.mxu0 0.0
      %v3754 = vand.u32 %v2371, 4294901760
      %v3755 = vsub.f32 %v2371, %v3754
      %v3756 = vand.u32 %v3755, 4294901760
      %3757 = vmatpush1.msra.mxu0 %v3756
      %3758 = vmatprep.subr.mxu0 0.0
      %v3759 = vand.u32 %v2370, 4294901760
      %v3760 = vsub.f32 %v2370, %v3759
      %v3761 = vand.u32 %v3760, 4294901760
      %3762 = vmatpush1.msra.mxu0 %v3761
      %3763 = vmatprep.subr.mxu0 0.0
      %v3764 = vand.u32 %v2369, 4294901760
      %v3765 = vsub.f32 %v2369, %v3764
      %v3766 = vand.u32 %v3765, 4294901760
      %3767 = vmatpush1.msra.mxu0 %v3766
      %3768 = vmatprep.subr.mxu0 0.0
      %v3769 = vand.u32 %v2368, 4294901760
      %v3770 = vsub.f32 %v2368, %v3769
      %v3771 = vand.u32 %v3770, 4294901760
      %3772 = vmatpush1.msra.mxu0 %v3771
      %3773 = vmatprep.subr.mxu0 0.0
      %v3774 = vand.u32 %v2367, 4294901760
      %v3775 = vsub.f32 %v2367, %v3774
      %v3776 = vand.u32 %v3775, 4294901760
      %3777 = vmatpush1.msra.mxu0 %v3776
      %3778 = vmatprep.subr.mxu0 0.0
      %v3779 = vand.u32 %v2366, 4294901760
      %v3780 = vsub.f32 %v2366, %v3779
      %v3781 = vand.u32 %v3780, 4294901760
      %3782 = vmatpush1.msra.mxu0 %v3781
      %3783 = vmatprep.subr.mxu0 0.0
      %v3784 = vand.u32 %v2365, 4294901760
      %v3785 = vsub.f32 %v2365, %v3784
      %v3786 = vand.u32 %v3785, 4294901760
      %3787 = vmatpush1.msra.mxu0 %v3786
      %3788 = vmatprep.subr.mxu0 0.0
      %v3789 = vand.u32 %v2364, 4294901760
      %v3790 = vsub.f32 %v2364, %v3789
      %v3791 = vand.u32 %v3790, 4294901760
      %3792 = vmatpush1.msra.mxu0 %v3791
      %3793 = vmatprep.subr.mxu0 0.0
      %3794 = vmatpush2.msra.mxu0 0.0
      %3795 = vmatprep.subr.mxu0 0.0
      %3796 = vmatpush2.msra.mxu0 0.0
      %3797 = vmatprep.subr.mxu0 0.0
      %3798 = vmatpush2.msra.mxu0 0.0
      %3799 = vmatprep.subr.mxu0 0.0
      %3800 = vmatpush2.msra.mxu0 0.0
      %3801 = vmatprep.subr.mxu0 0.0
      %3802 = vmatpush2.msra.mxu0 0.0
      %3803 = vmatprep.subr.mxu0 0.0
      %3804 = vmatpush2.msra.mxu0 0.0
      %3805 = vmatprep.subr.mxu0 0.0
      %3806 = vmatpush2.msra.mxu0 0.0
      %3807 = vmatprep.subr.mxu0 0.0
      %3808 = vmatpush2.msra.mxu0 0.0
      %3809 = vmatprep.subr.mxu0 0.0
      %3810 = vmatpush2.msra.mxu0 0.0
      %3811 = vmatprep.subr.mxu0 0.0
      %3812 = vmatpush2.msra.mxu0 0.0
      %3813 = vmatprep.subr.mxu0 0.0
      %3814 = vmatpush2.msra.mxu0 0.0
      %3815 = vmatprep.subr.mxu0 0.0
      %3816 = vmatpush2.msra.mxu0 0.0
      %3817 = vmatprep.subr.mxu0 0.0
      %3818 = vmatpush2.msra.mxu0 0.0
      %3819 = vmatprep.subr.mxu0 0.0
      %3820 = vmatpush2.msra.mxu0 0.0
      %3821 = vmatprep.subr.mxu0 0.0
      %3822 = vmatpush2.msra.mxu0 0.0
      %3823 = vmatprep.subr.mxu0 0.0
      %3824 = vmatpush2.msra.mxu0 0.0
      %3825 = vmatprep.mubr.f32.mxu0 0.0
      %v3826 = vand.u32 %v2401, 4294901760
      %3827 = vmatmul.mubr.f32.gmra.mxu0 %v3826
      %v3828 = vpop.f32.mrf.mxu0
      %v3829 = vadd.f32 %v3710, %v3828
      %v3830 = vpop.f32.mrf.mxu0
      %3831 = vdwg.mxu0
      %3832 = vmatprep.subr.mxu0 0.0
      %v3833 = vand.u32 %v2379, 4294901760
      %3834 = vmatpush1.msra.mxu0 %v3833
      %3835 = vmatprep.subr.mxu0 0.0
      %v3836 = vand.u32 %v2378, 4294901760
      %3837 = vmatpush1.msra.mxu0 %v3836
      %3838 = vmatprep.subr.mxu0 0.0
      %v3839 = vand.u32 %v2377, 4294901760
      %3840 = vmatpush1.msra.mxu0 %v3839
      %3841 = vmatprep.subr.mxu0 0.0
      %v3842 = vand.u32 %v2376, 4294901760
      %3843 = vmatpush1.msra.mxu0 %v3842
      %3844 = vmatprep.subr.mxu0 0.0
      %v3845 = vand.u32 %v2375, 4294901760
      %3846 = vmatpush1.msra.mxu0 %v3845
      %3847 = vmatprep.subr.mxu0 0.0
      %v3848 = vand.u32 %v2374, 4294901760
      %3849 = vmatpush1.msra.mxu0 %v3848
      %3850 = vmatprep.subr.mxu0 0.0
      %v3851 = vand.u32 %v2373, 4294901760
      %3852 = vmatpush1.msra.mxu0 %v3851
      %3853 = vmatprep.subr.mxu0 0.0
      %v3854 = vand.u32 %v2372, 4294901760
      %3855 = vmatpush1.msra.mxu0 %v3854
      %3856 = vmatprep.subr.mxu0 0.0
      %v3857 = vand.u32 %v2371, 4294901760
      %3858 = vmatpush1.msra.mxu0 %v3857
      %3859 = vmatprep.subr.mxu0 0.0
      %v3860 = vand.u32 %v2370, 4294901760
      %3861 = vmatpush1.msra.mxu0 %v3860
      %3862 = vmatprep.subr.mxu0 0.0
      %v3863 = vand.u32 %v2369, 4294901760
      %3864 = vmatpush1.msra.mxu0 %v3863
      %3865 = vmatprep.subr.mxu0 0.0
      %v3866 = vand.u32 %v2368, 4294901760
      %3867 = vmatpush1.msra.mxu0 %v3866
      %3868 = vmatprep.subr.mxu0 0.0
      %v3869 = vand.u32 %v2367, 4294901760
      %3870 = vmatpush1.msra.mxu0 %v3869
      %3871 = vmatprep.subr.mxu0 0.0
      %v3872 = vand.u32 %v2366, 4294901760
      %3873 = vmatpush1.msra.mxu0 %v3872
      %3874 = vmatprep.subr.mxu0 0.0
      %v3875 = vand.u32 %v2365, 4294901760
      %3876 = vmatpush1.msra.mxu0 %v3875
      %3877 = vmatprep.subr.mxu0 0.0
      %v3878 = vand.u32 %v2364, 4294901760
      %3879 = vmatpush1.msra.mxu0 %v3878
      %3880 = vmatprep.subr.mxu0 0.0
      %3881 = vmatpush2.msra.mxu0 0.0
      %3882 = vmatprep.subr.mxu0 0.0
      %3883 = vmatpush2.msra.mxu0 0.0
      %3884 = vmatprep.subr.mxu0 0.0
      %3885 = vmatpush2.msra.mxu0 0.0
      %3886 = vmatprep.subr.mxu0 0.0
      %3887 = vmatpush2.msra.mxu0 0.0
      %3888 = vmatprep.subr.mxu0 0.0
      %3889 = vmatpush2.msra.mxu0 0.0
      %3890 = vmatprep.subr.mxu0 0.0
      %3891 = vmatpush2.msra.mxu0 0.0
      %3892 = vmatprep.subr.mxu0 0.0
      %3893 = vmatpush2.msra.mxu0 0.0
      %3894 = vmatprep.subr.mxu0 0.0
      %3895 = vmatpush2.msra.mxu0 0.0
      %3896 = vmatprep.subr.mxu0 0.0
      %3897 = vmatpush2.msra.mxu0 0.0
      %3898 = vmatprep.subr.mxu0 0.0
      %3899 = vmatpush2.msra.mxu0 0.0
      %3900 = vmatprep.subr.mxu0 0.0
      %3901 = vmatpush2.msra.mxu0 0.0
      %3902 = vmatprep.subr.mxu0 0.0
      %3903 = vmatpush2.msra.mxu0 0.0
      %3904 = vmatprep.subr.mxu0 0.0
      %3905 = vmatpush2.msra.mxu0 0.0
      %3906 = vmatprep.subr.mxu0 0.0
      %3907 = vmatpush2.msra.mxu0 0.0
      %3908 = vmatprep.subr.mxu0 0.0
      %3909 = vmatpush2.msra.mxu0 0.0
      %3910 = vmatprep.subr.mxu0 0.0
      %3911 = vmatpush2.msra.mxu0 0.0
      %3912 = vmatprep.mubr.f32.mxu0 0.0
      %v3913 = vand.u32 %v2401, 4294901760
      %3914 = vmatmul.mubr.f32.gmra.mxu0 %v3913
      %v3915 = vpop.f32.mrf.mxu0
      %v3916 = vadd.f32 %v3829, %v3915
      %v3917 = vpop.f32.mrf.mxu0
      %3918 = vdwg.mxu0
      %v3919 = vmul.f32 %v3270, %v3916
      %v3920 = vadd.f32 %v2408, %v3919
      %v3921 = vtanh.pop %v3920
      %v3922 = vsub.f32 1.0, %v3277
      %v3923 = vmul.f32 %v3922, %v3921
      %v3924 = vmul.f32 %v3277, %v2401
      %v3925 = vadd.f32 %v3923, %v3924
      %v3926 = vmul.f32 %v3925, %v2392
      %3927 = vadd.xlane.f32.xlu0 %v3926
      %v3928 = vpop.xlane.xlu0 %3927
      %v3930 = vlaneseq
      %v3931 = vand.u32 %v3930, 127
      %v3932 = vlaneseq
      %v3933 = vshrl.u32 %v3932, 7
      %v3934 = vsub.s32 %v3931, %v3933
      %v3935 = vrot.slane %v3928, %v3934
      %s3937 = scalar_lea.vmem [#allocation4], %s2402
      %vm3938 = vcmask 57344
      %3939 = vst.msk [vmem:[%s3937] sm:$0x1] %vm3938, %v3935
      %s3940 = sadd.s32 %s2402, 1
      %s3941 = smul.u32 %s3940, 3
      %s3942 = smul.addr %s3941, 8
      %s3943 = scalar_lea.vmem [#allocation2], %s3942
      %v3944 = vld [vmem:[%s3943] sm:$0xff]
      %v3945 = vld [vmem:[%s3943 + $0x8] sm:$0xff]
      %v3946 = vld [vmem:[%s3943 + $0x10] sm:$0xff]
      %v3947 = vand.u32 %v2363, 4294901760
      %3948 = vmatprep.subr.mxu0 %v3947
      %v3949 = vand.u32 %v2362, 4294901760
      %3950 = vmatpush1.msra.mxu0 %v3949
      %v3951 = vand.u32 %v2361, 4294901760
      %3952 = vmatprep.subr.mxu0 %v3951
      %v3953 = vand.u32 %v2360, 4294901760
      %3954 = vmatpush1.msra.mxu0 %v3953
      %v3955 = vand.u32 %v2359, 4294901760
      %3956 = vmatprep.subr.mxu0 %v3955
      %v3957 = vand.u32 %v2358, 4294901760
      %3958 = vmatpush1.msra.mxu0 %v3957
      %v3959 = vand.u32 %v2357, 4294901760
      %3960 = vmatprep.subr.mxu0 %v3959
      %v3961 = vand.u32 %v2356, 4294901760
      %3962 = vmatpush1.msra.mxu0 %v3961
      %v3963 = vand.u32 %v2355, 4294901760
      %3964 = vmatprep.subr.mxu0 %v3963
      %v3965 = vand.u32 %v2354, 4294901760
      %3966 = vmatpush1.msra.mxu0 %v3965
      %v3967 = vand.u32 %v2353, 4294901760
      %3968 = vmatprep.subr.mxu0 %v3967
      %v3969 = vand.u32 %v2352, 4294901760
      %3970 = vmatpush1.msra.mxu0 %v3969
      %v3971 = vand.u32 %v2351, 4294901760
      %3972 = vmatprep.subr.mxu0 %v3971
      %v3973 = vand.u32 %v2350, 4294901760
      %3974 = vmatpush1.msra.mxu0 %v3973
      %v3975 = vand.u32 %v2349, 4294901760
      %3976 = vmatprep.subr.mxu0 %v3975
      %v3977 = vand.u32 %v2348, 4294901760
      %3978 = vmatpush1.msra.mxu0 %v3977
      %v3979 = vand.u32 %v2347, 4294901760
      %3980 = vmatprep.subr.mxu0 %v3979
      %v3981 = vand.u32 %v2346, 4294901760
      %3982 = vmatpush1.msra.mxu0 %v3981
      %v3983 = vand.u32 %v2345, 4294901760
      %3984 = vmatprep.subr.mxu0 %v3983
      %v3985 = vand.u32 %v2344, 4294901760
      %3986 = vmatpush1.msra.mxu0 %v3985
      %v3987 = vand.u32 %v2343, 4294901760
      %3988 = vmatprep.subr.mxu0 %v3987
      %v3989 = vand.u32 %v2342, 4294901760
      %3990 = vmatpush1.msra.mxu0 %v3989
      %v3991 = vand.u32 %v2341, 4294901760
      %3992 = vmatprep.subr.mxu0 %v3991
      %v3993 = vand.u32 %v2340, 4294901760
      %3994 = vmatpush1.msra.mxu0 %v3993
      %v3995 = vand.u32 %v2339, 4294901760
      %3996 = vmatprep.subr.mxu0 %v3995
      %v3997 = vand.u32 %v2338, 4294901760
      %3998 = vmatpush1.msra.mxu0 %v3997
      %v3999 = vand.u32 %v2337, 4294901760
      %4000 = vmatprep.subr.mxu0 %v3999
      %v4001 = vand.u32 %v2336, 4294901760
      %4002 = vmatpush1.msra.mxu0 %v4001
      %v4003 = vand.u32 %v2335, 4294901760
      %4004 = vmatprep.subr.mxu0 %v4003
      %v4005 = vand.u32 %v2334, 4294901760
      %4006 = vmatpush1.msra.mxu0 %v4005
      %v4007 = vand.u32 %v2333, 4294901760
      %4008 = vmatprep.subr.mxu0 %v4007
      %v4009 = vand.u32 %v2332, 4294901760
      %4010 = vmatpush1.msra.mxu0 %v4009
      %4011 = vmatprep.subr.mxu0 0.0
      %4012 = vmatpush2.msra.mxu0 0.0
      %4013 = vmatprep.subr.mxu0 0.0
      %4014 = vmatpush2.msra.mxu0 0.0
      %4015 = vmatprep.subr.mxu0 0.0
      %4016 = vmatpush2.msra.mxu0 0.0
      %4017 = vmatprep.subr.mxu0 0.0
      %4018 = vmatpush2.msra.mxu0 0.0
      %4019 = vmatprep.subr.mxu0 0.0
      %4020 = vmatpush2.msra.mxu0 0.0
      %4021 = vmatprep.subr.mxu0 0.0
      %4022 = vmatpush2.msra.mxu0 0.0
      %4023 = vmatprep.subr.mxu0 0.0
      %4024 = vmatpush2.msra.mxu0 0.0
      %4025 = vmatprep.subr.mxu0 0.0
      %4026 = vmatpush2.msra.mxu0 0.0
      %4027 = vmatprep.subr.mxu0 0.0
      %4028 = vmatpush2.msra.mxu0 0.0
      %4029 = vmatprep.subr.mxu0 0.0
      %4030 = vmatpush2.msra.mxu0 0.0
      %4031 = vmatprep.subr.mxu0 0.0
      %4032 = vmatpush2.msra.mxu0 0.0
      %4033 = vmatprep.subr.mxu0 0.0
      %4034 = vmatpush2.msra.mxu0 0.0
      %4035 = vmatprep.subr.mxu0 0.0
      %4036 = vmatpush2.msra.mxu0 0.0
      %4037 = vmatprep.subr.mxu0 0.0
      %4038 = vmatpush2.msra.mxu0 0.0
      %4039 = vmatprep.subr.mxu0 0.0
      %4040 = vmatpush2.msra.mxu0 0.0
      %4041 = vmatprep.subr.mxu0 0.0
      %4042 = vmatpush2.msra.mxu0 0.0
      %4043 = vmatprep.mubr.f32.mxu0 0.0
      %v4044 = vand.u32 %v3925, 4294901760
      %v4045 = vsub.f32 %v3925, %v4044
      %v4046 = vand.u32 %v4045, 4294901760
      %v4047 = vsub.f32 %v4045, %v4046
      %v4048 = vand.u32 %v4047, 4294901760
      %4049 = vmatmul.mubr.f32.gmra.mxu0 %v4048
      %v4050 = vpop.f32.mrf.mxu0
      %v4051 = vadd.f32 0.0, %v4050
      %v4052 = vpop.f32.mrf.mxu0
      %v4053 = vadd.f32 0.0, %v4052
      %4054 = vdwg.mxu0
      %v4055 = vand.u32 %v2363, 4294901760
      %v4056 = vsub.f32 %v2363, %v4055
      %v4057 = vand.u32 %v4056, 4294901760
      %v4058 = vsub.f32 %v4056, %v4057
      %v4059 = vand.u32 %v4058, 4294901760
      %4060 = vmatprep.subr.mxu0 %v4059
      %v4061 = vand.u32 %v2362, 4294901760
      %v4062 = vsub.f32 %v2362, %v4061
      %v4063 = vand.u32 %v4062, 4294901760
      %v4064 = vsub.f32 %v4062, %v4063
      %v4065 = vand.u32 %v4064, 4294901760
      %4066 = vmatpush1.msra.mxu0 %v4065
      %v4067 = vand.u32 %v2361, 4294901760
      %v4068 = vsub.f32 %v2361, %v4067
      %v4069 = vand.u32 %v4068, 4294901760
      %v4070 = vsub.f32 %v4068, %v4069
      %v4071 = vand.u32 %v4070, 4294901760
      %4072 = vmatprep.subr.mxu0 %v4071
      %v4073 = vand.u32 %v2360, 4294901760
      %v4074 = vsub.f32 %v2360, %v4073
      %v4075 = vand.u32 %v4074, 4294901760
      %v4076 = vsub.f32 %v4074, %v4075
      %v4077 = vand.u32 %v4076, 4294901760
      %4078 = vmatpush1.msra.mxu0 %v4077
      %v4079 = vand.u32 %v2359, 4294901760
      %v4080 = vsub.f32 %v2359, %v4079
      %v4081 = vand.u32 %v4080, 4294901760
      %v4082 = vsub.f32 %v4080, %v4081
      %v4083 = vand.u32 %v4082, 4294901760
      %4084 = vmatprep.subr.mxu0 %v4083
      %v4085 = vand.u32 %v2358, 4294901760
      %v4086 = vsub.f32 %v2358, %v4085
      %v4087 = vand.u32 %v4086, 4294901760
      %v4088 = vsub.f32 %v4086, %v4087
      %v4089 = vand.u32 %v4088, 4294901760
      %4090 = vmatpush1.msra.mxu0 %v4089
      %v4091 = vand.u32 %v2357, 4294901760
      %v4092 = vsub.f32 %v2357, %v4091
      %v4093 = vand.u32 %v4092, 4294901760
      %v4094 = vsub.f32 %v4092, %v4093
      %v4095 = vand.u32 %v4094, 4294901760
      %4096 = vmatprep.subr.mxu0 %v4095
      %v4097 = vand.u32 %v2356, 4294901760
      %v4098 = vsub.f32 %v2356, %v4097
      %v4099 = vand.u32 %v4098, 4294901760
      %v4100 = vsub.f32 %v4098, %v4099
      %v4101 = vand.u32 %v4100, 4294901760
      %4102 = vmatpush1.msra.mxu0 %v4101
      %v4103 = vand.u32 %v2355, 4294901760
      %v4104 = vsub.f32 %v2355, %v4103
      %v4105 = vand.u32 %v4104, 4294901760
      %v4106 = vsub.f32 %v4104, %v4105
      %v4107 = vand.u32 %v4106, 4294901760
      %4108 = vmatprep.subr.mxu0 %v4107
      %v4109 = vand.u32 %v2354, 4294901760
      %v4110 = vsub.f32 %v2354, %v4109
      %v4111 = vand.u32 %v4110, 4294901760
      %v4112 = vsub.f32 %v4110, %v4111
      %v4113 = vand.u32 %v4112, 4294901760
      %4114 = vmatpush1.msra.mxu0 %v4113
      %v4115 = vand.u32 %v2353, 4294901760
      %v4116 = vsub.f32 %v2353, %v4115
      %v4117 = vand.u32 %v4116, 4294901760
      %v4118 = vsub.f32 %v4116, %v4117
      %v4119 = vand.u32 %v4118, 4294901760
      %4120 = vmatprep.subr.mxu0 %v4119
      %v4121 = vand.u32 %v2352, 4294901760
      %v4122 = vsub.f32 %v2352, %v4121
      %v4123 = vand.u32 %v4122, 4294901760
      %v4124 = vsub.f32 %v4122, %v4123
      %v4125 = vand.u32 %v4124, 4294901760
      %4126 = vmatpush1.msra.mxu0 %v4125
      %v4127 = vand.u32 %v2351, 4294901760
      %v4128 = vsub.f32 %v2351, %v4127
      %v4129 = vand.u32 %v4128, 4294901760
      %v4130 = vsub.f32 %v4128, %v4129
      %v4131 = vand.u32 %v4130, 4294901760
      %4132 = vmatprep.subr.mxu0 %v4131
      %v4133 = vand.u32 %v2350, 4294901760
      %v4134 = vsub.f32 %v2350, %v4133
      %v4135 = vand.u32 %v4134, 4294901760
      %v4136 = vsub.f32 %v4134, %v4135
      %v4137 = vand.u32 %v4136, 4294901760
      %4138 = vmatpush1.msra.mxu0 %v4137
      %v4139 = vand.u32 %v2349, 4294901760
      %v4140 = vsub.f32 %v2349, %v4139
      %v4141 = vand.u32 %v4140, 4294901760
      %v4142 = vsub.f32 %v4140, %v4141
      %v4143 = vand.u32 %v4142, 4294901760
      %4144 = vmatprep.subr.mxu0 %v4143
      %v4145 = vand.u32 %v2348, 4294901760
      %v4146 = vsub.f32 %v2348, %v4145
      %v4147 = vand.u32 %v4146, 4294901760
      %v4148 = vsub.f32 %v4146, %v4147
      %v4149 = vand.u32 %v4148, 4294901760
      %4150 = vmatpush1.msra.mxu0 %v4149
      %v4151 = vand.u32 %v2347, 4294901760
      %v4152 = vsub.f32 %v2347, %v4151
      %v4153 = vand.u32 %v4152, 4294901760
      %v4154 = vsub.f32 %v4152, %v4153
      %v4155 = vand.u32 %v4154, 4294901760
      %4156 = vmatprep.subr.mxu0 %v4155
      %v4157 = vand.u32 %v2346, 4294901760
      %v4158 = vsub.f32 %v2346, %v4157
      %v4159 = vand.u32 %v4158, 4294901760
      %v4160 = vsub.f32 %v4158, %v4159
      %v4161 = vand.u32 %v4160, 4294901760
      %4162 = vmatpush1.msra.mxu0 %v4161
      %v4163 = vand.u32 %v2345, 4294901760
      %v4164 = vsub.f32 %v2345, %v4163
      %v4165 = vand.u32 %v4164, 4294901760
      %v4166 = vsub.f32 %v4164, %v4165
      %v4167 = vand.u32 %v4166, 4294901760
      %4168 = vmatprep.subr.mxu0 %v4167
      %v4169 = vand.u32 %v2344, 4294901760
      %v4170 = vsub.f32 %v2344, %v4169
      %v4171 = vand.u32 %v4170, 4294901760
      %v4172 = vsub.f32 %v4170, %v4171
      %v4173 = vand.u32 %v4172, 4294901760
      %4174 = vmatpush1.msra.mxu0 %v4173
      %v4175 = vand.u32 %v2343, 4294901760
      %v4176 = vsub.f32 %v2343, %v4175
      %v4177 = vand.u32 %v4176, 4294901760
      %v4178 = vsub.f32 %v4176, %v4177
      %v4179 = vand.u32 %v4178, 4294901760
      %4180 = vmatprep.subr.mxu0 %v4179
      %v4181 = vand.u32 %v2342, 4294901760
      %v4182 = vsub.f32 %v2342, %v4181
      %v4183 = vand.u32 %v4182, 4294901760
      %v4184 = vsub.f32 %v4182, %v4183
      %v4185 = vand.u32 %v4184, 4294901760
      %4186 = vmatpush1.msra.mxu0 %v4185
      %v4187 = vand.u32 %v2341, 4294901760
      %v4188 = vsub.f32 %v2341, %v4187
      %v4189 = vand.u32 %v4188, 4294901760
      %v4190 = vsub.f32 %v4188, %v4189
      %v4191 = vand.u32 %v4190, 4294901760
      %4192 = vmatprep.subr.mxu0 %v4191
      %v4193 = vand.u32 %v2340, 4294901760
      %v4194 = vsub.f32 %v2340, %v4193
      %v4195 = vand.u32 %v4194, 4294901760
      %v4196 = vsub.f32 %v4194, %v4195
      %v4197 = vand.u32 %v4196, 4294901760
      %4198 = vmatpush1.msra.mxu0 %v4197
      %v4199 = vand.u32 %v2339, 4294901760
      %v4200 = vsub.f32 %v2339, %v4199
      %v4201 = vand.u32 %v4200, 4294901760
      %v4202 = vsub.f32 %v4200, %v4201
      %v4203 = vand.u32 %v4202, 4294901760
      %4204 = vmatprep.subr.mxu0 %v4203
      %v4205 = vand.u32 %v2338, 4294901760
      %v4206 = vsub.f32 %v2338, %v4205
      %v4207 = vand.u32 %v4206, 4294901760
      %v4208 = vsub.f32 %v4206, %v4207
      %v4209 = vand.u32 %v4208, 4294901760
      %4210 = vmatpush1.msra.mxu0 %v4209
      %v4211 = vand.u32 %v2337, 4294901760
      %v4212 = vsub.f32 %v2337, %v4211
      %v4213 = vand.u32 %v4212, 4294901760
      %v4214 = vsub.f32 %v4212, %v4213
      %v4215 = vand.u32 %v4214, 4294901760
      %4216 = vmatprep.subr.mxu0 %v4215
      %v4217 = vand.u32 %v2336, 4294901760
      %v4218 = vsub.f32 %v2336, %v4217
      %v4219 = vand.u32 %v4218, 4294901760
      %v4220 = vsub.f32 %v4218, %v4219
      %v4221 = vand.u32 %v4220, 4294901760
      %4222 = vmatpush1.msra.mxu0 %v4221
      %v4223 = vand.u32 %v2335, 4294901760
      %v4224 = vsub.f32 %v2335, %v4223
      %v4225 = vand.u32 %v4224, 4294901760
      %v4226 = vsub.f32 %v4224, %v4225
      %v4227 = vand.u32 %v4226, 4294901760
      %4228 = vmatprep.subr.mxu0 %v4227
      %v4229 = vand.u32 %v2334, 4294901760
      %v4230 = vsub.f32 %v2334, %v4229
      %v4231 = vand.u32 %v4230, 4294901760
      %v4232 = vsub.f32 %v4230, %v4231
      %v4233 = vand.u32 %v4232, 4294901760
      %4234 = vmatpush1.msra.mxu0 %v4233
      %v4235 = vand.u32 %v2333, 4294901760
      %v4236 = vsub.f32 %v2333, %v4235
      %v4237 = vand.u32 %v4236, 4294901760
      %v4238 = vsub.f32 %v4236, %v4237
      %v4239 = vand.u32 %v4238, 4294901760
      %4240 = vmatprep.subr.mxu0 %v4239
      %v4241 = vand.u32 %v2332, 4294901760
      %v4242 = vsub.f32 %v2332, %v4241
      %v4243 = vand.u32 %v4242, 4294901760
      %v4244 = vsub.f32 %v4242, %v4243
      %v4245 = vand.u32 %v4244, 4294901760
      %4246 = vmatpush1.msra.mxu0 %v4245
      %4247 = vmatprep.subr.mxu0 0.0
      %4248 = vmatpush2.msra.mxu0 0.0
      %4249 = vmatprep.subr.mxu0 0.0
      %4250 = vmatpush2.msra.mxu0 0.0
      %4251 = vmatprep.subr.mxu0 0.0
      %4252 = vmatpush2.msra.mxu0 0.0
      %4253 = vmatprep.subr.mxu0 0.0
      %4254 = vmatpush2.msra.mxu0 0.0
      %4255 = vmatprep.subr.mxu0 0.0
      %4256 = vmatpush2.msra.mxu0 0.0
      %4257 = vmatprep.subr.mxu0 0.0
      %4258 = vmatpush2.msra.mxu0 0.0
      %4259 = vmatprep.subr.mxu0 0.0
      %4260 = vmatpush2.msra.mxu0 0.0
      %4261 = vmatprep.subr.mxu0 0.0
      %4262 = vmatpush2.msra.mxu0 0.0
      %4263 = vmatprep.subr.mxu0 0.0
      %4264 = vmatpush2.msra.mxu0 0.0
      %4265 = vmatprep.subr.mxu0 0.0
      %4266 = vmatpush2.msra.mxu0 0.0
      %4267 = vmatprep.subr.mxu0 0.0
      %4268 = vmatpush2.msra.mxu0 0.0
      %4269 = vmatprep.subr.mxu0 0.0
      %4270 = vmatpush2.msra.mxu0 0.0
      %4271 = vmatprep.subr.mxu0 0.0
      %4272 = vmatpush2.msra.mxu0 0.0
      %4273 = vmatprep.subr.mxu0 0.0
      %4274 = vmatpush2.msra.mxu0 0.0
      %4275 = vmatprep.subr.mxu0 0.0
      %4276 = vmatpush2.msra.mxu0 0.0
      %4277 = vmatprep.subr.mxu0 0.0
      %4278 = vmatpush2.msra.mxu0 0.0
      %4279 = vmatprep.mubr.f32.mxu0 0.0
      %v4280 = vand.u32 %v3925, 4294901760
      %4281 = vmatmul.mubr.f32.gmra.mxu0 %v4280
      %v4282 = vpop.f32.mrf.mxu0
      %v4283 = vadd.f32 %v4051, %v4282
      %v4284 = vpop.f32.mrf.mxu0
      %v4285 = vadd.f32 %v4053, %v4284
      %4286 = vdwg.mxu0
      %v4287 = vand.u32 %v2363, 4294901760
      %v4288 = vsub.f32 %v2363, %v4287
      %4289 = vmatprep.subr.mxu0 %v4288
      %v4290 = vand.u32 %v2362, 4294901760
      %v4291 = vsub.f32 %v2362, %v4290
      %4292 = vmatpush1.msra.mxu0 %v4291
      %v4293 = vand.u32 %v2361, 4294901760
      %v4294 = vsub.f32 %v2361, %v4293
      %4295 = vmatprep.subr.mxu0 %v4294
      %v4296 = vand.u32 %v2360, 4294901760
      %v4297 = vsub.f32 %v2360, %v4296
      %4298 = vmatpush1.msra.mxu0 %v4297
      %v4299 = vand.u32 %v2359, 4294901760
      %v4300 = vsub.f32 %v2359, %v4299
      %4301 = vmatprep.subr.mxu0 %v4300
      %v4302 = vand.u32 %v2358, 4294901760
      %v4303 = vsub.f32 %v2358, %v4302
      %4304 = vmatpush1.msra.mxu0 %v4303
      %v4305 = vand.u32 %v2357, 4294901760
      %v4306 = vsub.f32 %v2357, %v4305
      %4307 = vmatprep.subr.mxu0 %v4306
      %v4308 = vand.u32 %v2356, 4294901760
      %v4309 = vsub.f32 %v2356, %v4308
      %4310 = vmatpush1.msra.mxu0 %v4309
      %v4311 = vand.u32 %v2355, 4294901760
      %v4312 = vsub.f32 %v2355, %v4311
      %4313 = vmatprep.subr.mxu0 %v4312
      %v4314 = vand.u32 %v2354, 4294901760
      %v4315 = vsub.f32 %v2354, %v4314
      %4316 = vmatpush1.msra.mxu0 %v4315
      %v4317 = vand.u32 %v2353, 4294901760
      %v4318 = vsub.f32 %v2353, %v4317
      %4319 = vmatprep.subr.mxu0 %v4318
      %v4320 = vand.u32 %v2352, 4294901760
      %v4321 = vsub.f32 %v2352, %v4320
      %4322 = vmatpush1.msra.mxu0 %v4321
      %v4323 = vand.u32 %v2351, 4294901760
      %v4324 = vsub.f32 %v2351, %v4323
      %4325 = vmatprep.subr.mxu0 %v4324
      %v4326 = vand.u32 %v2350, 4294901760
      %v4327 = vsub.f32 %v2350, %v4326
      %4328 = vmatpush1.msra.mxu0 %v4327
      %v4329 = vand.u32 %v2349, 4294901760
      %v4330 = vsub.f32 %v2349, %v4329
      %4331 = vmatprep.subr.mxu0 %v4330
      %v4332 = vand.u32 %v2348, 4294901760
      %v4333 = vsub.f32 %v2348, %v4332
      %4334 = vmatpush1.msra.mxu0 %v4333
      %v4335 = vand.u32 %v2347, 4294901760
      %v4336 = vsub.f32 %v2347, %v4335
      %4337 = vmatprep.subr.mxu0 %v4336
      %v4338 = vand.u32 %v2346, 4294901760
      %v4339 = vsub.f32 %v2346, %v4338
      %4340 = vmatpush1.msra.mxu0 %v4339
      %v4341 = vand.u32 %v2345, 4294901760
      %v4342 = vsub.f32 %v2345, %v4341
      %4343 = vmatprep.subr.mxu0 %v4342
      %v4344 = vand.u32 %v2344, 4294901760
      %v4345 = vsub.f32 %v2344, %v4344
      %4346 = vmatpush1.msra.mxu0 %v4345
      %v4347 = vand.u32 %v2343, 4294901760
      %v4348 = vsub.f32 %v2343, %v4347
      %4349 = vmatprep.subr.mxu0 %v4348
      %v4350 = vand.u32 %v2342, 4294901760
      %v4351 = vsub.f32 %v2342, %v4350
      %4352 = vmatpush1.msra.mxu0 %v4351
      %v4353 = vand.u32 %v2341, 4294901760
      %v4354 = vsub.f32 %v2341, %v4353
      %4355 = vmatprep.subr.mxu0 %v4354
      %v4356 = vand.u32 %v2340, 4294901760
      %v4357 = vsub.f32 %v2340, %v4356
      %4358 = vmatpush1.msra.mxu0 %v4357
      %v4359 = vand.u32 %v2339, 4294901760
      %v4360 = vsub.f32 %v2339, %v4359
      %4361 = vmatprep.subr.mxu0 %v4360
      %v4362 = vand.u32 %v2338, 4294901760
      %v4363 = vsub.f32 %v2338, %v4362
      %4364 = vmatpush1.msra.mxu0 %v4363
      %v4365 = vand.u32 %v2337, 4294901760
      %v4366 = vsub.f32 %v2337, %v4365
      %4367 = vmatprep.subr.mxu0 %v4366
      %v4368 = vand.u32 %v2336, 4294901760
      %v4369 = vsub.f32 %v2336, %v4368
      %4370 = vmatpush1.msra.mxu0 %v4369
      %v4371 = vand.u32 %v2335, 4294901760
      %v4372 = vsub.f32 %v2335, %v4371
      %4373 = vmatprep.subr.mxu0 %v4372
      %v4374 = vand.u32 %v2334, 4294901760
      %v4375 = vsub.f32 %v2334, %v4374
      %4376 = vmatpush1.msra.mxu0 %v4375
      %v4377 = vand.u32 %v2333, 4294901760
      %v4378 = vsub.f32 %v2333, %v4377
      %4379 = vmatprep.subr.mxu0 %v4378
      %v4380 = vand.u32 %v2332, 4294901760
      %v4381 = vsub.f32 %v2332, %v4380
      %4382 = vmatpush1.msra.mxu0 %v4381
      %4383 = vmatprep.subr.mxu0 0.0
      %4384 = vmatpush2.msra.mxu0 0.0
      %4385 = vmatprep.subr.mxu0 0.0
      %4386 = vmatpush2.msra.mxu0 0.0
      %4387 = vmatprep.subr.mxu0 0.0
      %4388 = vmatpush2.msra.mxu0 0.0
      %4389 = vmatprep.subr.mxu0 0.0
      %4390 = vmatpush2.msra.mxu0 0.0
      %4391 = vmatprep.subr.mxu0 0.0
      %4392 = vmatpush2.msra.mxu0 0.0
      %4393 = vmatprep.subr.mxu0 0.0
      %4394 = vmatpush2.msra.mxu0 0.0
      %4395 = vmatprep.subr.mxu0 0.0
      %4396 = vmatpush2.msra.mxu0 0.0
      %4397 = vmatprep.subr.mxu0 0.0
      %4398 = vmatpush2.msra.mxu0 0.0
      %4399 = vmatprep.subr.mxu0 0.0
      %4400 = vmatpush2.msra.mxu0 0.0
      %4401 = vmatprep.subr.mxu0 0.0
      %4402 = vmatpush2.msra.mxu0 0.0
      %4403 = vmatprep.subr.mxu0 0.0
      %4404 = vmatpush2.msra.mxu0 0.0
      %4405 = vmatprep.subr.mxu0 0.0
      %4406 = vmatpush2.msra.mxu0 0.0
      %4407 = vmatprep.subr.mxu0 0.0
      %4408 = vmatpush2.msra.mxu0 0.0
      %4409 = vmatprep.subr.mxu0 0.0
      %4410 = vmatpush2.msra.mxu0 0.0
      %4411 = vmatprep.subr.mxu0 0.0
      %4412 = vmatpush2.msra.mxu0 0.0
      %4413 = vmatprep.subr.mxu0 0.0
      %4414 = vmatpush2.msra.mxu0 0.0
      %4415 = vmatprep.mubr.f32.mxu0 0.0
      %v4416 = vand.u32 %v3925, 4294901760
      %v4417 = vsub.f32 %v3925, %v4416
      %4418 = vmatmul.mubr.f32.gmra.mxu0 %v4417
      %v4419 = vpop.f32.mrf.mxu0
      %v4420 = vadd.f32 %v4283, %v4419
      %v4421 = vpop.f32.mrf.mxu0
      %v4422 = vadd.f32 %v4285, %v4421
      %4423 = vdwg.mxu0
      %v4424 = vand.u32 %v2363, 4294901760
      %4425 = vmatprep.subr.mxu0 %v4424
      %v4426 = vand.u32 %v2362, 4294901760
      %4427 = vmatpush1.msra.mxu0 %v4426
      %v4428 = vand.u32 %v2361, 4294901760
      %4429 = vmatprep.subr.mxu0 %v4428
      %v4430 = vand.u32 %v2360, 4294901760
      %4431 = vmatpush1.msra.mxu0 %v4430
      %v4432 = vand.u32 %v2359, 4294901760
      %4433 = vmatprep.subr.mxu0 %v4432
      %v4434 = vand.u32 %v2358, 4294901760
      %4435 = vmatpush1.msra.mxu0 %v4434
      %v4436 = vand.u32 %v2357, 4294901760
      %4437 = vmatprep.subr.mxu0 %v4436
      %v4438 = vand.u32 %v2356, 4294901760
      %4439 = vmatpush1.msra.mxu0 %v4438
      %v4440 = vand.u32 %v2355, 4294901760
      %4441 = vmatprep.subr.mxu0 %v4440
      %v4442 = vand.u32 %v2354, 4294901760
      %4443 = vmatpush1.msra.mxu0 %v4442
      %v4444 = vand.u32 %v2353, 4294901760
      %4445 = vmatprep.subr.mxu0 %v4444
      %v4446 = vand.u32 %v2352, 4294901760
      %4447 = vmatpush1.msra.mxu0 %v4446
      %v4448 = vand.u32 %v2351, 4294901760
      %4449 = vmatprep.subr.mxu0 %v4448
      %v4450 = vand.u32 %v2350, 4294901760
      %4451 = vmatpush1.msra.mxu0 %v4450
      %v4452 = vand.u32 %v2349, 4294901760
      %4453 = vmatprep.subr.mxu0 %v4452
      %v4454 = vand.u32 %v2348, 4294901760
      %4455 = vmatpush1.msra.mxu0 %v4454
      %v4456 = vand.u32 %v2347, 4294901760
      %4457 = vmatprep.subr.mxu0 %v4456
      %v4458 = vand.u32 %v2346, 4294901760
      %4459 = vmatpush1.msra.mxu0 %v4458
      %v4460 = vand.u32 %v2345, 4294901760
      %4461 = vmatprep.subr.mxu0 %v4460
      %v4462 = vand.u32 %v2344, 4294901760
      %4463 = vmatpush1.msra.mxu0 %v4462
      %v4464 = vand.u32 %v2343, 4294901760
      %4465 = vmatprep.subr.mxu0 %v4464
      %v4466 = vand.u32 %v2342, 4294901760
      %4467 = vmatpush1.msra.mxu0 %v4466
      %v4468 = vand.u32 %v2341, 4294901760
      %4469 = vmatprep.subr.mxu0 %v4468
      %v4470 = vand.u32 %v2340, 4294901760
      %4471 = vmatpush1.msra.mxu0 %v4470
      %v4472 = vand.u32 %v2339, 4294901760
      %4473 = vmatprep.subr.mxu0 %v4472
      %v4474 = vand.u32 %v2338, 4294901760
      %4475 = vmatpush1.msra.mxu0 %v4474
      %v4476 = vand.u32 %v2337, 4294901760
      %4477 = vmatprep.subr.mxu0 %v4476
      %v4478 = vand.u32 %v2336, 4294901760
      %4479 = vmatpush1.msra.mxu0 %v4478
      %v4480 = vand.u32 %v2335, 4294901760
      %4481 = vmatprep.subr.mxu0 %v4480
      %v4482 = vand.u32 %v2334, 4294901760
      %4483 = vmatpush1.msra.mxu0 %v4482
      %v4484 = vand.u32 %v2333, 4294901760
      %4485 = vmatprep.subr.mxu0 %v4484
      %v4486 = vand.u32 %v2332, 4294901760
      %4487 = vmatpush1.msra.mxu0 %v4486
      %4488 = vmatprep.subr.mxu0 0.0
      %4489 = vmatpush2.msra.mxu0 0.0
      %4490 = vmatprep.subr.mxu0 0.0
      %4491 = vmatpush2.msra.mxu0 0.0
      %4492 = vmatprep.subr.mxu0 0.0
      %4493 = vmatpush2.msra.mxu0 0.0
      %4494 = vmatprep.subr.mxu0 0.0
      %4495 = vmatpush2.msra.mxu0 0.0
      %4496 = vmatprep.subr.mxu0 0.0
      %4497 = vmatpush2.msra.mxu0 0.0
      %4498 = vmatprep.subr.mxu0 0.0
      %4499 = vmatpush2.msra.mxu0 0.0
      %4500 = vmatprep.subr.mxu0 0.0
      %4501 = vmatpush2.msra.mxu0 0.0
      %4502 = vmatprep.subr.mxu0 0.0
      %4503 = vmatpush2.msra.mxu0 0.0
      %4504 = vmatprep.subr.mxu0 0.0
      %4505 = vmatpush2.msra.mxu0 0.0
      %4506 = vmatprep.subr.mxu0 0.0
      %4507 = vmatpush2.msra.mxu0 0.0
      %4508 = vmatprep.subr.mxu0 0.0
      %4509 = vmatpush2.msra.mxu0 0.0
      %4510 = vmatprep.subr.mxu0 0.0
      %4511 = vmatpush2.msra.mxu0 0.0
      %4512 = vmatprep.subr.mxu0 0.0
      %4513 = vmatpush2.msra.mxu0 0.0
      %4514 = vmatprep.subr.mxu0 0.0
      %4515 = vmatpush2.msra.mxu0 0.0
      %4516 = vmatprep.subr.mxu0 0.0
      %4517 = vmatpush2.msra.mxu0 0.0
      %4518 = vmatprep.subr.mxu0 0.0
      %4519 = vmatpush2.msra.mxu0 0.0
      %4520 = vmatprep.mubr.f32.mxu0 0.0
      %v4521 = vand.u32 %v3925, 4294901760
      %v4522 = vsub.f32 %v3925, %v4521
      %v4523 = vand.u32 %v4522, 4294901760
      %4524 = vmatmul.mubr.f32.gmra.mxu0 %v4523
      %v4525 = vpop.f32.mrf.mxu0
      %v4526 = vadd.f32 %v4420, %v4525
      %v4527 = vpop.f32.mrf.mxu0
      %v4528 = vadd.f32 %v4422, %v4527
      %4529 = vdwg.mxu0
      %v4530 = vand.u32 %v2363, 4294901760
      %v4531 = vsub.f32 %v2363, %v4530
      %v4532 = vand.u32 %v4531, 4294901760
      %4533 = vmatprep.subr.mxu0 %v4532
      %v4534 = vand.u32 %v2362, 4294901760
      %v4535 = vsub.f32 %v2362, %v4534
      %v4536 = vand.u32 %v4535, 4294901760
      %4537 = vmatpush1.msra.mxu0 %v4536
      %v4538 = vand.u32 %v2361, 4294901760
      %v4539 = vsub.f32 %v2361, %v4538
      %v4540 = vand.u32 %v4539, 4294901760
      %4541 = vmatprep.subr.mxu0 %v4540
      %v4542 = vand.u32 %v2360, 4294901760
      %v4543 = vsub.f32 %v2360, %v4542
      %v4544 = vand.u32 %v4543, 4294901760
      %4545 = vmatpush1.msra.mxu0 %v4544
      %v4546 = vand.u32 %v2359, 4294901760
      %v4547 = vsub.f32 %v2359, %v4546
      %v4548 = vand.u32 %v4547, 4294901760
      %4549 = vmatprep.subr.mxu0 %v4548
      %v4550 = vand.u32 %v2358, 4294901760
      %v4551 = vsub.f32 %v2358, %v4550
      %v4552 = vand.u32 %v4551, 4294901760
      %4553 = vmatpush1.msra.mxu0 %v4552
      %v4554 = vand.u32 %v2357, 4294901760
      %v4555 = vsub.f32 %v2357, %v4554
      %v4556 = vand.u32 %v4555, 4294901760
      %4557 = vmatprep.subr.mxu0 %v4556
      %v4558 = vand.u32 %v2356, 4294901760
      %v4559 = vsub.f32 %v2356, %v4558
      %v4560 = vand.u32 %v4559, 4294901760
      %4561 = vmatpush1.msra.mxu0 %v4560
      %v4562 = vand.u32 %v2355, 4294901760
      %v4563 = vsub.f32 %v2355, %v4562
      %v4564 = vand.u32 %v4563, 4294901760
      %4565 = vmatprep.subr.mxu0 %v4564
      %v4566 = vand.u32 %v2354, 4294901760
      %v4567 = vsub.f32 %v2354, %v4566
      %v4568 = vand.u32 %v4567, 4294901760
      %4569 = vmatpush1.msra.mxu0 %v4568
      %v4570 = vand.u32 %v2353, 4294901760
      %v4571 = vsub.f32 %v2353, %v4570
      %v4572 = vand.u32 %v4571, 4294901760
      %4573 = vmatprep.subr.mxu0 %v4572
      %v4574 = vand.u32 %v2352, 4294901760
      %v4575 = vsub.f32 %v2352, %v4574
      %v4576 = vand.u32 %v4575, 4294901760
      %4577 = vmatpush1.msra.mxu0 %v4576
      %v4578 = vand.u32 %v2351, 4294901760
      %v4579 = vsub.f32 %v2351, %v4578
      %v4580 = vand.u32 %v4579, 4294901760
      %4581 = vmatprep.subr.mxu0 %v4580
      %v4582 = vand.u32 %v2350, 4294901760
      %v4583 = vsub.f32 %v2350, %v4582
      %v4584 = vand.u32 %v4583, 4294901760
      %4585 = vmatpush1.msra.mxu0 %v4584
      %v4586 = vand.u32 %v2349, 4294901760
      %v4587 = vsub.f32 %v2349, %v4586
      %v4588 = vand.u32 %v4587, 4294901760
      %4589 = vmatprep.subr.mxu0 %v4588
      %v4590 = vand.u32 %v2348, 4294901760
      %v4591 = vsub.f32 %v2348, %v4590
      %v4592 = vand.u32 %v4591, 4294901760
      %4593 = vmatpush1.msra.mxu0 %v4592
      %v4594 = vand.u32 %v2347, 4294901760
      %v4595 = vsub.f32 %v2347, %v4594
      %v4596 = vand.u32 %v4595, 4294901760
      %4597 = vmatprep.subr.mxu0 %v4596
      %v4598 = vand.u32 %v2346, 4294901760
      %v4599 = vsub.f32 %v2346, %v4598
      %v4600 = vand.u32 %v4599, 4294901760
      %4601 = vmatpush1.msra.mxu0 %v4600
      %v4602 = vand.u32 %v2345, 4294901760
      %v4603 = vsub.f32 %v2345, %v4602
      %v4604 = vand.u32 %v4603, 4294901760
      %4605 = vmatprep.subr.mxu0 %v4604
      %v4606 = vand.u32 %v2344, 4294901760
      %v4607 = vsub.f32 %v2344, %v4606
      %v4608 = vand.u32 %v4607, 4294901760
      %4609 = vmatpush1.msra.mxu0 %v4608
      %v4610 = vand.u32 %v2343, 4294901760
      %v4611 = vsub.f32 %v2343, %v4610
      %v4612 = vand.u32 %v4611, 4294901760
      %4613 = vmatprep.subr.mxu0 %v4612
      %v4614 = vand.u32 %v2342, 4294901760
      %v4615 = vsub.f32 %v2342, %v4614
      %v4616 = vand.u32 %v4615, 4294901760
      %4617 = vmatpush1.msra.mxu0 %v4616
      %v4618 = vand.u32 %v2341, 4294901760
      %v4619 = vsub.f32 %v2341, %v4618
      %v4620 = vand.u32 %v4619, 4294901760
      %4621 = vmatprep.subr.mxu0 %v4620
      %v4622 = vand.u32 %v2340, 4294901760
      %v4623 = vsub.f32 %v2340, %v4622
      %v4624 = vand.u32 %v4623, 4294901760
      %4625 = vmatpush1.msra.mxu0 %v4624
      %v4626 = vand.u32 %v2339, 4294901760
      %v4627 = vsub.f32 %v2339, %v4626
      %v4628 = vand.u32 %v4627, 4294901760
      %4629 = vmatprep.subr.mxu0 %v4628
      %v4630 = vand.u32 %v2338, 4294901760
      %v4631 = vsub.f32 %v2338, %v4630
      %v4632 = vand.u32 %v4631, 4294901760
      %4633 = vmatpush1.msra.mxu0 %v4632
      %v4634 = vand.u32 %v2337, 4294901760
      %v4635 = vsub.f32 %v2337, %v4634
      %v4636 = vand.u32 %v4635, 4294901760
      %4637 = vmatprep.subr.mxu0 %v4636
      %v4638 = vand.u32 %v2336, 4294901760
      %v4639 = vsub.f32 %v2336, %v4638
      %v4640 = vand.u32 %v4639, 4294901760
      %4641 = vmatpush1.msra.mxu0 %v4640
      %v4642 = vand.u32 %v2335, 4294901760
      %v4643 = vsub.f32 %v2335, %v4642
      %v4644 = vand.u32 %v4643, 4294901760
      %4645 = vmatprep.subr.mxu0 %v4644
      %v4646 = vand.u32 %v2334, 4294901760
      %v4647 = vsub.f32 %v2334, %v4646
      %v4648 = vand.u32 %v4647, 4294901760
      %4649 = vmatpush1.msra.mxu0 %v4648
      %v4650 = vand.u32 %v2333, 4294901760
      %v4651 = vsub.f32 %v2333, %v4650
      %v4652 = vand.u32 %v4651, 4294901760
      %4653 = vmatprep.subr.mxu0 %v4652
      %v4654 = vand.u32 %v2332, 4294901760
      %v4655 = vsub.f32 %v2332, %v4654
      %v4656 = vand.u32 %v4655, 4294901760
      %4657 = vmatpush1.msra.mxu0 %v4656
      %4658 = vmatprep.subr.mxu0 0.0
      %4659 = vmatpush2.msra.mxu0 0.0
      %4660 = vmatprep.subr.mxu0 0.0
      %4661 = vmatpush2.msra.mxu0 0.0
      %4662 = vmatprep.subr.mxu0 0.0
      %4663 = vmatpush2.msra.mxu0 0.0
      %4664 = vmatprep.subr.mxu0 0.0
      %4665 = vmatpush2.msra.mxu0 0.0
      %4666 = vmatprep.subr.mxu0 0.0
      %4667 = vmatpush2.msra.mxu0 0.0
      %4668 = vmatprep.subr.mxu0 0.0
      %4669 = vmatpush2.msra.mxu0 0.0
      %4670 = vmatprep.subr.mxu0 0.0
      %4671 = vmatpush2.msra.mxu0 0.0
      %4672 = vmatprep.subr.mxu0 0.0
      %4673 = vmatpush2.msra.mxu0 0.0
      %4674 = vmatprep.subr.mxu0 0.0
      %4675 = vmatpush2.msra.mxu0 0.0
      %4676 = vmatprep.subr.mxu0 0.0
      %4677 = vmatpush2.msra.mxu0 0.0
      %4678 = vmatprep.subr.mxu0 0.0
      %4679 = vmatpush2.msra.mxu0 0.0
      %4680 = vmatprep.subr.mxu0 0.0
      %4681 = vmatpush2.msra.mxu0 0.0
      %4682 = vmatprep.subr.mxu0 0.0
      %4683 = vmatpush2.msra.mxu0 0.0
      %4684 = vmatprep.subr.mxu0 0.0
      %4685 = vmatpush2.msra.mxu0 0.0
      %4686 = vmatprep.subr.mxu0 0.0
      %4687 = vmatpush2.msra.mxu0 0.0
      %4688 = vmatprep.subr.mxu0 0.0
      %4689 = vmatpush2.msra.mxu0 0.0
      %4690 = vmatprep.mubr.f32.mxu0 0.0
      %v4691 = vand.u32 %v3925, 4294901760
      %4692 = vmatmul.mubr.f32.gmra.mxu0 %v4691
      %v4693 = vpop.f32.mrf.mxu0
      %v4694 = vadd.f32 %v4526, %v4693
      %v4695 = vpop.f32.mrf.mxu0
      %v4696 = vadd.f32 %v4528, %v4695
      %4697 = vdwg.mxu0
      %v4698 = vand.u32 %v2363, 4294901760
      %4699 = vmatprep.subr.mxu0 %v4698
      %v4700 = vand.u32 %v2362, 4294901760
      %4701 = vmatpush1.msra.mxu0 %v4700
      %v4702 = vand.u32 %v2361, 4294901760
      %4703 = vmatprep.subr.mxu0 %v4702
      %v4704 = vand.u32 %v2360, 4294901760
      %4705 = vmatpush1.msra.mxu0 %v4704
      %v4706 = vand.u32 %v2359, 4294901760
      %4707 = vmatprep.subr.mxu0 %v4706
      %v4708 = vand.u32 %v2358, 4294901760
      %4709 = vmatpush1.msra.mxu0 %v4708
      %v4710 = vand.u32 %v2357, 4294901760
      %4711 = vmatprep.subr.mxu0 %v4710
      %v4712 = vand.u32 %v2356, 4294901760
      %4713 = vmatpush1.msra.mxu0 %v4712
      %v4714 = vand.u32 %v2355, 4294901760
      %4715 = vmatprep.subr.mxu0 %v4714
      %v4716 = vand.u32 %v2354, 4294901760
      %4717 = vmatpush1.msra.mxu0 %v4716
      %v4718 = vand.u32 %v2353, 4294901760
      %4719 = vmatprep.subr.mxu0 %v4718
      %v4720 = vand.u32 %v2352, 4294901760
      %4721 = vmatpush1.msra.mxu0 %v4720
      %v4722 = vand.u32 %v2351, 4294901760
      %4723 = vmatprep.subr.mxu0 %v4722
      %v4724 = vand.u32 %v2350, 4294901760
      %4725 = vmatpush1.msra.mxu0 %v4724
      %v4726 = vand.u32 %v2349, 4294901760
      %4727 = vmatprep.subr.mxu0 %v4726
      %v4728 = vand.u32 %v2348, 4294901760
      %4729 = vmatpush1.msra.mxu0 %v4728
      %v4730 = vand.u32 %v2347, 4294901760
      %4731 = vmatprep.subr.mxu0 %v4730
      %v4732 = vand.u32 %v2346, 4294901760
      %4733 = vmatpush1.msra.mxu0 %v4732
      %v4734 = vand.u32 %v2345, 4294901760
      %4735 = vmatprep.subr.mxu0 %v4734
      %v4736 = vand.u32 %v2344, 4294901760
      %4737 = vmatpush1.msra.mxu0 %v4736
      %v4738 = vand.u32 %v2343, 4294901760
      %4739 = vmatprep.subr.mxu0 %v4738
      %v4740 = vand.u32 %v2342, 4294901760
      %4741 = vmatpush1.msra.mxu0 %v4740
      %v4742 = vand.u32 %v2341, 4294901760
      %4743 = vmatprep.subr.mxu0 %v4742
      %v4744 = vand.u32 %v2340, 4294901760
      %4745 = vmatpush1.msra.mxu0 %v4744
      %v4746 = vand.u32 %v2339, 4294901760
      %4747 = vmatprep.subr.mxu0 %v4746
      %v4748 = vand.u32 %v2338, 4294901760
      %4749 = vmatpush1.msra.mxu0 %v4748
      %v4750 = vand.u32 %v2337, 4294901760
      %4751 = vmatprep.subr.mxu0 %v4750
      %v4752 = vand.u32 %v2336, 4294901760
      %4753 = vmatpush1.msra.mxu0 %v4752
      %v4754 = vand.u32 %v2335, 4294901760
      %4755 = vmatprep.subr.mxu0 %v4754
      %v4756 = vand.u32 %v2334, 4294901760
      %4757 = vmatpush1.msra.mxu0 %v4756
      %v4758 = vand.u32 %v2333, 4294901760
      %4759 = vmatprep.subr.mxu0 %v4758
      %v4760 = vand.u32 %v2332, 4294901760
      %4761 = vmatpush1.msra.mxu0 %v4760
      %4762 = vmatprep.subr.mxu0 0.0
      %4763 = vmatpush2.msra.mxu0 0.0
      %4764 = vmatprep.subr.mxu0 0.0
      %4765 = vmatpush2.msra.mxu0 0.0
      %4766 = vmatprep.subr.mxu0 0.0
      %4767 = vmatpush2.msra.mxu0 0.0
      %4768 = vmatprep.subr.mxu0 0.0
      %4769 = vmatpush2.msra.mxu0 0.0
      %4770 = vmatprep.subr.mxu0 0.0
      %4771 = vmatpush2.msra.mxu0 0.0
      %4772 = vmatprep.subr.mxu0 0.0
      %4773 = vmatpush2.msra.mxu0 0.0
      %4774 = vmatprep.subr.mxu0 0.0
      %4775 = vmatpush2.msra.mxu0 0.0
      %4776 = vmatprep.subr.mxu0 0.0
      %4777 = vmatpush2.msra.mxu0 0.0
      %4778 = vmatprep.subr.mxu0 0.0
      %4779 = vmatpush2.msra.mxu0 0.0
      %4780 = vmatprep.subr.mxu0 0.0
      %4781 = vmatpush2.msra.mxu0 0.0
      %4782 = vmatprep.subr.mxu0 0.0
      %4783 = vmatpush2.msra.mxu0 0.0
      %4784 = vmatprep.subr.mxu0 0.0
      %4785 = vmatpush2.msra.mxu0 0.0
      %4786 = vmatprep.subr.mxu0 0.0
      %4787 = vmatpush2.msra.mxu0 0.0
      %4788 = vmatprep.subr.mxu0 0.0
      %4789 = vmatpush2.msra.mxu0 0.0
      %4790 = vmatprep.subr.mxu0 0.0
      %4791 = vmatpush2.msra.mxu0 0.0
      %4792 = vmatprep.subr.mxu0 0.0
      %4793 = vmatpush2.msra.mxu0 0.0
      %4794 = vmatprep.mubr.f32.mxu0 0.0
      %v4795 = vand.u32 %v3925, 4294901760
      %4796 = vmatmul.mubr.f32.gmra.mxu0 %v4795
      %v4797 = vpop.f32.mrf.mxu0
      %v4798 = vadd.f32 %v4694, %v4797
      %v4799 = vpop.f32.mrf.mxu0
      %v4800 = vadd.f32 %v4696, %v4799
      %4801 = vdwg.mxu0
      %v4802 = vadd.f32 %v3944, %v4798
      %v4803 = vxor.u32 %v4802, 2147483648
      %v4804 = vmul.f32 %v4803, 1.442695
      %v4805 = vpow.pop %v4804
      %v4806 = vadd.f32 %v4805, 1.0
      %v4807 = vrcp.pop %v4806
      %v4808 = vmul.f32 1.0, %v4807
      %v4809 = vadd.f32 %v3945, %v4800
      %v4810 = vxor.u32 %v4809, 2147483648
      %v4811 = vmul.f32 %v4810, 1.442695
      %v4812 = vpow.pop %v4811
      %v4813 = vadd.f32 %v4812, 1.0
      %v4814 = vrcp.pop %v4813
      %v4815 = vmul.f32 1.0, %v4814
      %4816 = vmatprep.subr.mxu0 0.0
      %v4817 = vand.u32 %v2379, 4294901760
      %4818 = vmatpush1.msra.mxu0 %v4817
      %4819 = vmatprep.subr.mxu0 0.0
      %v4820 = vand.u32 %v2378, 4294901760
      %4821 = vmatpush1.msra.mxu0 %v4820
      %4822 = vmatprep.subr.mxu0 0.0
      %v4823 = vand.u32 %v2377, 4294901760
      %4824 = vmatpush1.msra.mxu0 %v4823
      %4825 = vmatprep.subr.mxu0 0.0
      %v4826 = vand.u32 %v2376, 4294901760
      %4827 = vmatpush1.msra.mxu0 %v4826
      %4828 = vmatprep.subr.mxu0 0.0
      %v4829 = vand.u32 %v2375, 4294901760
      %4830 = vmatpush1.msra.mxu0 %v4829
      %4831 = vmatprep.subr.mxu0 0.0
      %v4832 = vand.u32 %v2374, 4294901760
      %4833 = vmatpush1.msra.mxu0 %v4832
      %4834 = vmatprep.subr.mxu0 0.0
      %v4835 = vand.u32 %v2373, 4294901760
      %4836 = vmatpush1.msra.mxu0 %v4835
      %4837 = vmatprep.subr.mxu0 0.0
      %v4838 = vand.u32 %v2372, 4294901760
      %4839 = vmatpush1.msra.mxu0 %v4838
      %4840 = vmatprep.subr.mxu0 0.0
      %v4841 = vand.u32 %v2371, 4294901760
      %4842 = vmatpush1.msra.mxu0 %v4841
      %4843 = vmatprep.subr.mxu0 0.0
      %v4844 = vand.u32 %v2370, 4294901760
      %4845 = vmatpush1.msra.mxu0 %v4844
      %4846 = vmatprep.subr.mxu0 0.0
      %v4847 = vand.u32 %v2369, 4294901760
      %4848 = vmatpush1.msra.mxu0 %v4847
      %4849 = vmatprep.subr.mxu0 0.0
      %v4850 = vand.u32 %v2368, 4294901760
      %4851 = vmatpush1.msra.mxu0 %v4850
      %4852 = vmatprep.subr.mxu0 0.0
      %v4853 = vand.u32 %v2367, 4294901760
      %4854 = vmatpush1.msra.mxu0 %v4853
      %4855 = vmatprep.subr.mxu0 0.0
      %v4856 = vand.u32 %v2366, 4294901760
      %4857 = vmatpush1.msra.mxu0 %v4856
      %4858 = vmatprep.subr.mxu0 0.0
      %v4859 = vand.u32 %v2365, 4294901760
      %4860 = vmatpush1.msra.mxu0 %v4859
      %4861 = vmatprep.subr.mxu0 0.0
      %v4862 = vand.u32 %v2364, 4294901760
      %4863 = vmatpush1.msra.mxu0 %v4862
      %4864 = vmatprep.subr.mxu0 0.0
      %4865 = vmatpush2.msra.mxu0 0.0
      %4866 = vmatprep.subr.mxu0 0.0
      %4867 = vmatpush2.msra.mxu0 0.0
      %4868 = vmatprep.subr.mxu0 0.0
      %4869 = vmatpush2.msra.mxu0 0.0
      %4870 = vmatprep.subr.mxu0 0.0
      %4871 = vmatpush2.msra.mxu0 0.0
      %4872 = vmatprep.subr.mxu0 0.0
      %4873 = vmatpush2.msra.mxu0 0.0
      %4874 = vmatprep.subr.mxu0 0.0
      %4875 = vmatpush2.msra.mxu0 0.0
      %4876 = vmatprep.subr.mxu0 0.0
      %4877 = vmatpush2.msra.mxu0 0.0
      %4878 = vmatprep.subr.mxu0 0.0
      %4879 = vmatpush2.msra.mxu0 0.0
      %4880 = vmatprep.subr.mxu0 0.0
      %4881 = vmatpush2.msra.mxu0 0.0
      %4882 = vmatprep.subr.mxu0 0.0
      %4883 = vmatpush2.msra.mxu0 0.0
      %4884 = vmatprep.subr.mxu0 0.0
      %4885 = vmatpush2.msra.mxu0 0.0
      %4886 = vmatprep.subr.mxu0 0.0
      %4887 = vmatpush2.msra.mxu0 0.0
      %4888 = vmatprep.subr.mxu0 0.0
      %4889 = vmatpush2.msra.mxu0 0.0
      %4890 = vmatprep.subr.mxu0 0.0
      %4891 = vmatpush2.msra.mxu0 0.0
      %4892 = vmatprep.subr.mxu0 0.0
      %4893 = vmatpush2.msra.mxu0 0.0
      %4894 = vmatprep.subr.mxu0 0.0
      %4895 = vmatpush2.msra.mxu0 0.0
      %4896 = vmatprep.mubr.f32.mxu0 0.0
      %v4897 = vand.u32 %v3925, 4294901760
      %v4898 = vsub.f32 %v3925, %v4897
      %v4899 = vand.u32 %v4898, 4294901760
      %v4900 = vsub.f32 %v4898, %v4899
      %v4901 = vand.u32 %v4900, 4294901760
      %4902 = vmatmul.mubr.f32.gmra.mxu0 %v4901
      %v4903 = vpop.f32.mrf.mxu0
      %v4904 = vadd.f32 %v2385, %v4903
      %v4905 = vpop.f32.mrf.mxu0
      %4906 = vdwg.mxu0
      %4907 = vmatprep.subr.mxu0 0.0
      %v4908 = vand.u32 %v2379, 4294901760
      %v4909 = vsub.f32 %v2379, %v4908
      %v4910 = vand.u32 %v4909, 4294901760
      %v4911 = vsub.f32 %v4909, %v4910
      %v4912 = vand.u32 %v4911, 4294901760
      %4913 = vmatpush1.msra.mxu0 %v4912
      %4914 = vmatprep.subr.mxu0 0.0
      %v4915 = vand.u32 %v2378, 4294901760
      %v4916 = vsub.f32 %v2378, %v4915
      %v4917 = vand.u32 %v4916, 4294901760
      %v4918 = vsub.f32 %v4916, %v4917
      %v4919 = vand.u32 %v4918, 4294901760
      %4920 = vmatpush1.msra.mxu0 %v4919
      %4921 = vmatprep.subr.mxu0 0.0
      %v4922 = vand.u32 %v2377, 4294901760
      %v4923 = vsub.f32 %v2377, %v4922
      %v4924 = vand.u32 %v4923, 4294901760
      %v4925 = vsub.f32 %v4923, %v4924
      %v4926 = vand.u32 %v4925, 4294901760
      %4927 = vmatpush1.msra.mxu0 %v4926
      %4928 = vmatprep.subr.mxu0 0.0
      %v4929 = vand.u32 %v2376, 4294901760
      %v4930 = vsub.f32 %v2376, %v4929
      %v4931 = vand.u32 %v4930, 4294901760
      %v4932 = vsub.f32 %v4930, %v4931
      %v4933 = vand.u32 %v4932, 4294901760
      %4934 = vmatpush1.msra.mxu0 %v4933
      %4935 = vmatprep.subr.mxu0 0.0
      %v4936 = vand.u32 %v2375, 4294901760
      %v4937 = vsub.f32 %v2375, %v4936
      %v4938 = vand.u32 %v4937, 4294901760
      %v4939 = vsub.f32 %v4937, %v4938
      %v4940 = vand.u32 %v4939, 4294901760
      %4941 = vmatpush1.msra.mxu0 %v4940
      %4942 = vmatprep.subr.mxu0 0.0
      %v4943 = vand.u32 %v2374, 4294901760
      %v4944 = vsub.f32 %v2374, %v4943
      %v4945 = vand.u32 %v4944, 4294901760
      %v4946 = vsub.f32 %v4944, %v4945
      %v4947 = vand.u32 %v4946, 4294901760
      %4948 = vmatpush1.msra.mxu0 %v4947
      %4949 = vmatprep.subr.mxu0 0.0
      %v4950 = vand.u32 %v2373, 4294901760
      %v4951 = vsub.f32 %v2373, %v4950
      %v4952 = vand.u32 %v4951, 4294901760
      %v4953 = vsub.f32 %v4951, %v4952
      %v4954 = vand.u32 %v4953, 4294901760
      %4955 = vmatpush1.msra.mxu0 %v4954
      %4956 = vmatprep.subr.mxu0 0.0
      %v4957 = vand.u32 %v2372, 4294901760
      %v4958 = vsub.f32 %v2372, %v4957
      %v4959 = vand.u32 %v4958, 4294901760
      %v4960 = vsub.f32 %v4958, %v4959
      %v4961 = vand.u32 %v4960, 4294901760
      %4962 = vmatpush1.msra.mxu0 %v4961
      %4963 = vmatprep.subr.mxu0 0.0
      %v4964 = vand.u32 %v2371, 4294901760
      %v4965 = vsub.f32 %v2371, %v4964
      %v4966 = vand.u32 %v4965, 4294901760
      %v4967 = vsub.f32 %v4965, %v4966
      %v4968 = vand.u32 %v4967, 4294901760
      %4969 = vmatpush1.msra.mxu0 %v4968
      %4970 = vmatprep.subr.mxu0 0.0
      %v4971 = vand.u32 %v2370, 4294901760
      %v4972 = vsub.f32 %v2370, %v4971
      %v4973 = vand.u32 %v4972, 4294901760
      %v4974 = vsub.f32 %v4972, %v4973
      %v4975 = vand.u32 %v4974, 4294901760
      %4976 = vmatpush1.msra.mxu0 %v4975
      %4977 = vmatprep.subr.mxu0 0.0
      %v4978 = vand.u32 %v2369, 4294901760
      %v4979 = vsub.f32 %v2369, %v4978
      %v4980 = vand.u32 %v4979, 4294901760
      %v4981 = vsub.f32 %v4979, %v4980
      %v4982 = vand.u32 %v4981, 4294901760
      %4983 = vmatpush1.msra.mxu0 %v4982
      %4984 = vmatprep.subr.mxu0 0.0
      %v4985 = vand.u32 %v2368, 4294901760
      %v4986 = vsub.f32 %v2368, %v4985
      %v4987 = vand.u32 %v4986, 4294901760
      %v4988 = vsub.f32 %v4986, %v4987
      %v4989 = vand.u32 %v4988, 4294901760
      %4990 = vmatpush1.msra.mxu0 %v4989
      %4991 = vmatprep.subr.mxu0 0.0
      %v4992 = vand.u32 %v2367, 4294901760
      %v4993 = vsub.f32 %v2367, %v4992
      %v4994 = vand.u32 %v4993, 4294901760
      %v4995 = vsub.f32 %v4993, %v4994
      %v4996 = vand.u32 %v4995, 4294901760
      %4997 = vmatpush1.msra.mxu0 %v4996
      %4998 = vmatprep.subr.mxu0 0.0
      %v4999 = vand.u32 %v2366, 4294901760
      %v5000 = vsub.f32 %v2366, %v4999
      %v5001 = vand.u32 %v5000, 4294901760
      %v5002 = vsub.f32 %v5000, %v5001
      %v5003 = vand.u32 %v5002, 4294901760
      %5004 = vmatpush1.msra.mxu0 %v5003
      %5005 = vmatprep.subr.mxu0 0.0
      %v5006 = vand.u32 %v2365, 4294901760
      %v5007 = vsub.f32 %v2365, %v5006
      %v5008 = vand.u32 %v5007, 4294901760
      %v5009 = vsub.f32 %v5007, %v5008
      %v5010 = vand.u32 %v5009, 4294901760
      %5011 = vmatpush1.msra.mxu0 %v5010
      %5012 = vmatprep.subr.mxu0 0.0
      %v5013 = vand.u32 %v2364, 4294901760
      %v5014 = vsub.f32 %v2364, %v5013
      %v5015 = vand.u32 %v5014, 4294901760
      %v5016 = vsub.f32 %v5014, %v5015
      %v5017 = vand.u32 %v5016, 4294901760
      %5018 = vmatpush1.msra.mxu0 %v5017
      %5019 = vmatprep.subr.mxu0 0.0
      %5020 = vmatpush2.msra.mxu0 0.0
      %5021 = vmatprep.subr.mxu0 0.0
      %5022 = vmatpush2.msra.mxu0 0.0
      %5023 = vmatprep.subr.mxu0 0.0
      %5024 = vmatpush2.msra.mxu0 0.0
      %5025 = vmatprep.subr.mxu0 0.0
      %5026 = vmatpush2.msra.mxu0 0.0
      %5027 = vmatprep.subr.mxu0 0.0
      %5028 = vmatpush2.msra.mxu0 0.0
      %5029 = vmatprep.subr.mxu0 0.0
      %5030 = vmatpush2.msra.mxu0 0.0
      %5031 = vmatprep.subr.mxu0 0.0
      %5032 = vmatpush2.msra.mxu0 0.0
      %5033 = vmatprep.subr.mxu0 0.0
      %5034 = vmatpush2.msra.mxu0 0.0
      %5035 = vmatprep.subr.mxu0 0.0
      %5036 = vmatpush2.msra.mxu0 0.0
      %5037 = vmatprep.subr.mxu0 0.0
      %5038 = vmatpush2.msra.mxu0 0.0
      %5039 = vmatprep.subr.mxu0 0.0
      %5040 = vmatpush2.msra.mxu0 0.0
      %5041 = vmatprep.subr.mxu0 0.0
      %5042 = vmatpush2.msra.mxu0 0.0
      %5043 = vmatprep.subr.mxu0 0.0
      %5044 = vmatpush2.msra.mxu0 0.0
      %5045 = vmatprep.subr.mxu0 0.0
      %5046 = vmatpush2.msra.mxu0 0.0
      %5047 = vmatprep.subr.mxu0 0.0
      %5048 = vmatpush2.msra.mxu0 0.0
      %5049 = vmatprep.subr.mxu0 0.0
      %5050 = vmatpush2.msra.mxu0 0.0
      %5051 = vmatprep.mubr.f32.mxu0 0.0
      %v5052 = vand.u32 %v3925, 4294901760
      %5053 = vmatmul.mubr.f32.gmra.mxu0 %v5052
      %v5054 = vpop.f32.mrf.mxu0
      %v5055 = vadd.f32 %v4904, %v5054
      %v5056 = vpop.f32.mrf.mxu0
      %5057 = vdwg.mxu0
      %5058 = vmatprep.subr.mxu0 0.0
      %v5059 = vand.u32 %v2379, 4294901760
      %v5060 = vsub.f32 %v2379, %v5059
      %5061 = vmatpush1.msra.mxu0 %v5060
      %5062 = vmatprep.subr.mxu0 0.0
      %v5063 = vand.u32 %v2378, 4294901760
      %v5064 = vsub.f32 %v2378, %v5063
      %5065 = vmatpush1.msra.mxu0 %v5064
      %5066 = vmatprep.subr.mxu0 0.0
      %v5067 = vand.u32 %v2377, 4294901760
      %v5068 = vsub.f32 %v2377, %v5067
      %5069 = vmatpush1.msra.mxu0 %v5068
      %5070 = vmatprep.subr.mxu0 0.0
      %v5071 = vand.u32 %v2376, 4294901760
      %v5072 = vsub.f32 %v2376, %v5071
      %5073 = vmatpush1.msra.mxu0 %v5072
      %5074 = vmatprep.subr.mxu0 0.0
      %v5075 = vand.u32 %v2375, 4294901760
      %v5076 = vsub.f32 %v2375, %v5075
      %5077 = vmatpush1.msra.mxu0 %v5076
      %5078 = vmatprep.subr.mxu0 0.0
      %v5079 = vand.u32 %v2374, 4294901760
      %v5080 = vsub.f32 %v2374, %v5079
      %5081 = vmatpush1.msra.mxu0 %v5080
      %5082 = vmatprep.subr.mxu0 0.0
      %v5083 = vand.u32 %v2373, 4294901760
      %v5084 = vsub.f32 %v2373, %v5083
      %5085 = vmatpush1.msra.mxu0 %v5084
      %5086 = vmatprep.subr.mxu0 0.0
      %v5087 = vand.u32 %v2372, 4294901760
      %v5088 = vsub.f32 %v2372, %v5087
      %5089 = vmatpush1.msra.mxu0 %v5088
      %5090 = vmatprep.subr.mxu0 0.0
      %v5091 = vand.u32 %v2371, 4294901760
      %v5092 = vsub.f32 %v2371, %v5091
      %5093 = vmatpush1.msra.mxu0 %v5092
      %5094 = vmatprep.subr.mxu0 0.0
      %v5095 = vand.u32 %v2370, 4294901760
      %v5096 = vsub.f32 %v2370, %v5095
      %5097 = vmatpush1.msra.mxu0 %v5096
      %5098 = vmatprep.subr.mxu0 0.0
      %v5099 = vand.u32 %v2369, 4294901760
      %v5100 = vsub.f32 %v2369, %v5099
      %5101 = vmatpush1.msra.mxu0 %v5100
      %5102 = vmatprep.subr.mxu0 0.0
      %v5103 = vand.u32 %v2368, 4294901760
      %v5104 = vsub.f32 %v2368, %v5103
      %5105 = vmatpush1.msra.mxu0 %v5104
      %5106 = vmatprep.subr.mxu0 0.0
      %v5107 = vand.u32 %v2367, 4294901760
      %v5108 = vsub.f32 %v2367, %v5107
      %5109 = vmatpush1.msra.mxu0 %v5108
      %5110 = vmatprep.subr.mxu0 0.0
      %v5111 = vand.u32 %v2366, 4294901760
      %v5112 = vsub.f32 %v2366, %v5111
      %5113 = vmatpush1.msra.mxu0 %v5112
      %5114 = vmatprep.subr.mxu0 0.0
      %v5115 = vand.u32 %v2365, 4294901760
      %v5116 = vsub.f32 %v2365, %v5115
      %5117 = vmatpush1.msra.mxu0 %v5116
      %5118 = vmatprep.subr.mxu0 0.0
      %v5119 = vand.u32 %v2364, 4294901760
      %v5120 = vsub.f32 %v2364, %v5119
      %5121 = vmatpush1.msra.mxu0 %v5120
      %5122 = vmatprep.subr.mxu0 0.0
      %5123 = vmatpush2.msra.mxu0 0.0
      %5124 = vmatprep.subr.mxu0 0.0
      %5125 = vmatpush2.msra.mxu0 0.0
      %5126 = vmatprep.subr.mxu0 0.0
      %5127 = vmatpush2.msra.mxu0 0.0
      %5128 = vmatprep.subr.mxu0 0.0
      %5129 = vmatpush2.msra.mxu0 0.0
      %5130 = vmatprep.subr.mxu0 0.0
      %5131 = vmatpush2.msra.mxu0 0.0
      %5132 = vmatprep.subr.mxu0 0.0
      %5133 = vmatpush2.msra.mxu0 0.0
      %5134 = vmatprep.subr.mxu0 0.0
      %5135 = vmatpush2.msra.mxu0 0.0
      %5136 = vmatprep.subr.mxu0 0.0
      %5137 = vmatpush2.msra.mxu0 0.0
      %5138 = vmatprep.subr.mxu0 0.0
      %5139 = vmatpush2.msra.mxu0 0.0
      %5140 = vmatprep.subr.mxu0 0.0
      %5141 = vmatpush2.msra.mxu0 0.0
      %5142 = vmatprep.subr.mxu0 0.0
      %5143 = vmatpush2.msra.mxu0 0.0
      %5144 = vmatprep.subr.mxu0 0.0
      %5145 = vmatpush2.msra.mxu0 0.0
      %5146 = vmatprep.subr.mxu0 0.0
      %5147 = vmatpush2.msra.mxu0 0.0
      %5148 = vmatprep.subr.mxu0 0.0
      %5149 = vmatpush2.msra.mxu0 0.0
      %5150 = vmatprep.subr.mxu0 0.0
      %5151 = vmatpush2.msra.mxu0 0.0
      %5152 = vmatprep.subr.mxu0 0.0
      %5153 = vmatpush2.msra.mxu0 0.0
      %5154 = vmatprep.mubr.f32.mxu0 0.0
      %v5155 = vand.u32 %v3925, 4294901760
      %v5156 = vsub.f32 %v3925, %v5155
      %5157 = vmatmul.mubr.f32.gmra.mxu0 %v5156
      %v5158 = vpop.f32.mrf.mxu0
      %v5159 = vadd.f32 %v5055, %v5158
      %v5160 = vpop.f32.mrf.mxu0
      %5161 = vdwg.mxu0
      %5162 = vmatprep.subr.mxu0 0.0
      %v5163 = vand.u32 %v2379, 4294901760
      %5164 = vmatpush1.msra.mxu0 %v5163
      %5165 = vmatprep.subr.mxu0 0.0
      %v5166 = vand.u32 %v2378, 4294901760
      %5167 = vmatpush1.msra.mxu0 %v5166
      %5168 = vmatprep.subr.mxu0 0.0
      %v5169 = vand.u32 %v2377, 4294901760
      %5170 = vmatpush1.msra.mxu0 %v5169
      %5171 = vmatprep.subr.mxu0 0.0
      %v5172 = vand.u32 %v2376, 4294901760
      %5173 = vmatpush1.msra.mxu0 %v5172
      %5174 = vmatprep.subr.mxu0 0.0
      %v5175 = vand.u32 %v2375, 4294901760
      %5176 = vmatpush1.msra.mxu0 %v5175
      %5177 = vmatprep.subr.mxu0 0.0
      %v5178 = vand.u32 %v2374, 4294901760
      %5179 = vmatpush1.msra.mxu0 %v5178
      %5180 = vmatprep.subr.mxu0 0.0
      %v5181 = vand.u32 %v2373, 4294901760
      %5182 = vmatpush1.msra.mxu0 %v5181
      %5183 = vmatprep.subr.mxu0 0.0
      %v5184 = vand.u32 %v2372, 4294901760
      %5185 = vmatpush1.msra.mxu0 %v5184
      %5186 = vmatprep.subr.mxu0 0.0
      %v5187 = vand.u32 %v2371, 4294901760
      %5188 = vmatpush1.msra.mxu0 %v5187
      %5189 = vmatprep.subr.mxu0 0.0
      %v5190 = vand.u32 %v2370, 4294901760
      %5191 = vmatpush1.msra.mxu0 %v5190
      %5192 = vmatprep.subr.mxu0 0.0
      %v5193 = vand.u32 %v2369, 4294901760
      %5194 = vmatpush1.msra.mxu0 %v5193
      %5195 = vmatprep.subr.mxu0 0.0
      %v5196 = vand.u32 %v2368, 4294901760
      %5197 = vmatpush1.msra.mxu0 %v5196
      %5198 = vmatprep.subr.mxu0 0.0
      %v5199 = vand.u32 %v2367, 4294901760
      %5200 = vmatpush1.msra.mxu0 %v5199
      %5201 = vmatprep.subr.mxu0 0.0
      %v5202 = vand.u32 %v2366, 4294901760
      %5203 = vmatpush1.msra.mxu0 %v5202
      %5204 = vmatprep.subr.mxu0 0.0
      %v5205 = vand.u32 %v2365, 4294901760
      %5206 = vmatpush1.msra.mxu0 %v5205
      %5207 = vmatprep.subr.mxu0 0.0
      %v5208 = vand.u32 %v2364, 4294901760
      %5209 = vmatpush1.msra.mxu0 %v5208
      %5210 = vmatprep.subr.mxu0 0.0
      %5211 = vmatpush2.msra.mxu0 0.0
      %5212 = vmatprep.subr.mxu0 0.0
      %5213 = vmatpush2.msra.mxu0 0.0
      %5214 = vmatprep.subr.mxu0 0.0
      %5215 = vmatpush2.msra.mxu0 0.0
      %5216 = vmatprep.subr.mxu0 0.0
      %5217 = vmatpush2.msra.mxu0 0.0
      %5218 = vmatprep.subr.mxu0 0.0
      %5219 = vmatpush2.msra.mxu0 0.0
      %5220 = vmatprep.subr.mxu0 0.0
      %5221 = vmatpush2.msra.mxu0 0.0
      %5222 = vmatprep.subr.mxu0 0.0
      %5223 = vmatpush2.msra.mxu0 0.0
      %5224 = vmatprep.subr.mxu0 0.0
      %5225 = vmatpush2.msra.mxu0 0.0
      %5226 = vmatprep.subr.mxu0 0.0
      %5227 = vmatpush2.msra.mxu0 0.0
      %5228 = vmatprep.subr.mxu0 0.0
      %5229 = vmatpush2.msra.mxu0 0.0
      %5230 = vmatprep.subr.mxu0 0.0
      %5231 = vmatpush2.msra.mxu0 0.0
      %5232 = vmatprep.subr.mxu0 0.0
      %5233 = vmatpush2.msra.mxu0 0.0
      %5234 = vmatprep.subr.mxu0 0.0
      %5235 = vmatpush2.msra.mxu0 0.0
      %5236 = vmatprep.subr.mxu0 0.0
      %5237 = vmatpush2.msra.mxu0 0.0
      %5238 = vmatprep.subr.mxu0 0.0
      %5239 = vmatpush2.msra.mxu0 0.0
      %5240 = vmatprep.subr.mxu0 0.0
      %5241 = vmatpush2.msra.mxu0 0.0
      %5242 = vmatprep.mubr.f32.mxu0 0.0
      %v5243 = vand.u32 %v3925, 4294901760
      %v5244 = vsub.f32 %v3925, %v5243
      %v5245 = vand.u32 %v5244, 4294901760
      %5246 = vmatmul.mubr.f32.gmra.mxu0 %v5245
      %v5247 = vpop.f32.mrf.mxu0
      %v5248 = vadd.f32 %v5159, %v5247
      %v5249 = vpop.f32.mrf.mxu0
      %5250 = vdwg.mxu0
      %5251 = vmatprep.subr.mxu0 0.0
      %v5252 = vand.u32 %v2379, 4294901760
      %v5253 = vsub.f32 %v2379, %v5252
      %v5254 = vand.u32 %v5253, 4294901760
      %5255 = vmatpush1.msra.mxu0 %v5254
      %5256 = vmatprep.subr.mxu0 0.0
      %v5257 = vand.u32 %v2378, 4294901760
      %v5258 = vsub.f32 %v2378, %v5257
      %v5259 = vand.u32 %v5258, 4294901760
      %5260 = vmatpush1.msra.mxu0 %v5259
      %5261 = vmatprep.subr.mxu0 0.0
      %v5262 = vand.u32 %v2377, 4294901760
      %v5263 = vsub.f32 %v2377, %v5262
      %v5264 = vand.u32 %v5263, 4294901760
      %5265 = vmatpush1.msra.mxu0 %v5264
      %5266 = vmatprep.subr.mxu0 0.0
      %v5267 = vand.u32 %v2376, 4294901760
      %v5268 = vsub.f32 %v2376, %v5267
      %v5269 = vand.u32 %v5268, 4294901760
      %5270 = vmatpush1.msra.mxu0 %v5269
      %5271 = vmatprep.subr.mxu0 0.0
      %v5272 = vand.u32 %v2375, 4294901760
      %v5273 = vsub.f32 %v2375, %v5272
      %v5274 = vand.u32 %v5273, 4294901760
      %5275 = vmatpush1.msra.mxu0 %v5274
      %5276 = vmatprep.subr.mxu0 0.0
      %v5277 = vand.u32 %v2374, 4294901760
      %v5278 = vsub.f32 %v2374, %v5277
      %v5279 = vand.u32 %v5278, 4294901760
      %5280 = vmatpush1.msra.mxu0 %v5279
      %5281 = vmatprep.subr.mxu0 0.0
      %v5282 = vand.u32 %v2373, 4294901760
      %v5283 = vsub.f32 %v2373, %v5282
      %v5284 = vand.u32 %v5283, 4294901760
      %5285 = vmatpush1.msra.mxu0 %v5284
      %5286 = vmatprep.subr.mxu0 0.0
      %v5287 = vand.u32 %v2372, 4294901760
      %v5288 = vsub.f32 %v2372, %v5287
      %v5289 = vand.u32 %v5288, 4294901760
      %5290 = vmatpush1.msra.mxu0 %v5289
      %5291 = vmatprep.subr.mxu0 0.0
      %v5292 = vand.u32 %v2371, 4294901760
      %v5293 = vsub.f32 %v2371, %v5292
      %v5294 = vand.u32 %v5293, 4294901760
      %5295 = vmatpush1.msra.mxu0 %v5294
      %5296 = vmatprep.subr.mxu0 0.0
      %v5297 = vand.u32 %v2370, 4294901760
      %v5298 = vsub.f32 %v2370, %v5297
      %v5299 = vand.u32 %v5298, 4294901760
      %5300 = vmatpush1.msra.mxu0 %v5299
      %5301 = vmatprep.subr.mxu0 0.0
      %v5302 = vand.u32 %v2369, 4294901760
      %v5303 = vsub.f32 %v2369, %v5302
      %v5304 = vand.u32 %v5303, 4294901760
      %5305 = vmatpush1.msra.mxu0 %v5304
      %5306 = vmatprep.subr.mxu0 0.0
      %v5307 = vand.u32 %v2368, 4294901760
      %v5308 = vsub.f32 %v2368, %v5307
      %v5309 = vand.u32 %v5308, 4294901760
      %5310 = vmatpush1.msra.mxu0 %v5309
      %5311 = vmatprep.subr.mxu0 0.0
      %v5312 = vand.u32 %v2367, 4294901760
      %v5313 = vsub.f32 %v2367, %v5312
      %v5314 = vand.u32 %v5313, 4294901760
      %5315 = vmatpush1.msra.mxu0 %v5314
      %5316 = vmatprep.subr.mxu0 0.0
      %v5317 = vand.u32 %v2366, 4294901760
      %v5318 = vsub.f32 %v2366, %v5317
      %v5319 = vand.u32 %v5318, 4294901760
      %5320 = vmatpush1.msra.mxu0 %v5319
      %5321 = vmatprep.subr.mxu0 0.0
      %v5322 = vand.u32 %v2365, 4294901760
      %v5323 = vsub.f32 %v2365, %v5322
      %v5324 = vand.u32 %v5323, 4294901760
      %5325 = vmatpush1.msra.mxu0 %v5324
      %5326 = vmatprep.subr.mxu0 0.0
      %v5327 = vand.u32 %v2364, 4294901760
      %v5328 = vsub.f32 %v2364, %v5327
      %v5329 = vand.u32 %v5328, 4294901760
      %5330 = vmatpush1.msra.mxu0 %v5329
      %5331 = vmatprep.subr.mxu0 0.0
      %5332 = vmatpush2.msra.mxu0 0.0
      %5333 = vmatprep.subr.mxu0 0.0
      %5334 = vmatpush2.msra.mxu0 0.0
      %5335 = vmatprep.subr.mxu0 0.0
      %5336 = vmatpush2.msra.mxu0 0.0
      %5337 = vmatprep.subr.mxu0 0.0
      %5338 = vmatpush2.msra.mxu0 0.0
      %5339 = vmatprep.subr.mxu0 0.0
      %5340 = vmatpush2.msra.mxu0 0.0
      %5341 = vmatprep.subr.mxu0 0.0
      %5342 = vmatpush2.msra.mxu0 0.0
      %5343 = vmatprep.subr.mxu0 0.0
      %5344 = vmatpush2.msra.mxu0 0.0
      %5345 = vmatprep.subr.mxu0 0.0
      %5346 = vmatpush2.msra.mxu0 0.0
      %5347 = vmatprep.subr.mxu0 0.0
      %5348 = vmatpush2.msra.mxu0 0.0
      %5349 = vmatprep.subr.mxu0 0.0
      %5350 = vmatpush2.msra.mxu0 0.0
      %5351 = vmatprep.subr.mxu0 0.0
      %5352 = vmatpush2.msra.mxu0 0.0
      %5353 = vmatprep.subr.mxu0 0.0
      %5354 = vmatpush2.msra.mxu0 0.0
      %5355 = vmatprep.subr.mxu0 0.0
      %5356 = vmatpush2.msra.mxu0 0.0
      %5357 = vmatprep.subr.mxu0 0.0
      %5358 = vmatpush2.msra.mxu0 0.0
      %5359 = vmatprep.subr.mxu0 0.0
      %5360 = vmatpush2.msra.mxu0 0.0
      %5361 = vmatprep.subr.mxu0 0.0
      %5362 = vmatpush2.msra.mxu0 0.0
      %5363 = vmatprep.mubr.f32.mxu0 0.0
      %v5364 = vand.u32 %v3925, 4294901760
      %5365 = vmatmul.mubr.f32.gmra.mxu0 %v5364
      %v5366 = vpop.f32.mrf.mxu0
      %v5367 = vadd.f32 %v5248, %v5366
      %v5368 = vpop.f32.mrf.mxu0
      %5369 = vdwg.mxu0
      %5370 = vmatprep.subr.mxu0 0.0
      %v5371 = vand.u32 %v2379, 4294901760
      %5372 = vmatpush1.msra.mxu0 %v5371
      %5373 = vmatprep.subr.mxu0 0.0
      %v5374 = vand.u32 %v2378, 4294901760
      %5375 = vmatpush1.msra.mxu0 %v5374
      %5376 = vmatprep.subr.mxu0 0.0
      %v5377 = vand.u32 %v2377, 4294901760
      %5378 = vmatpush1.msra.mxu0 %v5377
      %5379 = vmatprep.subr.mxu0 0.0
      %v5380 = vand.u32 %v2376, 4294901760
      %5381 = vmatpush1.msra.mxu0 %v5380
      %5382 = vmatprep.subr.mxu0 0.0
      %v5383 = vand.u32 %v2375, 4294901760
      %5384 = vmatpush1.msra.mxu0 %v5383
      %5385 = vmatprep.subr.mxu0 0.0
      %v5386 = vand.u32 %v2374, 4294901760
      %5387 = vmatpush1.msra.mxu0 %v5386
      %5388 = vmatprep.subr.mxu0 0.0
      %v5389 = vand.u32 %v2373, 4294901760
      %5390 = vmatpush1.msra.mxu0 %v5389
      %5391 = vmatprep.subr.mxu0 0.0
      %v5392 = vand.u32 %v2372, 4294901760
      %5393 = vmatpush1.msra.mxu0 %v5392
      %5394 = vmatprep.subr.mxu0 0.0
      %v5395 = vand.u32 %v2371, 4294901760
      %5396 = vmatpush1.msra.mxu0 %v5395
      %5397 = vmatprep.subr.mxu0 0.0
      %v5398 = vand.u32 %v2370, 4294901760
      %5399 = vmatpush1.msra.mxu0 %v5398
      %5400 = vmatprep.subr.mxu0 0.0
      %v5401 = vand.u32 %v2369, 4294901760
      %5402 = vmatpush1.msra.mxu0 %v5401
      %5403 = vmatprep.subr.mxu0 0.0
      %v5404 = vand.u32 %v2368, 4294901760
      %5405 = vmatpush1.msra.mxu0 %v5404
      %5406 = vmatprep.subr.mxu0 0.0
      %v5407 = vand.u32 %v2367, 4294901760
      %5408 = vmatpush1.msra.mxu0 %v5407
      %5409 = vmatprep.subr.mxu0 0.0
      %v5410 = vand.u32 %v2366, 4294901760
      %5411 = vmatpush1.msra.mxu0 %v5410
      %5412 = vmatprep.subr.mxu0 0.0
      %v5413 = vand.u32 %v2365, 4294901760
      %5414 = vmatpush1.msra.mxu0 %v5413
      %5415 = vmatprep.subr.mxu0 0.0
      %v5416 = vand.u32 %v2364, 4294901760
      %5417 = vmatpush1.msra.mxu0 %v5416
      %5418 = vmatprep.subr.mxu0 0.0
      %5419 = vmatpush2.msra.mxu0 0.0
      %5420 = vmatprep.subr.mxu0 0.0
      %5421 = vmatpush2.msra.mxu0 0.0
      %5422 = vmatprep.subr.mxu0 0.0
      %5423 = vmatpush2.msra.mxu0 0.0
      %5424 = vmatprep.subr.mxu0 0.0
      %5425 = vmatpush2.msra.mxu0 0.0
      %5426 = vmatprep.subr.mxu0 0.0
      %5427 = vmatpush2.msra.mxu0 0.0
      %5428 = vmatprep.subr.mxu0 0.0
      %5429 = vmatpush2.msra.mxu0 0.0
      %5430 = vmatprep.subr.mxu0 0.0
      %5431 = vmatpush2.msra.mxu0 0.0
      %5432 = vmatprep.subr.mxu0 0.0
      %5433 = vmatpush2.msra.mxu0 0.0
      %5434 = vmatprep.subr.mxu0 0.0
      %5435 = vmatpush2.msra.mxu0 0.0
      %5436 = vmatprep.subr.mxu0 0.0
      %5437 = vmatpush2.msra.mxu0 0.0
      %5438 = vmatprep.subr.mxu0 0.0
      %5439 = vmatpush2.msra.mxu0 0.0
      %5440 = vmatprep.subr.mxu0 0.0
      %5441 = vmatpush2.msra.mxu0 0.0
      %5442 = vmatprep.subr.mxu0 0.0
      %5443 = vmatpush2.msra.mxu0 0.0
      %5444 = vmatprep.subr.mxu0 0.0
      %5445 = vmatpush2.msra.mxu0 0.0
      %5446 = vmatprep.subr.mxu0 0.0
      %5447 = vmatpush2.msra.mxu0 0.0
      %5448 = vmatprep.subr.mxu0 0.0
      %5449 = vmatpush2.msra.mxu0 0.0
      %5450 = vmatprep.mubr.f32.mxu0 0.0
      %v5451 = vand.u32 %v3925, 4294901760
      %5452 = vmatmul.mubr.f32.gmra.mxu0 %v5451
      %v5453 = vpop.f32.mrf.mxu0
      %v5454 = vadd.f32 %v5367, %v5453
      %v5455 = vpop.f32.mrf.mxu0
      %5456 = vdwg.mxu0
      %v5457 = vmul.f32 %v4808, %v5454
      %v5458 = vadd.f32 %v3946, %v5457
      %v5459 = vtanh.pop %v5458
      %v5460 = vsub.f32 1.0, %v4815
      %v5461 = vmul.f32 %v5460, %v5459
      %v5462 = vmul.f32 %v4815, %v3925
      %v5463 = vadd.f32 %v5461, %v5462
      %v5464 = vmul.f32 %v5463, %v2392
      %5465 = vadd.xlane.f32.xlu0 %v5464
      %v5466 = vpop.xlane.xlu0 %5465
      %v5468 = vlaneseq
      %v5469 = vshrl.u32 %v5468, 7
      %v5470 = vsub.s32 %v3931, %v5469
      %v5471 = vrot.slane %v5466, %v5470
      %s5473 = scalar_lea.vmem [#allocation4], %s3940
      %5474 = vst.msk [vmem:[%s5473] sm:$0x1] %vm3938, %v5471
    $region62: #{tpu_custom_call.1} parent=1 // loop_footer
      %s2400 = sadd.s32 1, %s2396
    $region63: #{tpu_custom_call.1} parent=1 // loop_footer_branch
      %2395 = sbr.rel target = $region59
    $region64: #{tpu_custom_call.1} parent=1 // loop_exit
      _
    %5475 = vst [vmem:[#allocation3] sm:$0xff] %v2401
    %v5476 = vld [vmem:[#allocation4] sm:$0xff]
    %5477 = vxpose.xlu0.b32.start [1/16] %v5476, 128
    %5478 = vxpose.xlu0.b32.cont [2/16] 0.0, 128
    %5479 = vxpose.xlu0.b32.cont [3/16] 0.0, 128
    %5480 = vxpose.xlu0.b32.cont [4/16] 0.0, 128
    %5481 = vxpose.xlu0.b32.cont [5/16] 0.0, 128
    %5482 = vxpose.xlu0.b32.cont [6/16] 0.0, 128
    %5483 = vxpose.xlu0.b32.cont [7/16] 0.0, 128
    %5484 = vxpose.xlu0.b32.cont [8/16] 0.0, 128
    %5485 = vxpose.xlu0.b32.cont [9/16] 0.0, 128
    %5486 = vxpose.xlu0.b32.cont [10/16] 0.0, 128
    %5487 = vxpose.xlu0.b32.cont [11/16] 0.0, 128
    %5488 = vxpose.xlu0.b32.cont [12/16] 0.0, 128
    %5489 = vxpose.xlu0.b32.cont [13/16] 0.0, 128
    %5490 = vxpose.xlu0.b32.cont [14/16] 0.0, 128
    %5491 = vxpose.xlu0.b32.cont [15/16] 0.0, 128
    %5492 = vxpose.xlu0.b32.end [16/16] 0.0, 128
    %v5493 = vpop.trf.xlu0
    %v5494 = vpop.trf.xlu0
    %v5495 = vpop.trf.xlu0
    %v5496 = vpop.trf.xlu0
    %v5497 = vpop.trf.xlu0
    %v5498 = vpop.trf.xlu0
    %v5499 = vpop.trf.xlu0
    %v5500 = vpop.trf.xlu0
    %v5501 = vpop.trf.xlu0
    %v5502 = vpop.trf.xlu0
    %v5503 = vpop.trf.xlu0
    %v5504 = vpop.trf.xlu0
    %v5505 = vpop.trf.xlu0
    %v5506 = vpop.trf.xlu0
    %v5507 = vpop.trf.xlu0
    %v5508 = vpop.trf.xlu0
    %s5509 = smul.u32 0, 8
    %v5510 = vlaneseq
    %v5511 = vand.u32 %v5510, 127
    %v5512 = vstv %s5509
    %v5513 = vadd.s32 %v5512, %v5511
    %v5514 = vld [vmem:[%s8] sm:$0xff]
    %5515 = vset.pattern.permute.xlu0 0
    %5516 = vperm.xlu0 %5515, %v5514
    %v5517 = vpop.permute.xlu0 %5516
    %vm5518 = vcmp.lt.s32.totalorder %v5513, %v5517
    %v5519 = vsel %vm5518, %v5493, 0.0
    %v5520 = vld [vmem:[#allocation5] sm:$0x1]
    %v5522 = vlaneseq
    %v5523 = vshrl.u32 %v5522, 7
    %v5524 = vsub.s32 0, %v5523
    %v5525 = vrot.slane %v5520, %v5524
    %5526 = vset.pattern.permute.xlu0 0
    %5527 = vperm.xlu0 %5526, %v5525
    %v5528 = vpop.permute.xlu0 %5527
    %v5530 = vadd.f32 %v5519, %v5528
    %v5531 = vxor.u32 %v5530, 2147483648
    %v5532 = vmul.f32 %v5531, 1.442695
    %v5533 = vpow.pop %v5532
    %v5534 = vadd.f32 %v5533, 1.0
    %v5535 = vrcp.pop %v5534
    %v5536 = vmul.f32 1.0, %v5535
    %vm5537 = vcmask 64512
    %5538 = vst.msk [vmem:[#allocation14] sm:$0xff] %vm5537, %v5536
    // Predicated region
    $region65: #{tpu_custom_call.1} parent=1 // pred_check
      _
    $region66: #{tpu_custom_call.1} parent=1 // pred_check_branch
      %5540 = sbr.rel (0) target = $region68
    $region67: #{tpu_custom_call.1} parent=1 // pred_region
      %s5542 = ssub.s32 128, 128
      %5543 = vsyncadd [#allocation8], %s5542
      %s5545 = sshll.u32 [#allocation14], 4
      %s5546 = int_to_ptr.vmem [resolvable:$true] %s5545
      %5548 = dma.vmem_to_hbm [thread:$0]  %s5546, 128, %s9, [#allocation8]
    $region68: #{tpu_custom_call.1} parent=1 // pred_fallthru
      _
    // Predicated region
    $region69: #{tpu_custom_call.1} parent=1 // pred_check
      _
    $region70: #{tpu_custom_call.1} parent=1 // pred_check_branch
      %5550 = sbr.rel (0) target = $region72
    $region71: #{tpu_custom_call.1} parent=1 // pred_region
      %5551 = dma.done [#allocation8], 128
    $region72: #{tpu_custom_call.1} parent=1 // pred_fallthru
      _
    %5552 = vsyncpa [#allocation7], 1
    %5553 = vsyncpa [#allocation10], 1
    %5554 = vsyncpa [#allocation13], 1
    %5555 = vsyncpa [#allocation8], 1

</llo_original>
